<compile_context>
chip_gen: v6e
topology: v6e:2x2x1
jax: 0.10.0
libtpu: 0.0.40
codegen_flags: <defaults>
</compile_context>

<pallas_src>
import functools

import jax
import jax.numpy as jnp
from jax.experimental import pallas as pl
from jax.experimental.pallas import tpu as pltpu

BN_EPS = 1e-5      # PyTorch BatchNorm2d default
NEG_SLOPE = 0.01   # PyTorch LeakyReLU default


def _round_up(v, k):
    return ((v + k - 1) // k) * k


# ----------------------------- in-kernel helpers -----------------------------

def _leaky_relu(x):
    return jnp.where(x > 0, x, NEG_SLOPE * x)


def _conv3x3_from_halo(buf_ref, w_ref, *, wsp, m, top, cout):
    """3x3 / pad=1 / stride=1 conv over one image stored as a flattened (rows, C) slab.

    buf_ref rows = [top zero rows | m = h*w image rows (row-major) | >= wsp+1 zero rows].
    For output pixel p = i*wsp + j and tap (dh, dw), the needed input pixel sits at buffer
    row p + (top - wsp - 1) + dh*wsp + dw, so every tap is one contiguous m-row slice and
    one MXU dot.  Vertical borders land in the zero pad rows; left/right border taps are
    zeroed with a per-row mask.
    """
    j = jax.lax.broadcasted_iota(jnp.int32, (m, 1), 0) % wsp
    mask_l = (j > 0).astype(jnp.float32)          # tap column dw==0 invalid at j==0
    mask_r = (j < wsp - 1).astype(jnp.float32)    # tap column dw==2 invalid at j==wsp-1
    acc = jnp.zeros((m, cout), jnp.float32)
    base = top - wsp - 1
    for dh in range(3):
        for dw in range(3):
            src = buf_ref[pl.ds(base + dh * wsp + dw, m), :]
            if dw == 0:
                src = src * mask_l
            elif dw == 2:
                src = src * mask_r
            acc = acc + jnp.dot(src, w_ref[dh * 3 + dw],
                                preferred_element_type=jnp.float32)
    return acc


# ----------------------------- Pallas kernels -----------------------------

def _stage1_kernel(xp_ref, wd_ref, bd_ref, w1_ref, z1_ref, s_ref, q_ref, buf,
                   *, wsp, m, top, cout):
    # (a) 2x2/stride-2 conv + bias as a single matmul on space-to-depth patch rows.
    y = (jnp.dot(xp_ref[0], wd_ref[...], preferred_element_type=jnp.float32)
         + bd_ref[...])
    # (b) 3x3 conv #1 on a zero-halo VMEM buffer (no HBM im2col).
    buf[...] = jnp.zeros_like(buf)
    buf[pl.ds(top, m), :] = y
    z = _conv3x3_from_halo(buf, w1_ref, wsp=wsp, m=m, top=top, cout=cout)
    z1_ref[0] = z
    # (c) fused per-image BatchNorm partial statistics (epilogue).
    s_ref[...] = jnp.sum(z, axis=0, keepdims=True).reshape(1, 1, cout)
    q_ref[...] = jnp.sum(z * z, axis=0, keepdims=True).reshape(1, 1, cout)


def _stage2_kernel(z1_ref, ss_ref, w_ref, z2_ref, s_ref, q_ref, buf,
                   *, wsp, m, top, cout):
    # (a) fused BN1 apply + LeakyReLU prologue (Dropout p=0 is identity).
    a = _leaky_relu(z1_ref[0] * ss_ref[0:1, :] + ss_ref[1:2, :])
    # (b) 3x3 conv #2 on the zero-halo VMEM buffer.
    buf[...] = jnp.zeros_like(buf)
    buf[pl.ds(top, m), :] = a
    z = _conv3x3_from_halo(buf, w_ref, wsp=wsp, m=m, top=top, cout=cout)
    z2_ref[0] = z
    # (c) fused per-image BN2 partial statistics.
    s_ref[...] = jnp.sum(z, axis=0, keepdims=True).reshape(1, 1, cout)
    q_ref[...] = jnp.sum(z * z, axis=0, keepdims=True).reshape(1, 1, cout)


def _stage3_kernel(z2_ref, ss_ref, o_ref):
    # BN2 apply + LeakyReLU.
    o_ref[0] = _leaky_relu(z2_ref[0] * ss_ref[0:1, :] + ss_ref[1:2, :])


# ----------------------------- pallas_call wrappers -----------------------------

def _stage1(xp, wd, bd, w1r, *, wsp):
    n, m, kin = xp.shape
    cin = wd.shape[1]
    cout = w1r.shape[-1]
    top = _round_up(wsp + 1, 8)
    buf_rows = _round_up(top + m + wsp + 1, 8)
    kern = functools.partial(_stage1_kernel, wsp=wsp, m=m, top=top, cout=cout)
    return pl.pallas_call(
        kern,
        out_shape=(
            jax.ShapeDtypeStruct((n, m, cout), jnp.float32),   # z1 (pre-BN conv output)
            jax.ShapeDtypeStruct((n, 1, cout), jnp.float32),   # per-image sum
            jax.ShapeDtypeStruct((n, 1, cout), jnp.float32),   # per-image sum of squares
        ),
        grid_spec=pltpu.PrefetchScalarGridSpec(
            num_scalar_prefetch=0,
            grid=(n,),
            in_specs=[
                pl.BlockSpec((1, m, kin), lambda i: (i, 0, 0)),
                pl.BlockSpec((kin, cin), lambda i: (0, 0)),
                pl.BlockSpec((1, cin), lambda i: (0, 0)),
                pl.BlockSpec((9, cin, cout), lambda i: (0, 0, 0)),
            ],
            out_specs=(
                pl.BlockSpec((1, m, cout), lambda i: (i, 0, 0)),
                pl.BlockSpec((1, 1, cout), lambda i: (i, 0, 0)),
                pl.BlockSpec((1, 1, cout), lambda i: (i, 0, 0)),
            ),
            scratch_shapes=[pltpu.VMEM((buf_rows, cin), jnp.float32)],
        ),
        compiler_params=pltpu.CompilerParams(dimension_semantics=("parallel",)),
    )(xp, wd, bd, w1r)


def _stage2(z1, ss1, w2r, *, wsp):
    n, m, c = z1.shape
    cout = w2r.shape[-1]
    top = _round_up(wsp + 1, 8)
    buf_rows = _round_up(top + m + wsp + 1, 8)
    kern = functools.partial(_stage2_kernel, wsp=wsp, m=m, top=top, cout=cout)
    return pl.pallas_call(
        kern,
        out_shape=(
            jax.ShapeDtypeStruct((n, m, cout), jnp.float32),
            jax.ShapeDtypeStruct((n, 1, cout), jnp.float32),
            jax.ShapeDtypeStruct((n, 1, cout), jnp.float32),
        ),
        grid_spec=pltpu.PrefetchScalarGridSpec(
            num_scalar_prefetch=0,
            grid=(n,),
            in_specs=[
                pl.BlockSpec((1, m, c), lambda i: (i, 0, 0)),
                pl.BlockSpec((2, c), lambda i: (0, 0)),
                pl.BlockSpec((9, c, cout), lambda i: (0, 0, 0)),
            ],
            out_specs=(
                pl.BlockSpec((1, m, cout), lambda i: (i, 0, 0)),
                pl.BlockSpec((1, 1, cout), lambda i: (i, 0, 0)),
                pl.BlockSpec((1, 1, cout), lambda i: (i, 0, 0)),
            ),
            scratch_shapes=[pltpu.VMEM((buf_rows, c), jnp.float32)],
        ),
        compiler_params=pltpu.CompilerParams(dimension_semantics=("parallel",)),
    )(z1, ss1, w2r)


def _stage3(z2, ss2):
    n, m, c = z2.shape
    return pl.pallas_call(
        _stage3_kernel,
        out_shape=jax.ShapeDtypeStruct((n, m, c), jnp.float32),
        grid_spec=pltpu.PrefetchScalarGridSpec(
            num_scalar_prefetch=0,
            grid=(n,),
            in_specs=[
                pl.BlockSpec((1, m, c), lambda i: (i, 0, 0)),
                pl.BlockSpec((2, c), lambda i: (0, 0)),
            ],
            out_specs=pl.BlockSpec((1, m, c), lambda i: (i, 0, 0)),
        ),
        compiler_params=pltpu.CompilerParams(dimension_semantics=("parallel",)),
    )(z2, ss2)


# ----------------------------- host-side glue -----------------------------

def _bn_scale_shift(s, q, m_total, gamma, beta):
    """Fold training-mode BatchNorm (biased batch stats) into per-channel scale/shift."""
    total = jnp.sum(s, axis=(0, 1))
    total_sq = jnp.sum(q, axis=(0, 1))
    mean = total / m_total
    # E[x^2]-E[x]^2 in f32; clamp tiny negative values from cancellation.
    var = jnp.maximum(total_sq / m_total - mean * mean, 0.0)
    scale = gamma * jax.lax.rsqrt(var + BN_EPS)
    shift = beta - mean * scale
    return jnp.stack([scale, shift], axis=0)      # (2, C)


def down_forward(x_nchw, params):
    x = x_nchw.astype(jnp.float32)
    n, cin, h, w = x.shape
    h2, w_half = h // 2, w // 2
    m = h2 * w_half
    cout = params["w1"].shape[-1]

    # Space-to-depth for the 2x2/stride-2 conv: a single tiny XLA transform on the raw
    # input (same byte count as x); it turns the strided conv into one in-kernel matmul.
    xp = (x.reshape(n, cin, h2, 2, w_half, 2)
            .transpose(0, 2, 4, 3, 5, 1)
            .reshape(n, m, 4 * cin))

    wd = params["w_down"].reshape(4 * cin, cin)       # (kh, kw, cin) patch order on rows
    bd = params["b_down"].reshape(1, cin)
    w1r = params["w1"].reshape(9, cin, cout)
    w2r = params["w2"].reshape(9, cout, cout)

    z1, s1, q1 = _stage1(xp, wd, bd, w1r, wsp=w_half)
    ss1 = _bn_scale_shift(s1, q1, n * m, params["g1"], params["beta1"])

    z2, s2, q2 = _stage2(z1, ss1, w2r, wsp=w_half)
    ss2 = _bn_scale_shift(s2, q2, n * m, params["g2"], params["beta2"])

    y = _stage3(z2, ss2)                              # (n, m, cout), p = i*w_half + j
    # Final NHWC-slab -> NCHW permute: one small XLA copy on the reduced output.
    return jnp.transpose(y, (0, 2, 1)).reshape(n, cout, h2, w_half)
    # TODO(synk): Dropout with p > 0 in training mode (random masking) is not modeled;
    # the module's default p=0.0 makes it an identity, which is what is implemented.


# ----------------------------- reference (verification only) -----------------------------

def ref_forward(x_nchw, params):
    x = jnp.transpose(x_nchw, (0, 2, 3, 1)).astype(jnp.float32)

    def conv(x, w, stride, pad):
        return jax.lax.conv_general_dilated(
            x, w, (stride, stride), pad, dimension_numbers=("NHWC", "HWIO", "NHWC"))

    def bn_lrelu(y, g, b):
        mu = jnp.mean(y, axis=(0, 1, 2))
        v = jnp.mean((y - mu) ** 2, axis=(0, 1, 2))
        yn = (y - mu) / jnp.sqrt(v + BN_EPS) * g + b
        return jnp.where(yn > 0, yn, NEG_SLOPE * yn)

    y = conv(x, params["w_down"], 2, "VALID") + params["b_down"]
    y = bn_lrelu(conv(y, params["w1"], 1, "SAME"), params["g1"], params["beta1"])
    y = bn_lrelu(conv(y, params["w2"], 1, "SAME"), params["g2"], params["beta2"])
    return jnp.transpose(y, (0, 3, 1, 2))


# ----------------------------- main -----------------------------

if __name__ == "__main__":
    N, C_IN, C_OUT, H, W = 2, 4, 8, 16, 16

    key = jax.random.PRNGKey(0)
    ks = jax.random.split(key, 8)
    params = {
        # weights stored HWIO (kh, kw, in_c, out_c); equivalent to PyTorch OIHW up to transpose
        "w_down": 0.2 * jax.random.normal(ks[0], (2, 2, C_IN, C_IN), jnp.float32),
        "b_down": 0.1 * jax.random.normal(ks[1], (C_IN,), jnp.float32),
        "w1": 0.2 * jax.random.normal(ks[2], (3, 3, C_IN, C_OUT), jnp.float32),
        "g1": 1.0 + 0.1 * jax.random.normal(ks[3], (C_OUT,), jnp.float32),
        "beta1": 0.1 * jax.random.normal(ks[4], (C_OUT,), jnp.float32),
        "w2": 0.2 * jax.random.normal(ks[5], (3, 3, C_OUT, C_OUT), jnp.float32),
        "g2": 1.0 + 0.1 * jax.random.normal(ks[6], (C_OUT,), jnp.float32),
        "beta2": 0.1 * jax.random.normal(ks[7], (C_OUT,), jnp.float32),
    }

    x = jax.random.normal(jax.random.PRNGKey(1), (N, C_IN, H, W), jnp.float32)

    out = jax.block_until_ready(jax.jit(down_forward)(x, params))
    assert out.shape == (N, C_OUT, H // 2, W // 2), out.shape

    ref = jax.block_until_ready(ref_forward(x, params))
    assert jnp.allclose(out, ref, atol=1e-3, rtol=1e-3), float(jnp.max(jnp.abs(out - ref)))

    print("KERNEL_OK")
</pallas_src>

<mosaic_0001>
module attributes {stable_mosaic.version = 11 : i64} {
  func.func @_stage3_kernel(%arg0: i32, %arg1: memref<1x64x8xf32, #tpu.memory_space<vmem>>, %arg2: memref<2x8xf32, #tpu.memory_space<vmem>>, %arg3: memref<1x64x8xf32, #tpu.memory_space<vmem>>) attributes {dimension_semantics = [#tpu.dimension_semantics<parallel>], iteration_bounds = array<i64: 2>, scalar_prefetch = 0 : i64, scratch_operands = 0 : i64, tpu.core_type = #tpu.core_type<tc>, window_params = [{transform_indices = @transform_0, window_bounds = array<i64: 1, 64, 8>}, {pipeline_mode = #tpu.pipeline_mode<synchronous>, transform_indices = @transform_1, window_bounds = array<i64: 2, 8>}, {transform_indices = @transform_2, window_bounds = array<i64: 1, 64, 8>}]} {
    %c0 = arith.constant 0 : index
    %c0_0 = arith.constant 0 : index
    %c0_1 = arith.constant 0 : index
    %0 = vector.load %arg1[%c0, %c0_0, %c0_1] : memref<1x64x8xf32, #tpu.memory_space<vmem>>, vector<1x64x8xf32>
    %1 = vector.shape_cast %0 : vector<1x64x8xf32> to vector<64x8xf32>
    %c0_2 = arith.constant 0 : index
    %c0_3 = arith.constant 0 : index
    %2 = vector.load %arg2[%c0_2, %c0_3] : memref<2x8xf32, #tpu.memory_space<vmem>>, vector<1x8xf32>
    %3 = vector.broadcast %2 : vector<1x8xf32> to vector<64x8xf32>
    %4 = arith.mulf %1, %3 : vector<64x8xf32>
    %c1 = arith.constant 1 : index
    %c0_4 = arith.constant 0 : index
    %5 = vector.load %arg2[%c1, %c0_4] : memref<2x8xf32, #tpu.memory_space<vmem>>, vector<1x8xf32>
    %6 = vector.broadcast %5 : vector<1x8xf32> to vector<64x8xf32>
    %7 = arith.addf %4, %6 : vector<64x8xf32>
    %cst = arith.constant 0.000000e+00 : f32
    %8 = vector.broadcast %cst : f32 to vector<64x8xf32>
    %9 = arith.cmpf ogt, %7, %8 : vector<64x8xf32>
    %cst_5 = arith.constant 0.00999999977 : f32
    %10 = vector.broadcast %cst_5 : f32 to vector<64x8xf32>
    %11 = arith.mulf %10, %7 : vector<64x8xf32>
    %12 = arith.select %9, %7, %11 : vector<64x8xi1>, vector<64x8xf32>
    %c0_6 = arith.constant 0 : index
    %c0_7 = arith.constant 0 : index
    %c0_8 = arith.constant 0 : index
    %13 = vector.load %arg3[%c0_6, %c0_7, %c0_8] : memref<1x64x8xf32, #tpu.memory_space<vmem>>, vector<1x64x8xf32>
    %14 = vector.shape_cast %13 : vector<1x64x8xf32> to vector<64x8xf32>
    %15 = vector.shape_cast %12 : vector<64x8xf32> to vector<1x64x8xf32>
    tpu.vector_store %arg3[%c0_6, %c0_7, %c0_8], %15 {strides = array<i32>} : memref<1x64x8xf32, #tpu.memory_space<vmem>>, vector<1x64x8xf32>,
    return
  }
  func.func @transform_0(%arg0: i32) -> (i32, i32, i32) {
    %c0_i32 = arith.constant 0 : i32
    %c0_i32_0 = arith.constant 0 : i32
    %c0_i32_1 = arith.constant 0 : i32
    return %arg0, %c0_i32, %c0_i32_0 : i32, i32, i32
  }
  func.func @transform_1(%arg0: i32) -> (i32, i32) {
    %c0_i32 = arith.constant 0 : i32
    %c0_i32_0 = arith.constant 0 : i32
    %c0_i32_1 = arith.constant 0 : i32
    return %c0_i32, %c0_i32_0 : i32, i32
  }
  func.func @transform_2(%arg0: i32) -> (i32, i32, i32) {
    %c0_i32 = arith.constant 0 : i32
    %c0_i32_0 = arith.constant 0 : i32
    %c0_i32_1 = arith.constant 0 : i32
    return %arg0, %c0_i32, %c0_i32_0 : i32, i32, i32
  }
}

module attributes {stable_mosaic.version = 11 : i64} {
  func.func @_stage1_kernel(%arg0: i32, %arg1: memref<1x64x16xf32, #tpu.memory_space<vmem>>, %arg2: memref<16x4xf32, #tpu.memory_space<vmem>>, %arg3: memref<1x4xf32, #tpu.memory_space<vmem>>, %arg4: memref<9x4x8xf32, #tpu.memory_space<vmem>>, %arg5: memref<1x64x8xf32, #tpu.memory_space<vmem>>, %arg6: memref<1x1x8xf32, #tpu.memory_space<vmem>>, %arg7: memref<1x1x8xf32, #tpu.memory_space<vmem>>, %arg8: memref<96x4xf32, #tpu.memory_space<vmem>>) attributes {dimension_semantics = [#tpu.dimension_semantics<parallel>], iteration_bounds = array<i64: 2>, scalar_prefetch = 0 : i64, scratch_operands = 1 : i64, tpu.core_type = #tpu.core_type<tc>, window_params = [{transform_indices = @transform_0, window_bounds = array<i64: 1, 64, 16>}, {pipeline_mode = #tpu.pipeline_mode<synchronous>, transform_indices = @transform_1, window_bounds = array<i64: 16, 4>}, {pipeline_mode = #tpu.pipeline_mode<synchronous>, transform_indices = @transform_2, window_bounds = array<i64: 1, 4>}, {pipeline_mode = #tpu.pipeline_mode<synchronous>, transform_indices = @transform_3, window_bounds = array<i64: 9, 4, 8>}, {transform_indices = @transform_4, window_bounds = array<i64: 1, 64, 8>}, {transform_indices = @transform_5, window_bounds = array<i64: 1, 1, 8>}, {transform_indices = @transform_6, window_bounds = array<i64: 1, 1, 8>}]} {
    %c0 = arith.constant 0 : index
    %c0_0 = arith.constant 0 : index
    %c0_1 = arith.constant 0 : index
    %0 = vector.load %arg1[%c0, %c0_0, %c0_1] : memref<1x64x16xf32, #tpu.memory_space<vmem>>, vector<1x64x16xf32>
    %1 = vector.shape_cast %0 : vector<1x64x16xf32> to vector<64x16xf32>
    %c0_2 = arith.constant 0 : index
    %c0_3 = arith.constant 0 : index
    %2 = vector.load %arg2[%c0_2, %c0_3] : memref<16x4xf32, #tpu.memory_space<vmem>>, vector<16x4xf32>
    %cst = arith.constant dense<0.000000e+00> : vector<64x4xf32>
    %3 = tpu.matmul %1, %2, %cst {dimension_numbers = #tpu.dot_dimension_numbers<[1], [0], [0], [1], [0, 0, 1, 1], [], []>} : vector<64x16xf32>, vector<16x4xf32>, vector<64x4xf32> -> vector<64x4xf32>
    %c0_4 = arith.constant 0 : index
    %c0_5 = arith.constant 0 : index
    %4 = vector.load %arg3[%c0_4, %c0_5] : memref<1x4xf32, #tpu.memory_space<vmem>>, vector<1x4xf32>
    %5 = vector.broadcast %4 : vector<1x4xf32> to vector<64x4xf32>
    %6 = arith.addf %3, %5 : vector<64x4xf32>
    %cst_6 = arith.constant 0.000000e+00 : f32
    %7 = vector.broadcast %cst_6 : f32 to vector<96x4xf32>
    %c0_7 = arith.constant 0 : index
    %c0_8 = arith.constant 0 : index
    %8 = vector.load %arg8[%c0_7, %c0_8] : memref<96x4xf32, #tpu.memory_space<vmem>>, vector<96x4xf32>
    tpu.vector_store %arg8[%c0_7, %c0_8], %7 {strides = array<i32>} : memref<96x4xf32, #tpu.memory_space<vmem>>, vector<96x4xf32>,
    %c16 = arith.constant 16 : index
    %c0_9 = arith.constant 0 : index
    %9 = vector.load %arg8[%c16, %c0_9] : memref<96x4xf32, #tpu.memory_space<vmem>>, vector<64x4xf32>
    tpu.vector_store %arg8[%c16, %c0_9], %6 {strides = array<i32>} : memref<96x4xf32, #tpu.memory_space<vmem>>, vector<64x4xf32>,
    %10 = tpu.iota {dimensions = array<i32: 0>} : vector<64x1xi32>
    %c8_i32 = arith.constant 8 : i32
    %c0_i32 = arith.constant 0 : i32
    %11 = arith.cmpi eq, %c8_i32, %c0_i32 : i32
    %c1_i32 = arith.constant 1 : i32
    %12 = arith.select %11, %c1_i32, %c8_i32 : i32
    %13 = vector.broadcast %12 : i32 to vector<64x1xi32>
    %14 = arith.remsi %10, %13 : vector<64x1xi32>
    %c0_i32_10 = arith.constant 0 : i32
    %15 = vector.broadcast %c0_i32_10 : i32 to vector<64x1xi32>
    %16 = arith.cmpi ne, %14, %15 : vector<64x1xi32>
    %c0_i32_11 = arith.constant 0 : i32
    %17 = vector.broadcast %c0_i32_11 : i32 to vector<64x1xi32>
    %18 = arith.cmpi slt, %14, %17 : vector<64x1xi32>
    %c0_i32_12 = arith.constant 0 : i32
    %19 = arith.cmpi slt, %12, %c0_i32_12 : i32
    %20 = vector.broadcast %19 : i1 to vector<64x1xi1>
    %21 = vector.broadcast %20 : vector<64x1xi1> to vector<64x1xi1>
    %22 = arith.xori %18, %21 : vector<64x1xi1>
    %23 = arith.andi %22, %16 : vector<64x1xi1>
    %24 = vector.broadcast %12 : i32 to vector<64x1xi32>
    %25 = arith.addi %14, %24 : vector<64x1xi32>
    %26 = arith.select %23, %25, %14 : vector<64x1xi1>, vector<64x1xi32>
    %c0_i32_13 = arith.constant 0 : i32
    %27 = vector.broadcast %c0_i32_13 : i32 to vector<64x1xi32>
    %28 = arith.cmpi sgt, %26, %27 : vector<64x1xi32>
    %29 = arith.extui %28 : vector<64x1xi1> to vector<64x1xi32>
    %30 = arith.sitofp %29 : vector<64x1xi32> to vector<64x1xf32>
    %c7_i32 = arith.constant 7 : i32
    %31 = vector.broadcast %c7_i32 : i32 to vector<64x1xi32>
    %32 = arith.cmpi slt, %26, %31 : vector<64x1xi32>
    %33 = arith.extui %32 : vector<64x1xi1> to vector<64x1xi32>
    %34 = arith.sitofp %33 : vector<64x1xi32> to vector<64x1xf32>
    %cst_14 = arith.constant 0.000000e+00 : f32
    %35 = vector.broadcast %cst_14 : f32 to vector<64x8xf32>
    %c7 = arith.constant 7 : index
    %c0_15 = arith.constant 0 : index
    %36 = vector.load %arg8[%c7, %c0_15] : memref<96x4xf32, #tpu.memory_space<vmem>>, vector<64x4xf32>
    %37 = vector.broadcast %30 : vector<64x1xf32> to vector<64x4xf32>
    %38 = arith.mulf %36, %37 : vector<64x4xf32>
    %c0_16 = arith.constant 0 : index
    %c0_17 = arith.constant 0 : index
    %c0_18 = arith.constant 0 : index
    %39 = vector.load %arg4[%c0_16, %c0_17, %c0_18] : memref<9x4x8xf32, #tpu.memory_space<vmem>>, vector<1x4x8xf32>
    %40 = vector.shape_cast %39 : vector<1x4x8xf32> to vector<4x8xf32>
    %cst_19 = arith.constant dense<0.000000e+00> : vector<64x8xf32>
    %41 = tpu.matmul %38, %40, %cst_19 {dimension_numbers = #tpu.dot_dimension_numbers<[1], [0], [0], [1], [0, 0, 1, 1], [], []>} : vector<64x4xf32>, vector<4x8xf32>, vector<64x8xf32> -> vector<64x8xf32>
    %42 = arith.addf %35, %41 : vector<64x8xf32>
    %c8 = arith.constant 8 : index
    %c0_20 = arith.constant 0 : index
    %43 = vector.load %arg8[%c8, %c0_20] : memref<96x4xf32, #tpu.memory_space<vmem>>, vector<64x4xf32>
    %c1 = arith.constant 1 : index
    %c0_21 = arith.constant 0 : index
    %c0_22 = arith.constant 0 : index
    %44 = vector.load %arg4[%c1, %c0_21, %c0_22] : memref<9x4x8xf32, #tpu.memory_space<vmem>>, vector<1x4x8xf32>
    %45 = vector.shape_cast %44 : vector<1x4x8xf32> to vector<4x8xf32>
    %cst_23 = arith.constant dense<0.000000e+00> : vector<64x8xf32>
    %46 = tpu.matmul %43, %45, %cst_23 {dimension_numbers = #tpu.dot_dimension_numbers<[1], [0], [0], [1], [0, 0, 1, 1], [], []>} : vector<64x4xf32>, vector<4x8xf32>, vector<64x8xf32> -> vector<64x8xf32>
    %47 = arith.addf %42, %46 : vector<64x8xf32>
    %c9 = arith.constant 9 : index
    %c0_24 = arith.constant 0 : index
    %48 = vector.load %arg8[%c9, %c0_24] : memref<96x4xf32, #tpu.memory_space<vmem>>, vector<64x4xf32>
    %49 = vector.broadcast %34 : vector<64x1xf32> to vector<64x4xf32>
    %50 = arith.mulf %48, %49 : vector<64x4xf32>
    %c2 = arith.constant 2 : index
    %c0_25 = arith.constant 0 : index
    %c0_26 = arith.constant 0 : index
    %51 = vector.load %arg4[%c2, %c0_25, %c0_26] : memref<9x4x8xf32, #tpu.memory_space<vmem>>, vector<1x4x8xf32>
    %52 = vector.shape_cast %51 : vector<1x4x8xf32> to vector<4x8xf32>
    %cst_27 = arith.constant dense<0.000000e+00> : vector<64x8xf32>
    %53 = tpu.matmul %50, %52, %cst_27 {dimension_numbers = #tpu.dot_dimension_numbers<[1], [0], [0], [1], [0, 0, 1, 1], [], []>} : vector<64x4xf32>, vector<4x8xf32>, vector<64x8xf32> -> vector<64x8xf32>
    %54 = arith.addf %47, %53 : vector<64x8xf32>
    %c15 = arith.constant 15 : index
    %c0_28 = arith.constant 0 : index
    %55 = vector.load %arg8[%c15, %c0_28] : memref<96x4xf32, #tpu.memory_space<vmem>>, vector<64x4xf32>
    %56 = vector.broadcast %30 : vector<64x1xf32> to vector<64x4xf32>
    %57 = arith.mulf %55, %56 : vector<64x4xf32>
    %c3 = arith.constant 3 : index
    %c0_29 = arith.constant 0 : index
    %c0_30 = arith.constant 0 : index
    %58 = vector.load %arg4[%c3, %c0_29, %c0_30] : memref<9x4x8xf32, #tpu.memory_space<vmem>>, vector<1x4x8xf32>
    %59 = vector.shape_cast %58 : vector<1x4x8xf32> to vector<4x8xf32>
    %cst_31 = arith.constant dense<0.000000e+00> : vector<64x8xf32>
    %60 = tpu.matmul %57, %59, %cst_31 {dimension_numbers = #tpu.dot_dimension_numbers<[1], [0], [0], [1], [0, 0, 1, 1], [], []>} : vector<64x4xf32>, vector<4x8xf32>, vector<64x8xf32> -> vector<64x8xf32>
    %61 = arith.addf %54, %60 : vector<64x8xf32>
    %c16_32 = arith.constant 16 : index
    %c0_33 = arith.constant 0 : index
    %62 = vector.load %arg8[%c16_32, %c0_33] : memref<96x4xf32, #tpu.memory_space<vmem>>, vector<64x4xf32>
    %c4 = arith.constant 4 : index
    %c0_34 = arith.constant 0 : index
    %c0_35 = arith.constant 0 : index
    %63 = vector.load %arg4[%c4, %c0_34, %c0_35] : memref<9x4x8xf32, #tpu.memory_space<vmem>>, vector<1x4x8xf32>
    %64 = vector.shape_cast %63 : vector<1x4x8xf32> to vector<4x8xf32>
    %cst_36 = arith.constant dense<0.000000e+00> : vector<64x8xf32>
    %65 = tpu.matmul %62, %64, %cst_36 {dimension_numbers = #tpu.dot_dimension_numbers<[1], [0], [0], [1], [0, 0, 1, 1], [], []>} : vector<64x4xf32>, vector<4x8xf32>, vector<64x8xf32> -> vector<64x8xf32>
    %66 = arith.addf %61, %65 : vector<64x8xf32>
    %c17 = arith.constant 17 : index
    %c0_37 = arith.constant 0 : index
    %67 = vector.load %arg8[%c17, %c0_37] : memref<96x4xf32, #tpu.memory_space<vmem>>, vector<64x4xf32>
    %68 = vector.broadcast %34 : vector<64x1xf32> to vector<64x4xf32>
    %69 = arith.mulf %67, %68 : vector<64x4xf32>
    %c5 = arith.constant 5 : index
    %c0_38 = arith.constant 0 : index
    %c0_39 = arith.constant 0 : index
    %70 = vector.load %arg4[%c5, %c0_38, %c0_39] : memref<9x4x8xf32, #tpu.memory_space<vmem>>, vector<1x4x8xf32>
    %71 = vector.shape_cast %70 : vector<1x4x8xf32> to vector<4x8xf32>
    %cst_40 = arith.constant dense<0.000000e+00> : vector<64x8xf32>
    %72 = tpu.matmul %69, %71, %cst_40 {dimension_numbers = #tpu.dot_dimension_numbers<[1], [0], [0], [1], [0, 0, 1, 1], [], []>} : vector<64x4xf32>, vector<4x8xf32>, vector<64x8xf32> -> vector<64x8xf32>
    %73 = arith.addf %66, %72 : vector<64x8xf32>
    %c23 = arith.constant 23 : index
    %c0_41 = arith.constant 0 : index
    %74 = vector.load %arg8[%c23, %c0_41] : memref<96x4xf32, #tpu.memory_space<vmem>>, vector<64x4xf32>
    %75 = vector.broadcast %30 : vector<64x1xf32> to vector<64x4xf32>
    %76 = arith.mulf %74, %75 : vector<64x4xf32>
    %c6 = arith.constant 6 : index
    %c0_42 = arith.constant 0 : index
    %c0_43 = arith.constant 0 : index
    %77 = vector.load %arg4[%c6, %c0_42, %c0_43] : memref<9x4x8xf32, #tpu.memory_space<vmem>>, vector<1x4x8xf32>
    %78 = vector.shape_cast %77 : vector<1x4x8xf32> to vector<4x8xf32>
    %cst_44 = arith.constant dense<0.000000e+00> : vector<64x8xf32>
    %79 = tpu.matmul %76, %78, %cst_44 {dimension_numbers = #tpu.dot_dimension_numbers<[1], [0], [0], [1], [0, 0, 1, 1], [], []>} : vector<64x4xf32>, vector<4x8xf32>, vector<64x8xf32> -> vector<64x8xf32>
    %80 = arith.addf %73, %79 : vector<64x8xf32>
    %c24 = arith.constant 24 : index
    %c0_45 = arith.constant 0 : index
    %81 = vector.load %arg8[%c24, %c0_45] : memref<96x4xf32, #tpu.memory_space<vmem>>, vector<64x4xf32>
    %c7_46 = arith.constant 7 : index
    %c0_47 = arith.constant 0 : index
    %c0_48 = arith.constant 0 : index
    %82 = vector.load %arg4[%c7_46, %c0_47, %c0_48] : memref<9x4x8xf32, #tpu.memory_space<vmem>>, vector<1x4x8xf32>
    %83 = vector.shape_cast %82 : vector<1x4x8xf32> to vector<4x8xf32>
    %cst_49 = arith.constant dense<0.000000e+00> : vector<64x8xf32>
    %84 = tpu.matmul %81, %83, %cst_49 {dimension_numbers = #tpu.dot_dimension_numbers<[1], [0], [0], [1], [0, 0, 1, 1], [], []>} : vector<64x4xf32>, vector<4x8xf32>, vector<64x8xf32> -> vector<64x8xf32>
    %85 = arith.addf %80, %84 : vector<64x8xf32>
    %c25 = arith.constant 25 : index
    %c0_50 = arith.constant 0 : index
    %86 = vector.load %arg8[%c25, %c0_50] : memref<96x4xf32, #tpu.memory_space<vmem>>, vector<64x4xf32>
    %87 = vector.broadcast %34 : vector<64x1xf32> to vector<64x4xf32>
    %88 = arith.mulf %86, %87 : vector<64x4xf32>
    %c8_51 = arith.constant 8 : index
    %c0_52 = arith.constant 0 : index
    %c0_53 = arith.constant 0 : index
    %89 = vector.load %arg4[%c8_51, %c0_52, %c0_53] : memref<9x4x8xf32, #tpu.memory_space<vmem>>, vector<1x4x8xf32>
    %90 = vector.shape_cast %89 : vector<1x4x8xf32> to vector<4x8xf32>
    %cst_54 = arith.constant dense<0.000000e+00> : vector<64x8xf32>
    %91 = tpu.matmul %88, %90, %cst_54 {dimension_numbers = #tpu.dot_dimension_numbers<[1], [0], [0], [1], [0, 0, 1, 1], [], []>} : vector<64x4xf32>, vector<4x8xf32>, vector<64x8xf32> -> vector<64x8xf32>
    %92 = arith.addf %85, %91 : vector<64x8xf32>
    %c0_55 = arith.constant 0 : index
    %c0_56 = arith.constant 0 : index
    %c0_57 = arith.constant 0 : index
    %93 = vector.load %arg5[%c0_55, %c0_56, %c0_57] : memref<1x64x8xf32, #tpu.memory_space<vmem>>, vector<1x64x8xf32>
    %94 = vector.shape_cast %93 : vector<1x64x8xf32> to vector<64x8xf32>
    %95 = vector.shape_cast %92 : vector<64x8xf32> to vector<1x64x8xf32>
    tpu.vector_store %arg5[%c0_55, %c0_56, %c0_57], %95 {strides = array<i32>} : memref<1x64x8xf32, #tpu.memory_space<vmem>>, vector<1x64x8xf32>,
    %cst_58 = arith.constant dense<0.000000e+00> : vector<8xf32>
    %96 = vector.multi_reduction <add>, %92, %cst_58 [0] : vector<64x8xf32> to vector<8xf32>
    %97 = vector.shape_cast %96 : vector<8xf32> to vector<1x8xf32>
    %98 = vector.shape_cast %97 : vector<1x8xf32> to vector<1x1x8xf32>
    %c0_59 = arith.constant 0 : index
    %c0_60 = arith.constant 0 : index
    %c0_61 = arith.constant 0 : index
    %99 = vector.load %arg6[%c0_59, %c0_60, %c0_61] : memref<1x1x8xf32, #tpu.memory_space<vmem>>, vector<1x1x8xf32>
    tpu.vector_store %arg6[%c0_59, %c0_60, %c0_61], %98 {strides = array<i32>} : memref<1x1x8xf32, #tpu.memory_space<vmem>>, vector<1x1x8xf32>,
    %100 = arith.mulf %92, %92 : vector<64x8xf32>
    %cst_62 = arith.constant dense<0.000000e+00> : vector<8xf32>
    %101 = vector.multi_reduction <add>, %100, %cst_62 [0] : vector<64x8xf32> to vector<8xf32>
    %102 = vector.shape_cast %101 : vector<8xf32> to vector<1x8xf32>
    %103 = vector.shape_cast %102 : vector<1x8xf32> to vector<1x1x8xf32>
    %c0_63 = arith.constant 0 : index
    %c0_64 = arith.constant 0 : index
    %c0_65 = arith.constant 0 : index
    %104 = vector.load %arg7[%c0_63, %c0_64, %c0_65] : memref<1x1x8xf32, #tpu.memory_space<vmem>>, vector<1x1x8xf32>
    tpu.vector_store %arg7[%c0_63, %c0_64, %c0_65], %103 {strides = array<i32>} : memref<1x1x8xf32, #tpu.memory_space<vmem>>, vector<1x1x8xf32>,
    return
  }
  func.func @transform_0(%arg0: i32) -> (i32, i32, i32) {
    %c0_i32 = arith.constant 0 : i32
    %c0_i32_0 = arith.constant 0 : i32
    %c0_i32_1 = arith.constant 0 : i32
    return %arg0, %c0_i32, %c0_i32_0 : i32, i32, i32
  }
  func.func @transform_1(%arg0: i32) -> (i32, i32) {
    %c0_i32 = arith.constant 0 : i32
    %c0_i32_0 = arith.constant 0 : i32
    %c0_i32_1 = arith.constant 0 : i32
    return %c0_i32, %c0_i32_0 : i32, i32
  }
  func.func @transform_2(%arg0: i32) -> (i32, i32) {
    %c0_i32 = arith.constant 0 : i32
    %c0_i32_0 = arith.constant 0 : i32
    %c0_i32_1 = arith.constant 0 : i32
    return %c0_i32, %c0_i32_0 : i32, i32
  }
  func.func @transform_3(%arg0: i32) -> (i32, i32, i32) {
    %c0_i32 = arith.constant 0 : i32
    %c0_i32_0 = arith.constant 0 : i32
    %c0_i32_1 = arith.constant 0 : i32
    %c0_i32_2 = arith.constant 0 : i32
    return %c0_i32, %c0_i32_0, %c0_i32_1 : i32, i32, i32
  }
  func.func @transform_4(%arg0: i32) -> (i32, i32, i32) {
    %c0_i32 = arith.constant 0 : i32
    %c0_i32_0 = arith.constant 0 : i32
    %c0_i32_1 = arith.constant 0 : i32
    return %arg0, %c0_i32, %c0_i32_0 : i32, i32, i32
  }
  func.func @transform_5(%arg0: i32) -> (i32, i32, i32) {
    %c0_i32 = arith.constant 0 : i32
    %c0_i32_0 = arith.constant 0 : i32
    %c0_i32_1 = arith.constant 0 : i32
    return %arg0, %c0_i32, %c0_i32_0 : i32, i32, i32
  }
  func.func @transform_6(%arg0: i32) -> (i32, i32, i32) {
    %c0_i32 = arith.constant 0 : i32
    %c0_i32_0 = arith.constant 0 : i32
    %c0_i32_1 = arith.constant 0 : i32
    return %arg0, %c0_i32, %c0_i32_0 : i32, i32, i32
  }
}

module attributes {stable_mosaic.version = 11 : i64} {
  func.func @_stage2_kernel(%arg0: i32, %arg1: memref<1x64x8xf32, #tpu.memory_space<vmem>>, %arg2: memref<2x8xf32, #tpu.memory_space<vmem>>, %arg3: memref<9x8x8xf32, #tpu.memory_space<vmem>>, %arg4: memref<1x64x8xf32, #tpu.memory_space<vmem>>, %arg5: memref<1x1x8xf32, #tpu.memory_space<vmem>>, %arg6: memref<1x1x8xf32, #tpu.memory_space<vmem>>, %arg7: memref<96x8xf32, #tpu.memory_space<vmem>>) attributes {dimension_semantics = [#tpu.dimension_semantics<parallel>], iteration_bounds = array<i64: 2>, scalar_prefetch = 0 : i64, scratch_operands = 1 : i64, tpu.core_type = #tpu.core_type<tc>, window_params = [{transform_indices = @transform_0, window_bounds = array<i64: 1, 64, 8>}, {pipeline_mode = #tpu.pipeline_mode<synchronous>, transform_indices = @transform_1, window_bounds = array<i64: 2, 8>}, {pipeline_mode = #tpu.pipeline_mode<synchronous>, transform_indices = @transform_2, window_bounds = array<i64: 9, 8, 8>}, {transform_indices = @transform_3, window_bounds = array<i64: 1, 64, 8>}, {transform_indices = @transform_4, window_bounds = array<i64: 1, 1, 8>}, {transform_indices = @transform_5, window_bounds = array<i64: 1, 1, 8>}]} {
    %c0 = arith.constant 0 : index
    %c0_0 = arith.constant 0 : index
    %c0_1 = arith.constant 0 : index
    %0 = vector.load %arg1[%c0, %c0_0, %c0_1] : memref<1x64x8xf32, #tpu.memory_space<vmem>>, vector<1x64x8xf32>
    %1 = vector.shape_cast %0 : vector<1x64x8xf32> to vector<64x8xf32>
    %c0_2 = arith.constant 0 : index
    %c0_3 = arith.constant 0 : index
    %2 = vector.load %arg2[%c0_2, %c0_3] : memref<2x8xf32, #tpu.memory_space<vmem>>, vector<1x8xf32>
    %3 = vector.broadcast %2 : vector<1x8xf32> to vector<64x8xf32>
    %4 = arith.mulf %1, %3 : vector<64x8xf32>
    %c1 = arith.constant 1 : index
    %c0_4 = arith.constant 0 : index
    %5 = vector.load %arg2[%c1, %c0_4] : memref<2x8xf32, #tpu.memory_space<vmem>>, vector<1x8xf32>
    %6 = vector.broadcast %5 : vector<1x8xf32> to vector<64x8xf32>
    %7 = arith.addf %4, %6 : vector<64x8xf32>
    %cst = arith.constant 0.000000e+00 : f32
    %8 = vector.broadcast %cst : f32 to vector<64x8xf32>
    %9 = arith.cmpf ogt, %7, %8 : vector<64x8xf32>
    %cst_5 = arith.constant 0.00999999977 : f32
    %10 = vector.broadcast %cst_5 : f32 to vector<64x8xf32>
    %11 = arith.mulf %10, %7 : vector<64x8xf32>
    %12 = arith.select %9, %7, %11 : vector<64x8xi1>, vector<64x8xf32>
    %cst_6 = arith.constant 0.000000e+00 : f32
    %13 = vector.broadcast %cst_6 : f32 to vector<96x8xf32>
    %c0_7 = arith.constant 0 : index
    %c0_8 = arith.constant 0 : index
    %14 = vector.load %arg7[%c0_7, %c0_8] : memref<96x8xf32, #tpu.memory_space<vmem>>, vector<96x8xf32>
    tpu.vector_store %arg7[%c0_7, %c0_8], %13 {strides = array<i32>} : memref<96x8xf32, #tpu.memory_space<vmem>>, vector<96x8xf32>,
    %c16 = arith.constant 16 : index
    %c0_9 = arith.constant 0 : index
    %15 = vector.load %arg7[%c16, %c0_9] : memref<96x8xf32, #tpu.memory_space<vmem>>, vector<64x8xf32>
    tpu.vector_store %arg7[%c16, %c0_9], %12 {strides = array<i32>} : memref<96x8xf32, #tpu.memory_space<vmem>>, vector<64x8xf32>,
    %16 = tpu.iota {dimensions = array<i32: 0>} : vector<64x1xi32>
    %c8_i32 = arith.constant 8 : i32
    %c0_i32 = arith.constant 0 : i32
    %17 = arith.cmpi eq, %c8_i32, %c0_i32 : i32
    %c1_i32 = arith.constant 1 : i32
    %18 = arith.select %17, %c1_i32, %c8_i32 : i32
    %19 = vector.broadcast %18 : i32 to vector<64x1xi32>
    %20 = arith.remsi %16, %19 : vector<64x1xi32>
    %c0_i32_10 = arith.constant 0 : i32
    %21 = vector.broadcast %c0_i32_10 : i32 to vector<64x1xi32>
    %22 = arith.cmpi ne, %20, %21 : vector<64x1xi32>
    %c0_i32_11 = arith.constant 0 : i32
    %23 = vector.broadcast %c0_i32_11 : i32 to vector<64x1xi32>
    %24 = arith.cmpi slt, %20, %23 : vector<64x1xi32>
    %c0_i32_12 = arith.constant 0 : i32
    %25 = arith.cmpi slt, %18, %c0_i32_12 : i32
    %26 = vector.broadcast %25 : i1 to vector<64x1xi1>
    %27 = vector.broadcast %26 : vector<64x1xi1> to vector<64x1xi1>
    %28 = arith.xori %24, %27 : vector<64x1xi1>
    %29 = arith.andi %28, %22 : vector<64x1xi1>
    %30 = vector.broadcast %18 : i32 to vector<64x1xi32>
    %31 = arith.addi %20, %30 : vector<64x1xi32>
    %32 = arith.select %29, %31, %20 : vector<64x1xi1>, vector<64x1xi32>
    %c0_i32_13 = arith.constant 0 : i32
    %33 = vector.broadcast %c0_i32_13 : i32 to vector<64x1xi32>
    %34 = arith.cmpi sgt, %32, %33 : vector<64x1xi32>
    %35 = arith.extui %34 : vector<64x1xi1> to vector<64x1xi32>
    %36 = arith.sitofp %35 : vector<64x1xi32> to vector<64x1xf32>
    %c7_i32 = arith.constant 7 : i32
    %37 = vector.broadcast %c7_i32 : i32 to vector<64x1xi32>
    %38 = arith.cmpi slt, %32, %37 : vector<64x1xi32>
    %39 = arith.extui %38 : vector<64x1xi1> to vector<64x1xi32>
    %40 = arith.sitofp %39 : vector<64x1xi32> to vector<64x1xf32>
    %cst_14 = arith.constant 0.000000e+00 : f32
    %41 = vector.broadcast %cst_14 : f32 to vector<64x8xf32>
    %c7 = arith.constant 7 : index
    %c0_15 = arith.constant 0 : index
    %42 = vector.load %arg7[%c7, %c0_15] : memref<96x8xf32, #tpu.memory_space<vmem>>, vector<64x8xf32>
    %43 = vector.broadcast %36 : vector<64x1xf32> to vector<64x8xf32>
    %44 = arith.mulf %42, %43 : vector<64x8xf32>
    %c0_16 = arith.constant 0 : index
    %c0_17 = arith.constant 0 : index
    %c0_18 = arith.constant 0 : index
    %45 = vector.load %arg3[%c0_16, %c0_17, %c0_18] : memref<9x8x8xf32, #tpu.memory_space<vmem>>, vector<1x8x8xf32>
    %46 = vector.shape_cast %45 : vector<1x8x8xf32> to vector<8x8xf32>
    %cst_19 = arith.constant dense<0.000000e+00> : vector<64x8xf32>
    %47 = tpu.matmul %44, %46, %cst_19 {dimension_numbers = #tpu.dot_dimension_numbers<[1], [0], [0], [1], [0, 0, 1, 1], [], []>} : vector<64x8xf32>, vector<8x8xf32>, vector<64x8xf32> -> vector<64x8xf32>
    %48 = arith.addf %41, %47 : vector<64x8xf32>
    %c8 = arith.constant 8 : index
    %c0_20 = arith.constant 0 : index
    %49 = vector.load %arg7[%c8, %c0_20] : memref<96x8xf32, #tpu.memory_space<vmem>>, vector<64x8xf32>
    %c1_21 = arith.constant 1 : index
    %c0_22 = arith.constant 0 : index
    %c0_23 = arith.constant 0 : index
    %50 = vector.load %arg3[%c1_21, %c0_22, %c0_23] : memref<9x8x8xf32, #tpu.memory_space<vmem>>, vector<1x8x8xf32>
    %51 = vector.shape_cast %50 : vector<1x8x8xf32> to vector<8x8xf32>
    %cst_24 = arith.constant dense<0.000000e+00> : vector<64x8xf32>
    %52 = tpu.matmul %49, %51, %cst_24 {dimension_numbers = #tpu.dot_dimension_numbers<[1], [0], [0], [1], [0, 0, 1, 1], [], []>} : vector<64x8xf32>, vector<8x8xf32>, vector<64x8xf32> -> vector<64x8xf32>
    %53 = arith.addf %48, %52 : vector<64x8xf32>
    %c9 = arith.constant 9 : index
    %c0_25 = arith.constant 0 : index
    %54 = vector.load %arg7[%c9, %c0_25] : memref<96x8xf32, #tpu.memory_space<vmem>>, vector<64x8xf32>
    %55 = vector.broadcast %40 : vector<64x1xf32> to vector<64x8xf32>
    %56 = arith.mulf %54, %55 : vector<64x8xf32>
    %c2 = arith.constant 2 : index
    %c0_26 = arith.constant 0 : index
    %c0_27 = arith.constant 0 : index
    %57 = vector.load %arg3[%c2, %c0_26, %c0_27] : memref<9x8x8xf32, #tpu.memory_space<vmem>>, vector<1x8x8xf32>
    %58 = vector.shape_cast %57 : vector<1x8x8xf32> to vector<8x8xf32>
    %cst_28 = arith.constant dense<0.000000e+00> : vector<64x8xf32>
    %59 = tpu.matmul %56, %58, %cst_28 {dimension_numbers = #tpu.dot_dimension_numbers<[1], [0], [0], [1], [0, 0, 1, 1], [], []>} : vector<64x8xf32>, vector<8x8xf32>, vector<64x8xf32> -> vector<64x8xf32>
    %60 = arith.addf %53, %59 : vector<64x8xf32>
    %c15 = arith.constant 15 : index
    %c0_29 = arith.constant 0 : index
    %61 = vector.load %arg7[%c15, %c0_29] : memref<96x8xf32, #tpu.memory_space<vmem>>, vector<64x8xf32>
    %62 = vector.broadcast %36 : vector<64x1xf32> to vector<64x8xf32>
    %63 = arith.mulf %61, %62 : vector<64x8xf32>
    %c3 = arith.constant 3 : index
    %c0_30 = arith.constant 0 : index
    %c0_31 = arith.constant 0 : index
    %64 = vector.load %arg3[%c3, %c0_30, %c0_31] : memref<9x8x8xf32, #tpu.memory_space<vmem>>, vector<1x8x8xf32>
    %65 = vector.shape_cast %64 : vector<1x8x8xf32> to vector<8x8xf32>
    %cst_32 = arith.constant dense<0.000000e+00> : vector<64x8xf32>
    %66 = tpu.matmul %63, %65, %cst_32 {dimension_numbers = #tpu.dot_dimension_numbers<[1], [0], [0], [1], [0, 0, 1, 1], [], []>} : vector<64x8xf32>, vector<8x8xf32>, vector<64x8xf32> -> vector<64x8xf32>
    %67 = arith.addf %60, %66 : vector<64x8xf32>
    %c16_33 = arith.constant 16 : index
    %c0_34 = arith.constant 0 : index
    %68 = vector.load %arg7[%c16_33, %c0_34] : memref<96x8xf32, #tpu.memory_space<vmem>>, vector<64x8xf32>
    %c4 = arith.constant 4 : index
    %c0_35 = arith.constant 0 : index
    %c0_36 = arith.constant 0 : index
    %69 = vector.load %arg3[%c4, %c0_35, %c0_36] : memref<9x8x8xf32, #tpu.memory_space<vmem>>, vector<1x8x8xf32>
    %70 = vector.shape_cast %69 : vector<1x8x8xf32> to vector<8x8xf32>
    %cst_37 = arith.constant dense<0.000000e+00> : vector<64x8xf32>
    %71 = tpu.matmul %68, %70, %cst_37 {dimension_numbers = #tpu.dot_dimension_numbers<[1], [0], [0], [1], [0, 0, 1, 1], [], []>} : vector<64x8xf32>, vector<8x8xf32>, vector<64x8xf32> -> vector<64x8xf32>
    %72 = arith.addf %67, %71 : vector<64x8xf32>
    %c17 = arith.constant 17 : index
    %c0_38 = arith.constant 0 : index
    %73 = vector.load %arg7[%c17, %c0_38] : memref<96x8xf32, #tpu.memory_space<vmem>>, vector<64x8xf32>
    %74 = vector.broadcast %40 : vector<64x1xf32> to vector<64x8xf32>
    %75 = arith.mulf %73, %74 : vector<64x8xf32>
    %c5 = arith.constant 5 : index
    %c0_39 = arith.constant 0 : index
    %c0_40 = arith.constant 0 : index
    %76 = vector.load %arg3[%c5, %c0_39, %c0_40] : memref<9x8x8xf32, #tpu.memory_space<vmem>>, vector<1x8x8xf32>
    %77 = vector.shape_cast %76 : vector<1x8x8xf32> to vector<8x8xf32>
    %cst_41 = arith.constant dense<0.000000e+00> : vector<64x8xf32>
    %78 = tpu.matmul %75, %77, %cst_41 {dimension_numbers = #tpu.dot_dimension_numbers<[1], [0], [0], [1], [0, 0, 1, 1], [], []>} : vector<64x8xf32>, vector<8x8xf32>, vector<64x8xf32> -> vector<64x8xf32>
    %79 = arith.addf %72, %78 : vector<64x8xf32>
    %c23 = arith.constant 23 : index
    %c0_42 = arith.constant 0 : index
    %80 = vector.load %arg7[%c23, %c0_42] : memref<96x8xf32, #tpu.memory_space<vmem>>, vector<64x8xf32>
    %81 = vector.broadcast %36 : vector<64x1xf32> to vector<64x8xf32>
    %82 = arith.mulf %80, %81 : vector<64x8xf32>
    %c6 = arith.constant 6 : index
    %c0_43 = arith.constant 0 : index
    %c0_44 = arith.constant 0 : index
    %83 = vector.load %arg3[%c6, %c0_43, %c0_44] : memref<9x8x8xf32, #tpu.memory_space<vmem>>, vector<1x8x8xf32>
    %84 = vector.shape_cast %83 : vector<1x8x8xf32> to vector<8x8xf32>
    %cst_45 = arith.constant dense<0.000000e+00> : vector<64x8xf32>
    %85 = tpu.matmul %82, %84, %cst_45 {dimension_numbers = #tpu.dot_dimension_numbers<[1], [0], [0], [1], [0, 0, 1, 1], [], []>} : vector<64x8xf32>, vector<8x8xf32>, vector<64x8xf32> -> vector<64x8xf32>
    %86 = arith.addf %79, %85 : vector<64x8xf32>
    %c24 = arith.constant 24 : index
    %c0_46 = arith.constant 0 : index
    %87 = vector.load %arg7[%c24, %c0_46] : memref<96x8xf32, #tpu.memory_space<vmem>>, vector<64x8xf32>
    %c7_47 = arith.constant 7 : index
    %c0_48 = arith.constant 0 : index
    %c0_49 = arith.constant 0 : index
    %88 = vector.load %arg3[%c7_47, %c0_48, %c0_49] : memref<9x8x8xf32, #tpu.memory_space<vmem>>, vector<1x8x8xf32>
    %89 = vector.shape_cast %88 : vector<1x8x8xf32> to vector<8x8xf32>
    %cst_50 = arith.constant dense<0.000000e+00> : vector<64x8xf32>
    %90 = tpu.matmul %87, %89, %cst_50 {dimension_numbers = #tpu.dot_dimension_numbers<[1], [0], [0], [1], [0, 0, 1, 1], [], []>} : vector<64x8xf32>, vector<8x8xf32>, vector<64x8xf32> -> vector<64x8xf32>
    %91 = arith.addf %86, %90 : vector<64x8xf32>
    %c25 = arith.constant 25 : index
    %c0_51 = arith.constant 0 : index
    %92 = vector.load %arg7[%c25, %c0_51] : memref<96x8xf32, #tpu.memory_space<vmem>>, vector<64x8xf32>
    %93 = vector.broadcast %40 : vector<64x1xf32> to vector<64x8xf32>
    %94 = arith.mulf %92, %93 : vector<64x8xf32>
    %c8_52 = arith.constant 8 : index
    %c0_53 = arith.constant 0 : index
    %c0_54 = arith.constant 0 : index
    %95 = vector.load %arg3[%c8_52, %c0_53, %c0_54] : memref<9x8x8xf32, #tpu.memory_space<vmem>>, vector<1x8x8xf32>
    %96 = vector.shape_cast %95 : vector<1x8x8xf32> to vector<8x8xf32>
    %cst_55 = arith.constant dense<0.000000e+00> : vector<64x8xf32>
    %97 = tpu.matmul %94, %96, %cst_55 {dimension_numbers = #tpu.dot_dimension_numbers<[1], [0], [0], [1], [0, 0, 1, 1], [], []>} : vector<64x8xf32>, vector<8x8xf32>, vector<64x8xf32> -> vector<64x8xf32>
    %98 = arith.addf %91, %97 : vector<64x8xf32>
    %c0_56 = arith.constant 0 : index
    %c0_57 = arith.constant 0 : index
    %c0_58 = arith.constant 0 : index
    %99 = vector.load %arg4[%c0_56, %c0_57, %c0_58] : memref<1x64x8xf32, #tpu.memory_space<vmem>>, vector<1x64x8xf32>
    %100 = vector.shape_cast %99 : vector<1x64x8xf32> to vector<64x8xf32>
    %101 = vector.shape_cast %98 : vector<64x8xf32> to vector<1x64x8xf32>
    tpu.vector_store %arg4[%c0_56, %c0_57, %c0_58], %101 {strides = array<i32>} : memref<1x64x8xf32, #tpu.memory_space<vmem>>, vector<1x64x8xf32>,
    %cst_59 = arith.constant dense<0.000000e+00> : vector<8xf32>
    %102 = vector.multi_reduction <add>, %98, %cst_59 [0] : vector<64x8xf32> to vector<8xf32>
    %103 = vector.shape_cast %102 : vector<8xf32> to vector<1x8xf32>
    %104 = vector.shape_cast %103 : vector<1x8xf32> to vector<1x1x8xf32>
    %c0_60 = arith.constant 0 : index
    %c0_61 = arith.constant 0 : index
    %c0_62 = arith.constant 0 : index
    %105 = vector.load %arg5[%c0_60, %c0_61, %c0_62] : memref<1x1x8xf32, #tpu.memory_space<vmem>>, vector<1x1x8xf32>
    tpu.vector_store %arg5[%c0_60, %c0_61, %c0_62], %104 {strides = array<i32>} : memref<1x1x8xf32, #tpu.memory_space<vmem>>, vector<1x1x8xf32>,
    %106 = arith.mulf %98, %98 : vector<64x8xf32>
    %cst_63 = arith.constant dense<0.000000e+00> : vector<8xf32>
    %107 = vector.multi_reduction <add>, %106, %cst_63 [0] : vector<64x8xf32> to vector<8xf32>
    %108 = vector.shape_cast %107 : vector<8xf32> to vector<1x8xf32>
    %109 = vector.shape_cast %108 : vector<1x8xf32> to vector<1x1x8xf32>
    %c0_64 = arith.constant 0 : index
    %c0_65 = arith.constant 0 : index
    %c0_66 = arith.constant 0 : index
    %110 = vector.load %arg6[%c0_64, %c0_65, %c0_66] : memref<1x1x8xf32, #tpu.memory_space<vmem>>, vector<1x1x8xf32>
    tpu.vector_store %arg6[%c0_64, %c0_65, %c0_66], %109 {strides = array<i32>} : memref<1x1x8xf32, #tpu.memory_space<vmem>>, vector<1x1x8xf32>,
    return
  }
  func.func @transform_0(%arg0: i32) -> (i32, i32, i32) {
    %c0_i32 = arith.constant 0 : i32
    %c0_i32_0 = arith.constant 0 : i32
    %c0_i32_1 = arith.constant 0 : i32
    return %arg0, %c0_i32, %c0_i32_0 : i32, i32, i32
  }
  func.func @transform_1(%arg0: i32) -> (i32, i32) {
    %c0_i32 = arith.constant 0 : i32
    %c0_i32_0 = arith.constant 0 : i32
    %c0_i32_1 = arith.constant 0 : i32
    return %c0_i32, %c0_i32_0 : i32, i32
  }
  func.func @transform_2(%arg0: i32) -> (i32, i32, i32) {
    %c0_i32 = arith.constant 0 : i32
    %c0_i32_0 = arith.constant 0 : i32
    %c0_i32_1 = arith.constant 0 : i32
    %c0_i32_2 = arith.constant 0 : i32
    return %c0_i32, %c0_i32_0, %c0_i32_1 : i32, i32, i32
  }
  func.func @transform_3(%arg0: i32) -> (i32, i32, i32) {
    %c0_i32 = arith.constant 0 : i32
    %c0_i32_0 = arith.constant 0 : i32
    %c0_i32_1 = arith.constant 0 : i32
    return %arg0, %c0_i32, %c0_i32_0 : i32, i32, i32
  }
  func.func @transform_4(%arg0: i32) -> (i32, i32, i32) {
    %c0_i32 = arith.constant 0 : i32
    %c0_i32_0 = arith.constant 0 : i32
    %c0_i32_1 = arith.constant 0 : i32
    return %arg0, %c0_i32, %c0_i32_0 : i32, i32, i32
  }
  func.func @transform_5(%arg0: i32) -> (i32, i32, i32) {
    %c0_i32 = arith.constant 0 : i32
    %c0_i32_0 = arith.constant 0 : i32
    %c0_i32_1 = arith.constant 0 : i32
    return %arg0, %c0_i32, %c0_i32_0 : i32, i32, i32
  }
}

</mosaic_0001>

<llo_original>
// kernel: down_forward.5
$region0: #{down_forward.5}
  #allocation0 [shape = 'u32[]', space=smem, size = 0x4, offset = 0x4, fixed_abs, tag = 'smem constant byte address 0x4 - core index']
  #allocation1 [shape = 'u32[144,128]{1,0:T(1,128)}', space=vmem, size = 0x12000, scoped, tag = 'internal scratch']
  %s0 = inlined_call_operand.vmem [shape: f32[2,64,8], index: 0, kind: input, shape index: {}]
  %s1 = inlined_call_operand.vmem [shape: f32[2,8], index: 1, kind: input, shape index: {}]
  %s2 = inlined_call_operand.vmem [shape: f32[2,64,8], index: 2, kind: output, shape index: {}]
  %s3 = sld [smem:[#allocation0]]
  $region41: #{down_forward.5} parent=0
    _
  %s5 = ssub.s32 1, %s3
  %s6 = scalar_select 0, %s5, %s3
  loop: start=0, step=1, limit=4
  $region2: #{down_forward.5} parent=0 // loop_pre_header
    _
  $region3: #{down_forward.5} parent=0 // loop_header
    %s8 = sphi 0, %s12
    %p9 = scmp.ge.s32.totalorder %s8, 4
    %s18 = sphi 0, %s20
    %s21 = sphi 0, %s18
    %s22 = sphi 0, %s21
    %s38 = sphi 0, %s22
    %s42 = sphi 0, %s42
    %s44 = sphi 0, %s42
    %s45 = sphi 0, %s44
    %s59 = sphi 0, %s45
    %s65 = sphi 0, %s67
    %s68 = sphi 0, %s65
    %s69 = sphi 0, %s68
    %s85 = sphi 0, %s69
  $region4: #{down_forward.5} parent=0 // loop_header_branch
    %11 = sbr.rel (%p9) target = $region8
  $region5: #{down_forward.5} parent=0 // loop_body
    %s13 = ssub.s32 %s8, 1
    %s14 = ssub.s32 %s8, 2
    %s15 = sadd.s32 %s8, 1
    %s16 = ssub.s32 %s8, %s15
    %p17 = scmp.eq.s32.totalorder %s16, 0
    %s19 = sadd.s32 %s18, 1
    %s20 = scalar_select %p17, %s18, %s19
    %p23 = pneg %p17
    %p24 = scmp.eq.s32.totalorder %s8, 1
    %p25 = por %p23, %p24
    %p26 = scmp.ne.s32.totalorder %s18, %s21
    %p27 = scmp.eq.s32.totalorder %s8, 0
    %p28 = por %p26, %p27
    %p29 = scmp.ne.s32.totalorder %s18, %s21
    %p30 = scmp.eq.s32.totalorder %s13, 1
    %p31 = por %p29, %p30
    %p32 = scmp.ne.s32.totalorder %s21, %s22
    %p33 = scmp.eq.s32.totalorder %s13, 0
    %p34 = por %p32, %p33
    %p35 = scmp.ne.s32.totalorder %s21, %s22
    %p36 = scmp.eq.s32.totalorder %s14, 1
    %p37 = por %p35, %p36
    %p39 = scmp.ne.s32.totalorder %s22, %s38
    %p40 = scmp.eq.s32.totalorder %s14, 0
    %p41 = por %p39, %p40
    %s43 = sadd.s32 %s42, 1
    %p46 = scmp.eq.s32.totalorder %s8, 1
    %p47 = scmp.ne.s32.totalorder %s42, %s44
    %p48 = scmp.eq.s32.totalorder %s8, 0
    %p49 = por %p47, %p48
    %p50 = scmp.ne.s32.totalorder %s42, %s44
    %p51 = scmp.eq.s32.totalorder %s13, 1
    %p52 = por %p50, %p51
    %p53 = scmp.ne.s32.totalorder %s44, %s45
    %p54 = scmp.eq.s32.totalorder %s13, 0
    %p55 = por %p53, %p54
    %p56 = scmp.ne.s32.totalorder %s44, %s45
    %p57 = scmp.eq.s32.totalorder %s14, 1
    %p58 = por %p56, %p57
    %p60 = scmp.ne.s32.totalorder %s45, %s59
    %p61 = scmp.eq.s32.totalorder %s14, 0
    %p62 = por %p60, %p61
    %s63 = ssub.s32 %s8, %s15
    %p64 = scmp.eq.s32.totalorder %s63, 0
    %s66 = sadd.s32 %s65, 1
    %s67 = scalar_select %p64, %s65, %s66
    %p70 = pneg %p64
    %p71 = scmp.eq.s32.totalorder %s8, 1
    %p72 = por %p70, %p71
    %p73 = scmp.ne.s32.totalorder %s65, %s68
    %p74 = scmp.eq.s32.totalorder %s8, 0
    %p75 = por %p73, %p74
    %p76 = scmp.ne.s32.totalorder %s65, %s68
    %p77 = scmp.eq.s32.totalorder %s13, 1
    %p78 = por %p76, %p77
    %p79 = scmp.ne.s32.totalorder %s68, %s69
    %p80 = scmp.eq.s32.totalorder %s13, 0
    %p81 = por %p79, %p80
    %p82 = scmp.ne.s32.totalorder %s68, %s69
    %p83 = scmp.eq.s32.totalorder %s14, 1
    %p84 = por %p82, %p83
    %p86 = scmp.ne.s32.totalorder %s69, %s85
    %p87 = scmp.eq.s32.totalorder %s14, 0
    %p88 = por %p86, %p87
    %p89 = scmp.le.s32.totalorder 1, %s8
    %p90 = scmp.lt.s32.totalorder %s8, 3
    %p91 = pnand %p89, %p90
    %p92 = pneg %p91
    // Predicated region
    $region9: #{down_forward.5} parent=5 // pred_check
      _
    $region10: #{down_forward.5} parent=5 // pred_check_branch
      %94 = sbr.rel (%p91) target = $region12
    $region11: #{down_forward.5} parent=5 // pred_region
      %s95 = ssub.s32 %s8, 1
      // Predicated region
      $region13: #{down_forward.5} parent=11 // pred_check
        %p96 = pneg %p55
      $region14: #{down_forward.5} parent=11 // pred_check_branch
        %98 = sbr.rel (%p96) target = $region16
      $region15: #{down_forward.5} parent=11 // pred_region
        _
      $region16: #{down_forward.5} parent=11 // pred_fallthru
        _
    $region12: #{down_forward.5} parent=5 // pred_fallthru
      _
    %p99 = scmp.lt.s32.totalorder %s8, 2
    // Predicated region
    $region17: #{down_forward.5} parent=5 // pred_check
      %p100 = pneg %p99
    $region18: #{down_forward.5} parent=5 // pred_check_branch
      %102 = sbr.rel (%p100) target = $region20
    $region19: #{down_forward.5} parent=5 // pred_region
      // Predicated region
      $region21: #{down_forward.5} parent=19 // pred_check
        %p103 = pneg %p28
      $region22: #{down_forward.5} parent=19 // pred_check_branch
        %105 = sbr.rel (%p103) target = $region24
      $region23: #{down_forward.5} parent=19 // pred_region
        %p106 = scmp.lt.s32.totalorder %s8, 1
        %s107 = scalar_select %p106, %s8, 1
        %s108 = smul.addr %s107, 8
        %s109 = smul.addr %s108, 8
        %s110 = scalar_lea.vmem %s0, %s109
      $region24: #{down_forward.5} parent=19 // pred_fallthru
        _
    $region20: #{down_forward.5} parent=5 // pred_fallthru
      _
    %p111 = scmp.le.s32.totalorder 1, %s8
    %p112 = scmp.lt.s32.totalorder %s8, 3
    %p113 = pnand %p111, %p112
    %p114 = pneg %p113
    // Predicated region
    $region25: #{down_forward.5} parent=5 // pred_check
      _
    $region26: #{down_forward.5} parent=5 // pred_check_branch
      %116 = sbr.rel (%p113) target = $region28
    $region27: #{down_forward.5} parent=5 // pred_region
      %s117 = ssub.s32 %s8, 1
      %p118 = scmp.lt.s32.totalorder %s13, 1
      %s119 = scalar_select %p118, %s13, 1
      %s120 = smul.addr %s119, 8
      %s121 = smul.addr %s120, 8
      %s122 = scalar_lea.vmem %s0, %s121
      %p123 = pneg %p34
      %p124 = pneg %p31
      %p125 = pneg %p55
      %p126 = pneg %p52
      %p127 = pneg %p81
      %p128 = pneg %p78
      %p129 = scmp.lt.s32.totalorder %s13, 1
      %s130 = scalar_select %p129, %s13, 1
      %s131 = smul.addr %s130, 8
      %s132 = smul.addr %s131, 8
      %s133 = scalar_lea.vmem %s2, %s132
      %p134 = scmp.lt.s32.totalorder %s13, 1
      %s135 = scalar_select %p134, %s13, 1
      %s136 = smul.addr %s135, 8
      %s137 = smul.addr %s136, 8
      %s138 = scalar_lea.vmem %s0, %s137
      %p139 = scmp.lt.s32.totalorder %s13, 1
      %s140 = scalar_select %p139, %s13, 1
      %s141 = smul.addr %s140, 8
      %s142 = smul.addr %s141, 8
      %s143 = scalar_lea.vmem %s2, %s142
      %v144 = vld [vmem:[%s138] sm:$0xff]
      %v145 = vld [vmem:[%s138 + $0x8] sm:$0xff]
      %v146 = vld [vmem:[%s138 + $0x10] sm:$0xff]
      %v147 = vld [vmem:[%s138 + $0x18] sm:$0xff]
      %v148 = vld [vmem:[%s138 + $0x20] sm:$0xff]
      %v149 = vld [vmem:[%s138 + $0x28] sm:$0xff]
      %v150 = vld [vmem:[%s138 + $0x30] sm:$0xff]
      %v151 = vld [vmem:[%s138 + $0x38] sm:$0xff]
      %v152 = vld [vmem:[%s1] sm:$0x1]
      %v153 = vlaneseq
      %v154 = vshrl.u32 %v153, 7
      %v155 = vsub.s32 0, %v154
      %v156 = vrot.slane %v152, %v155
      %v157 = vmul.f32 %v144, %v156
      %v158 = vmul.f32 %v145, %v156
      %v159 = vmul.f32 %v146, %v156
      %v160 = vmul.f32 %v147, %v156
      %v161 = vmul.f32 %v148, %v156
      %v162 = vmul.f32 %v149, %v156
      %v163 = vmul.f32 %v150, %v156
      %v164 = vmul.f32 %v151, %v156
      %v165 = vld [vmem:[%s1 + $0x1] sm:$0x1]
      %v166 = vlaneseq
      %v167 = vshrl.u32 %v166, 7
      %v168 = vsub.s32 0, %v167
      %v169 = vrot.slane %v165, %v168
      %v170 = vadd.f32 %v157, %v169
      %v171 = vadd.f32 %v158, %v169
      %v172 = vadd.f32 %v159, %v169
      %v173 = vadd.f32 %v160, %v169
      %v174 = vadd.f32 %v161, %v169
      %v175 = vadd.f32 %v162, %v169
      %v176 = vadd.f32 %v163, %v169
      %v177 = vadd.f32 %v164, %v169
      %vm178 = vcmp.gt.f32.partialorder %v170, 0.0
      %vm179 = vcmp.gt.f32.partialorder %v171, 0.0
      %vm180 = vcmp.gt.f32.partialorder %v172, 0.0
      %vm181 = vcmp.gt.f32.partialorder %v173, 0.0
      %vm182 = vcmp.gt.f32.partialorder %v174, 0.0
      %vm183 = vcmp.gt.f32.partialorder %v175, 0.0
      %vm184 = vcmp.gt.f32.partialorder %v176, 0.0
      %vm185 = vcmp.gt.f32.partialorder %v177, 0.0
      %v186 = vmul.f32 %v170, 0.01
      %v187 = vmul.f32 %v171, 0.01
      %v188 = vmul.f32 %v172, 0.01
      %v189 = vmul.f32 %v173, 0.01
      %v190 = vmul.f32 %v174, 0.01
      %v191 = vmul.f32 %v175, 0.01
      %v192 = vmul.f32 %v176, 0.01
      %v193 = vmul.f32 %v177, 0.01
      %v194 = vsel %vm178, %v170, %v186
      %v195 = vsel %vm179, %v171, %v187
      %v196 = vsel %vm180, %v172, %v188
      %v197 = vsel %vm181, %v173, %v189
      %v198 = vsel %vm182, %v174, %v190
      %v199 = vsel %vm183, %v175, %v191
      %v200 = vsel %vm184, %v176, %v192
      %v201 = vsel %vm185, %v177, %v193
      %vm202 = vcmask 64512
      %203 = vst.msk [vmem:[%s143] sm:$0xff] %vm202, %v194
      %204 = vst.msk [vmem:[%s143 + $0x8] sm:$0xff] %vm202, %v195
      %205 = vst.msk [vmem:[%s143 + $0x10] sm:$0xff] %vm202, %v196
      %206 = vst.msk [vmem:[%s143 + $0x18] sm:$0xff] %vm202, %v197
      %207 = vst.msk [vmem:[%s143 + $0x20] sm:$0xff] %vm202, %v198
      %208 = vst.msk [vmem:[%s143 + $0x28] sm:$0xff] %vm202, %v199
      %209 = vst.msk [vmem:[%s143 + $0x30] sm:$0xff] %vm202, %v200
      %210 = vst.msk [vmem:[%s143 + $0x38] sm:$0xff] %vm202, %v201
      %p211 = scmp.lt.s32.totalorder %s13, 1
      %s212 = scalar_select %p211, %s13, 1
      %s213 = smul.addr %s212, 8
      %s214 = smul.addr %s213, 8
      %s215 = scalar_lea.vmem %s2, %s214
      // Predicated region
      $region29: #{down_forward.5} parent=27 // pred_check
        %p216 = pneg %p78
      $region30: #{down_forward.5} parent=27 // pred_check_branch
        %218 = sbr.rel (%p216) target = $region32
      $region31: #{down_forward.5} parent=27 // pred_region
        _
      $region32: #{down_forward.5} parent=27 // pred_fallthru
        _
    $region28: #{down_forward.5} parent=5 // pred_fallthru
      _
    %p219 = scmp.le.s32.totalorder 2, %s8
    // Predicated region
    $region33: #{down_forward.5} parent=5 // pred_check
      %p220 = pneg %p219
    $region34: #{down_forward.5} parent=5 // pred_check_branch
      %222 = sbr.rel (%p220) target = $region36
    $region35: #{down_forward.5} parent=5 // pred_region
      %s223 = ssub.s32 %s8, 2
      // Predicated region
      $region37: #{down_forward.5} parent=35 // pred_check
        %p224 = pneg %p84
      $region38: #{down_forward.5} parent=35 // pred_check_branch
        %226 = sbr.rel (%p224) target = $region40
      $region39: #{down_forward.5} parent=35 // pred_region
        %p227 = scmp.lt.s32.totalorder %s14, 1
        %s228 = scalar_select %p227, %s14, 1
        %s229 = smul.addr %s228, 8
        %s230 = smul.addr %s229, 8
        %s231 = scalar_lea.vmem %s2, %s230
      $region40: #{down_forward.5} parent=35 // pred_fallthru
        _
    $region36: #{down_forward.5} parent=5 // pred_fallthru
      _
  $region6: #{down_forward.5} parent=0 // loop_footer
    %s12 = sadd.s32 1, %s8
  $region7: #{down_forward.5} parent=0 // loop_footer_branch
    %7 = sbr.rel target = $region3
  $region8: #{down_forward.5} parent=0 // loop_exit
    _

// kernel: down_forward.4
$region0: #{down_forward.4}
  #allocation0 [shape = 'u32[]', space=smem, size = 0x4, offset = 0x4, fixed_abs, tag = 'smem constant byte address 0x4 - core index']
  #allocation1 [shape = 'u32[144,128]{1,0:T(1,128)}', space=vmem, size = 0x12000, scoped, tag = 'internal scratch']
  #allocation2 [shape = 'f32[96,8]{1,0:T(8,128)}', space=vmem, size = 0xc000, scoped, tag = 'scratch operand']
  %s0 = inlined_call_operand.vmem [shape: f32[2,64,8], index: 0, kind: input, shape index: {}]
  %s1 = inlined_call_operand.vmem [shape: f32[2,8], index: 1, kind: input, shape index: {}]
  %s2 = inlined_call_operand.vmem [shape: f32[9,8,8], index: 2, kind: input, shape index: {}]
  %s3 = inlined_call_operand.vmem [shape: f32[2,64,8], index: 3, kind: output, shape index: {0}]
  %s4 = inlined_call_operand.vmem [shape: f32[2,1,8], index: 4, kind: output, shape index: {1}]
  %s5 = inlined_call_operand.vmem [shape: f32[2,1,8], index: 5, kind: output, shape index: {2}]
  %6 = xla_tuple %s3, %s4, %s5
  %s7 = sld [smem:[#allocation0]]
  $region61: #{down_forward.4} parent=0
    _
  %s9 = ssub.s32 1, %s7
  %s10 = scalar_select 0, %s9, %s7
  loop: start=0, step=1, limit=4
  $region2: #{down_forward.4} parent=0 // loop_pre_header
    _
  $region3: #{down_forward.4} parent=0 // loop_header
    %s12 = sphi 0, %s16
    %p13 = scmp.ge.s32.totalorder %s12, 4
    %s22 = sphi 0, %s24
    %s25 = sphi 0, %s22
    %s26 = sphi 0, %s25
    %s42 = sphi 0, %s26
    %s46 = sphi 0, %s46
    %s48 = sphi 0, %s46
    %s49 = sphi 0, %s48
    %s63 = sphi 0, %s49
    %s67 = sphi 0, %s67
    %s69 = sphi 0, %s67
    %s70 = sphi 0, %s69
    %s84 = sphi 0, %s70
    %s90 = sphi 0, %s92
    %s93 = sphi 0, %s90
    %s94 = sphi 0, %s93
    %s110 = sphi 0, %s94
    %s116 = sphi 0, %s118
    %s119 = sphi 0, %s116
    %s120 = sphi 0, %s119
    %s136 = sphi 0, %s120
    %s142 = sphi 0, %s144
    %s145 = sphi 0, %s142
    %s146 = sphi 0, %s145
    %s162 = sphi 0, %s146
  $region4: #{down_forward.4} parent=0 // loop_header_branch
    %15 = sbr.rel (%p13) target = $region8
  $region5: #{down_forward.4} parent=0 // loop_body
    %s17 = ssub.s32 %s12, 1
    %s18 = ssub.s32 %s12, 2
    %s19 = sadd.s32 %s12, 1
    %s20 = ssub.s32 %s12, %s19
    %p21 = scmp.eq.s32.totalorder %s20, 0
    %s23 = sadd.s32 %s22, 1
    %s24 = scalar_select %p21, %s22, %s23
    %p27 = pneg %p21
    %p28 = scmp.eq.s32.totalorder %s12, 1
    %p29 = por %p27, %p28
    %p30 = scmp.ne.s32.totalorder %s22, %s25
    %p31 = scmp.eq.s32.totalorder %s12, 0
    %p32 = por %p30, %p31
    %p33 = scmp.ne.s32.totalorder %s22, %s25
    %p34 = scmp.eq.s32.totalorder %s17, 1
    %p35 = por %p33, %p34
    %p36 = scmp.ne.s32.totalorder %s25, %s26
    %p37 = scmp.eq.s32.totalorder %s17, 0
    %p38 = por %p36, %p37
    %p39 = scmp.ne.s32.totalorder %s25, %s26
    %p40 = scmp.eq.s32.totalorder %s18, 1
    %p41 = por %p39, %p40
    %p43 = scmp.ne.s32.totalorder %s26, %s42
    %p44 = scmp.eq.s32.totalorder %s18, 0
    %p45 = por %p43, %p44
    %s47 = sadd.s32 %s46, 1
    %p50 = scmp.eq.s32.totalorder %s12, 1
    %p51 = scmp.ne.s32.totalorder %s46, %s48
    %p52 = scmp.eq.s32.totalorder %s12, 0
    %p53 = por %p51, %p52
    %p54 = scmp.ne.s32.totalorder %s46, %s48
    %p55 = scmp.eq.s32.totalorder %s17, 1
    %p56 = por %p54, %p55
    %p57 = scmp.ne.s32.totalorder %s48, %s49
    %p58 = scmp.eq.s32.totalorder %s17, 0
    %p59 = por %p57, %p58
    %p60 = scmp.ne.s32.totalorder %s48, %s49
    %p61 = scmp.eq.s32.totalorder %s18, 1
    %p62 = por %p60, %p61
    %p64 = scmp.ne.s32.totalorder %s49, %s63
    %p65 = scmp.eq.s32.totalorder %s18, 0
    %p66 = por %p64, %p65
    %s68 = sadd.s32 %s67, 1
    %p71 = scmp.eq.s32.totalorder %s12, 1
    %p72 = scmp.ne.s32.totalorder %s67, %s69
    %p73 = scmp.eq.s32.totalorder %s12, 0
    %p74 = por %p72, %p73
    %p75 = scmp.ne.s32.totalorder %s67, %s69
    %p76 = scmp.eq.s32.totalorder %s17, 1
    %p77 = por %p75, %p76
    %p78 = scmp.ne.s32.totalorder %s69, %s70
    %p79 = scmp.eq.s32.totalorder %s17, 0
    %p80 = por %p78, %p79
    %p81 = scmp.ne.s32.totalorder %s69, %s70
    %p82 = scmp.eq.s32.totalorder %s18, 1
    %p83 = por %p81, %p82
    %p85 = scmp.ne.s32.totalorder %s70, %s84
    %p86 = scmp.eq.s32.totalorder %s18, 0
    %p87 = por %p85, %p86
    %s88 = ssub.s32 %s12, %s19
    %p89 = scmp.eq.s32.totalorder %s88, 0
    %s91 = sadd.s32 %s90, 1
    %s92 = scalar_select %p89, %s90, %s91
    %p95 = pneg %p89
    %p96 = scmp.eq.s32.totalorder %s12, 1
    %p97 = por %p95, %p96
    %p98 = scmp.ne.s32.totalorder %s90, %s93
    %p99 = scmp.eq.s32.totalorder %s12, 0
    %p100 = por %p98, %p99
    %p101 = scmp.ne.s32.totalorder %s90, %s93
    %p102 = scmp.eq.s32.totalorder %s17, 1
    %p103 = por %p101, %p102
    %p104 = scmp.ne.s32.totalorder %s93, %s94
    %p105 = scmp.eq.s32.totalorder %s17, 0
    %p106 = por %p104, %p105
    %p107 = scmp.ne.s32.totalorder %s93, %s94
    %p108 = scmp.eq.s32.totalorder %s18, 1
    %p109 = por %p107, %p108
    %p111 = scmp.ne.s32.totalorder %s94, %s110
    %p112 = scmp.eq.s32.totalorder %s18, 0
    %p113 = por %p111, %p112
    %s114 = ssub.s32 %s12, %s19
    %p115 = scmp.eq.s32.totalorder %s114, 0
    %s117 = sadd.s32 %s116, 1
    %s118 = scalar_select %p115, %s116, %s117
    %p121 = pneg %p115
    %p122 = scmp.eq.s32.totalorder %s12, 1
    %p123 = por %p121, %p122
    %p124 = scmp.ne.s32.totalorder %s116, %s119
    %p125 = scmp.eq.s32.totalorder %s12, 0
    %p126 = por %p124, %p125
    %p127 = scmp.ne.s32.totalorder %s116, %s119
    %p128 = scmp.eq.s32.totalorder %s17, 1
    %p129 = por %p127, %p128
    %p130 = scmp.ne.s32.totalorder %s119, %s120
    %p131 = scmp.eq.s32.totalorder %s17, 0
    %p132 = por %p130, %p131
    %p133 = scmp.ne.s32.totalorder %s119, %s120
    %p134 = scmp.eq.s32.totalorder %s18, 1
    %p135 = por %p133, %p134
    %p137 = scmp.ne.s32.totalorder %s120, %s136
    %p138 = scmp.eq.s32.totalorder %s18, 0
    %p139 = por %p137, %p138
    %s140 = ssub.s32 %s12, %s19
    %p141 = scmp.eq.s32.totalorder %s140, 0
    %s143 = sadd.s32 %s142, 1
    %s144 = scalar_select %p141, %s142, %s143
    %p147 = pneg %p141
    %p148 = scmp.eq.s32.totalorder %s12, 1
    %p149 = por %p147, %p148
    %p150 = scmp.ne.s32.totalorder %s142, %s145
    %p151 = scmp.eq.s32.totalorder %s12, 0
    %p152 = por %p150, %p151
    %p153 = scmp.ne.s32.totalorder %s142, %s145
    %p154 = scmp.eq.s32.totalorder %s17, 1
    %p155 = por %p153, %p154
    %p156 = scmp.ne.s32.totalorder %s145, %s146
    %p157 = scmp.eq.s32.totalorder %s17, 0
    %p158 = por %p156, %p157
    %p159 = scmp.ne.s32.totalorder %s145, %s146
    %p160 = scmp.eq.s32.totalorder %s18, 1
    %p161 = por %p159, %p160
    %p163 = scmp.ne.s32.totalorder %s146, %s162
    %p164 = scmp.eq.s32.totalorder %s18, 0
    %p165 = por %p163, %p164
    %p166 = scmp.le.s32.totalorder 1, %s12
    %p167 = scmp.lt.s32.totalorder %s12, 3
    %p168 = pnand %p166, %p167
    %p169 = pneg %p168
    // Predicated region
    $region9: #{down_forward.4} parent=5 // pred_check
      _
    $region10: #{down_forward.4} parent=5 // pred_check_branch
      %171 = sbr.rel (%p168) target = $region12
    $region11: #{down_forward.4} parent=5 // pred_region
      %s172 = ssub.s32 %s12, 1
      // Predicated region
      $region13: #{down_forward.4} parent=11 // pred_check
        %p173 = pneg %p59
      $region14: #{down_forward.4} parent=11 // pred_check_branch
        %175 = sbr.rel (%p173) target = $region16
      $region15: #{down_forward.4} parent=11 // pred_region
        _
      $region16: #{down_forward.4} parent=11 // pred_fallthru
        _
      // Predicated region
      $region17: #{down_forward.4} parent=11 // pred_check
        %p176 = pneg %p80
      $region18: #{down_forward.4} parent=11 // pred_check_branch
        %178 = sbr.rel (%p176) target = $region20
      $region19: #{down_forward.4} parent=11 // pred_region
        _
      $region20: #{down_forward.4} parent=11 // pred_fallthru
        _
    $region12: #{down_forward.4} parent=5 // pred_fallthru
      _
    %p179 = scmp.lt.s32.totalorder %s12, 2
    // Predicated region
    $region21: #{down_forward.4} parent=5 // pred_check
      %p180 = pneg %p179
    $region22: #{down_forward.4} parent=5 // pred_check_branch
      %182 = sbr.rel (%p180) target = $region24
    $region23: #{down_forward.4} parent=5 // pred_region
      // Predicated region
      $region25: #{down_forward.4} parent=23 // pred_check
        %p183 = pneg %p32
      $region26: #{down_forward.4} parent=23 // pred_check_branch
        %185 = sbr.rel (%p183) target = $region28
      $region27: #{down_forward.4} parent=23 // pred_region
        %p186 = scmp.lt.s32.totalorder %s12, 1
        %s187 = scalar_select %p186, %s12, 1
        %s188 = smul.addr %s187, 8
        %s189 = smul.addr %s188, 8
        %s190 = scalar_lea.vmem %s0, %s189
      $region28: #{down_forward.4} parent=23 // pred_fallthru
        _
    $region24: #{down_forward.4} parent=5 // pred_fallthru
      _
    %p191 = scmp.le.s32.totalorder 1, %s12
    %p192 = scmp.lt.s32.totalorder %s12, 3
    %p193 = pnand %p191, %p192
    %p194 = pneg %p193
    // Predicated region
    $region29: #{down_forward.4} parent=5 // pred_check
      _
    $region30: #{down_forward.4} parent=5 // pred_check_branch
      %196 = sbr.rel (%p193) target = $region32
    $region31: #{down_forward.4} parent=5 // pred_region
      %s197 = ssub.s32 %s12, 1
      %p198 = scmp.lt.s32.totalorder %s17, 1
      %s199 = scalar_select %p198, %s17, 1
      %s200 = smul.addr %s199, 8
      %s201 = smul.addr %s200, 8
      %s202 = scalar_lea.vmem %s0, %s201
      %p203 = pneg %p38
      %p204 = pneg %p35
      %p205 = pneg %p59
      %p206 = pneg %p56
      %p207 = pneg %p80
      %p208 = pneg %p77
      %p209 = pneg %p106
      %p210 = pneg %p103
      %p211 = scmp.lt.s32.totalorder %s17, 1
      %s212 = scalar_select %p211, %s17, 1
      %s213 = smul.addr %s212, 8
      %s214 = smul.addr %s213, 8
      %s215 = scalar_lea.vmem %s3, %s214
      %p216 = pneg %p132
      %p217 = pneg %p129
      %p218 = scmp.lt.s32.totalorder %s17, 1
      %s219 = scalar_select %p218, %s17, 1
      %s220 = scalar_lea.vmem %s4, %s219
      %p221 = pneg %p158
      %p222 = pneg %p155
      %p223 = scmp.lt.s32.totalorder %s17, 1
      %s224 = scalar_select %p223, %s17, 1
      %s225 = scalar_lea.vmem %s5, %s224
      %p226 = scmp.lt.s32.totalorder %s17, 1
      %s227 = scalar_select %p226, %s17, 1
      %s228 = smul.addr %s227, 8
      %s229 = smul.addr %s228, 8
      %s230 = scalar_lea.vmem %s0, %s229
      %p231 = scmp.lt.s32.totalorder %s17, 1
      %s232 = scalar_select %p231, %s17, 1
      %s233 = smul.addr %s232, 8
      %s234 = smul.addr %s233, 8
      %s235 = scalar_lea.vmem %s3, %s234
      %p236 = scmp.lt.s32.totalorder %s17, 1
      %s237 = scalar_select %p236, %s17, 1
      %s238 = scalar_lea.vmem %s4, %s237
      %p239 = scmp.lt.s32.totalorder %s17, 1
      %s240 = scalar_select %p239, %s17, 1
      %s241 = scalar_lea.vmem %s5, %s240
      %v242 = vld [vmem:[%s230] sm:$0xff]
      %v243 = vld [vmem:[%s230 + $0x8] sm:$0xff]
      %v244 = vld [vmem:[%s230 + $0x10] sm:$0xff]
      %v245 = vld [vmem:[%s230 + $0x18] sm:$0xff]
      %v246 = vld [vmem:[%s230 + $0x20] sm:$0xff]
      %v247 = vld [vmem:[%s230 + $0x28] sm:$0xff]
      %v248 = vld [vmem:[%s230 + $0x30] sm:$0xff]
      %v249 = vld [vmem:[%s230 + $0x38] sm:$0xff]
      %v250 = vld [vmem:[%s1] sm:$0x1]
      %v251 = vlaneseq
      %v252 = vshrl.u32 %v251, 7
      %v253 = vsub.s32 0, %v252
      %v254 = vrot.slane %v250, %v253
      %v255 = vmul.f32 %v242, %v254
      %v256 = vmul.f32 %v243, %v254
      %v257 = vmul.f32 %v244, %v254
      %v258 = vmul.f32 %v245, %v254
      %v259 = vmul.f32 %v246, %v254
      %v260 = vmul.f32 %v247, %v254
      %v261 = vmul.f32 %v248, %v254
      %v262 = vmul.f32 %v249, %v254
      %v263 = vld [vmem:[%s1 + $0x1] sm:$0x1]
      %v264 = vlaneseq
      %v265 = vshrl.u32 %v264, 7
      %v266 = vsub.s32 0, %v265
      %v267 = vrot.slane %v263, %v266
      %v268 = vadd.f32 %v255, %v267
      %v269 = vadd.f32 %v256, %v267
      %v270 = vadd.f32 %v257, %v267
      %v271 = vadd.f32 %v258, %v267
      %v272 = vadd.f32 %v259, %v267
      %v273 = vadd.f32 %v260, %v267
      %v274 = vadd.f32 %v261, %v267
      %v275 = vadd.f32 %v262, %v267
      %vm276 = vcmp.gt.f32.partialorder %v268, 0.0
      %vm277 = vcmp.gt.f32.partialorder %v269, 0.0
      %vm278 = vcmp.gt.f32.partialorder %v270, 0.0
      %vm279 = vcmp.gt.f32.partialorder %v271, 0.0
      %vm280 = vcmp.gt.f32.partialorder %v272, 0.0
      %vm281 = vcmp.gt.f32.partialorder %v273, 0.0
      %vm282 = vcmp.gt.f32.partialorder %v274, 0.0
      %vm283 = vcmp.gt.f32.partialorder %v275, 0.0
      %v284 = vmul.f32 %v268, 0.01
      %v285 = vmul.f32 %v269, 0.01
      %v286 = vmul.f32 %v270, 0.01
      %v287 = vmul.f32 %v271, 0.01
      %v288 = vmul.f32 %v272, 0.01
      %v289 = vmul.f32 %v273, 0.01
      %v290 = vmul.f32 %v274, 0.01
      %v291 = vmul.f32 %v275, 0.01
      %v292 = vsel %vm276, %v268, %v284
      %v293 = vsel %vm277, %v269, %v285
      %v294 = vsel %vm278, %v270, %v286
      %v295 = vsel %vm279, %v271, %v287
      %v296 = vsel %vm280, %v272, %v288
      %v297 = vsel %vm281, %v273, %v289
      %v298 = vsel %vm282, %v274, %v290
      %v299 = vsel %vm283, %v275, %v291
      %vm300 = vcmask 64512
      %301 = vst.msk [vmem:[#allocation2] sm:$0xff] %vm300, 0.0
      %302 = vst.msk [vmem:[#allocation2 + $0x8] sm:$0xff] %vm300, 0.0
      %303 = vst.msk [vmem:[#allocation2 + $0x10] sm:$0xff] %vm300, 0.0
      %304 = vst.msk [vmem:[#allocation2 + $0x18] sm:$0xff] %vm300, 0.0
      %305 = vst.msk [vmem:[#allocation2 + $0x20] sm:$0xff] %vm300, 0.0
      %306 = vst.msk [vmem:[#allocation2 + $0x28] sm:$0xff] %vm300, 0.0
      %307 = vst.msk [vmem:[#allocation2 + $0x30] sm:$0xff] %vm300, 0.0
      %308 = vst.msk [vmem:[#allocation2 + $0x38] sm:$0xff] %vm300, 0.0
      %309 = vst.msk [vmem:[#allocation2 + $0x40] sm:$0xff] %vm300, 0.0
      %310 = vst.msk [vmem:[#allocation2 + $0x48] sm:$0xff] %vm300, 0.0
      %311 = vst.msk [vmem:[#allocation2 + $0x50] sm:$0xff] %vm300, 0.0
      %312 = vst.msk [vmem:[#allocation2 + $0x58] sm:$0xff] %vm300, 0.0
      %313 = vst.msk [vmem:[#allocation2 + $0x10] sm:$0xff] %vm300, %v292
      %314 = vst.msk [vmem:[#allocation2 + $0x18] sm:$0xff] %vm300, %v293
      %315 = vst.msk [vmem:[#allocation2 + $0x20] sm:$0xff] %vm300, %v294
      %316 = vst.msk [vmem:[#allocation2 + $0x28] sm:$0xff] %vm300, %v295
      %317 = vst.msk [vmem:[#allocation2 + $0x30] sm:$0xff] %vm300, %v296
      %318 = vst.msk [vmem:[#allocation2 + $0x38] sm:$0xff] %vm300, %v297
      %319 = vst.msk [vmem:[#allocation2 + $0x40] sm:$0xff] %vm300, %v298
      %320 = vst.msk [vmem:[#allocation2 + $0x48] sm:$0xff] %vm300, %v299
      %v321 = vlaneseq
      %v322 = vshrl.u32 %v321, 7
      %v323 = vadd.s32 %v322, 8
      %v324 = vadd.s32 %v322, 16
      %v325 = vadd.s32 %v322, 24
      %v326 = vadd.s32 %v322, 32
      %v327 = vadd.s32 %v322, 40
      %v328 = vadd.s32 %v322, 48
      %v329 = vadd.s32 %v322, 56
      %vm330 = vcmp.lt.s32.totalorder %v322, 0
      %v331 = vsub.s32 0, %v322
      %v332 = vsel %vm330, %v331, %v322
      %v333 = vshrl.u32 %v332, 3
      %v334 = vand.u32 %v332, 7
      %v335 = vsub.s32 0, %v334
      %v336 = vsel %vm330, %v335, %v334
      %vm337 = vcmp.lt.s32.totalorder %v323, 0
      %v338 = vsub.s32 0, %v323
      %v339 = vsel %vm337, %v338, %v323
      %v340 = vshrl.u32 %v339, 3
      %v341 = vand.u32 %v339, 7
      %v342 = vsub.s32 0, %v341
      %v343 = vsel %vm337, %v342, %v341
      %vm344 = vcmp.lt.s32.totalorder %v324, 0
      %v345 = vsub.s32 0, %v324
      %v346 = vsel %vm344, %v345, %v324
      %v347 = vshrl.u32 %v346, 3
      %v348 = vand.u32 %v346, 7
      %v349 = vsub.s32 0, %v348
      %v350 = vsel %vm344, %v349, %v348
      %vm351 = vcmp.lt.s32.totalorder %v325, 0
      %v352 = vsub.s32 0, %v325
      %v353 = vsel %vm351, %v352, %v325
      %v354 = vshrl.u32 %v353, 3
      %v355 = vand.u32 %v353, 7
      %v356 = vsub.s32 0, %v355
      %v357 = vsel %vm351, %v356, %v355
      %vm358 = vcmp.lt.s32.totalorder %v326, 0
      %v359 = vsub.s32 0, %v326
      %v360 = vsel %vm358, %v359, %v326
      %v361 = vshrl.u32 %v360, 3
      %v362 = vand.u32 %v360, 7
      %v363 = vsub.s32 0, %v362
      %v364 = vsel %vm358, %v363, %v362
      %vm365 = vcmp.lt.s32.totalorder %v327, 0
      %v366 = vsub.s32 0, %v327
      %v367 = vsel %vm365, %v366, %v327
      %v368 = vshrl.u32 %v367, 3
      %v369 = vand.u32 %v367, 7
      %v370 = vsub.s32 0, %v369
      %v371 = vsel %vm365, %v370, %v369
      %vm372 = vcmp.lt.s32.totalorder %v328, 0
      %v373 = vsub.s32 0, %v328
      %v374 = vsel %vm372, %v373, %v328
      %v375 = vshrl.u32 %v374, 3
      %v376 = vand.u32 %v374, 7
      %v377 = vsub.s32 0, %v376
      %v378 = vsel %vm372, %v377, %v376
      %vm379 = vcmp.lt.s32.totalorder %v329, 0
      %v380 = vsub.s32 0, %v329
      %v381 = vsel %vm379, %v380, %v329
      %v382 = vshrl.u32 %v381, 3
      %v383 = vand.u32 %v381, 7
      %v384 = vsub.s32 0, %v383
      %v385 = vsel %vm379, %v384, %v383
      %vm386 = vcmp.ne.s32.totalorder %v336, 0
      %vm387 = vcmp.ne.s32.totalorder %v343, 0
      %vm388 = vcmp.ne.s32.totalorder %v350, 0
      %vm389 = vcmp.ne.s32.totalorder %v357, 0
      %vm390 = vcmp.ne.s32.totalorder %v364, 0
      %vm391 = vcmp.ne.s32.totalorder %v371, 0
      %vm392 = vcmp.ne.s32.totalorder %v378, 0
      %vm393 = vcmp.ne.s32.totalorder %v385, 0
      %vm394 = vcmp.lt.s32.totalorder %v336, 0
      %vm395 = vcmp.lt.s32.totalorder %v343, 0
      %vm396 = vcmp.lt.s32.totalorder %v350, 0
      %vm397 = vcmp.lt.s32.totalorder %v357, 0
      %vm398 = vcmp.lt.s32.totalorder %v364, 0
      %vm399 = vcmp.lt.s32.totalorder %v371, 0
      %vm400 = vcmp.lt.s32.totalorder %v378, 0
      %vm401 = vcmp.lt.s32.totalorder %v385, 0
      %vm402 = vmand %vm394, %vm386
      %vm403 = vmand %vm395, %vm387
      %vm404 = vmand %vm396, %vm388
      %vm405 = vmand %vm397, %vm389
      %vm406 = vmand %vm398, %vm390
      %vm407 = vmand %vm399, %vm391
      %vm408 = vmand %vm400, %vm392
      %vm409 = vmand %vm401, %vm393
      %v410 = vadd.s32 %v336, 8
      %v411 = vadd.s32 %v343, 8
      %v412 = vadd.s32 %v350, 8
      %v413 = vadd.s32 %v357, 8
      %v414 = vadd.s32 %v364, 8
      %v415 = vadd.s32 %v371, 8
      %v416 = vadd.s32 %v378, 8
      %v417 = vadd.s32 %v385, 8
      %v418 = vsel %vm402, %v410, %v336
      %v419 = vsel %vm403, %v411, %v343
      %v420 = vsel %vm404, %v412, %v350
      %v421 = vsel %vm405, %v413, %v357
      %v422 = vsel %vm406, %v414, %v364
      %v423 = vsel %vm407, %v415, %v371
      %v424 = vsel %vm408, %v416, %v378
      %v425 = vsel %vm409, %v417, %v385
      %vm426 = vcmp.gt.s32.totalorder %v418, 0
      %vm427 = vcmp.gt.s32.totalorder %v419, 0
      %vm428 = vcmp.gt.s32.totalorder %v420, 0
      %vm429 = vcmp.gt.s32.totalorder %v421, 0
      %vm430 = vcmp.gt.s32.totalorder %v422, 0
      %vm431 = vcmp.gt.s32.totalorder %v423, 0
      %vm432 = vcmp.gt.s32.totalorder %v424, 0
      %vm433 = vcmp.gt.s32.totalorder %v425, 0
      %v434 = vsel %vm426, 1, 0
      %v435 = vsel %vm427, 1, 0
      %v436 = vsel %vm428, 1, 0
      %v437 = vsel %vm429, 1, 0
      %v438 = vsel %vm430, 1, 0
      %v439 = vsel %vm431, 1, 0
      %v440 = vsel %vm432, 1, 0
      %v441 = vsel %vm433, 1, 0
      %v442 = vcvt.s32.f32 %v434
      %v443 = vcvt.s32.f32 %v435
      %v444 = vcvt.s32.f32 %v436
      %v445 = vcvt.s32.f32 %v437
      %v446 = vcvt.s32.f32 %v438
      %v447 = vcvt.s32.f32 %v439
      %v448 = vcvt.s32.f32 %v440
      %v449 = vcvt.s32.f32 %v441
      %vm450 = vcmp.lt.s32.totalorder %v418, 7
      %vm451 = vcmp.lt.s32.totalorder %v419, 7
      %vm452 = vcmp.lt.s32.totalorder %v420, 7
      %vm453 = vcmp.lt.s32.totalorder %v421, 7
      %vm454 = vcmp.lt.s32.totalorder %v422, 7
      %vm455 = vcmp.lt.s32.totalorder %v423, 7
      %vm456 = vcmp.lt.s32.totalorder %v424, 7
      %vm457 = vcmp.lt.s32.totalorder %v425, 7
      %v458 = vsel %vm450, 1, 0
      %v459 = vsel %vm451, 1, 0
      %v460 = vsel %vm452, 1, 0
      %v461 = vsel %vm453, 1, 0
      %v462 = vsel %vm454, 1, 0
      %v463 = vsel %vm455, 1, 0
      %v464 = vsel %vm456, 1, 0
      %v465 = vsel %vm457, 1, 0
      %v466 = vcvt.s32.f32 %v458
      %v467 = vcvt.s32.f32 %v459
      %v468 = vcvt.s32.f32 %v460
      %v469 = vcvt.s32.f32 %v461
      %v470 = vcvt.s32.f32 %v462
      %v471 = vcvt.s32.f32 %v463
      %v472 = vcvt.s32.f32 %v464
      %v473 = vcvt.s32.f32 %v465
      %v474 = vld [vmem:[#allocation2 + $0x7] sm:$0xff]
      %v475 = vld [vmem:[#allocation2 + $0xf] sm:$0xff]
      %v476 = vld [vmem:[#allocation2 + $0x17] sm:$0xff]
      %v477 = vld [vmem:[#allocation2 + $0x1f] sm:$0xff]
      %v478 = vld [vmem:[#allocation2 + $0x27] sm:$0xff]
      %v479 = vld [vmem:[#allocation2 + $0x2f] sm:$0xff]
      %v480 = vld [vmem:[#allocation2 + $0x37] sm:$0xff]
      %v481 = vld [vmem:[#allocation2 + $0x3f] sm:$0xff]
      %v482 = vmul.f32 %v474, %v442
      %v483 = vmul.f32 %v475, %v443
      %v484 = vmul.f32 %v476, %v444
      %v485 = vmul.f32 %v477, %v445
      %v486 = vmul.f32 %v478, %v446
      %v487 = vmul.f32 %v479, %v447
      %v488 = vmul.f32 %v480, %v448
      %v489 = vmul.f32 %v481, %v449
      %v490 = vld [vmem:[%s2] sm:$0xff]
      %v491 = vld [vmem:[#allocation2 + $0x8] sm:$0xff]
      %v492 = vld [vmem:[#allocation2 + $0x10] sm:$0xff]
      %v493 = vld [vmem:[#allocation2 + $0x18] sm:$0xff]
      %v494 = vld [vmem:[#allocation2 + $0x20] sm:$0xff]
      %v495 = vld [vmem:[#allocation2 + $0x28] sm:$0xff]
      %v496 = vld [vmem:[#allocation2 + $0x30] sm:$0xff]
      %v497 = vld [vmem:[#allocation2 + $0x38] sm:$0xff]
      %v498 = vld [vmem:[#allocation2 + $0x40] sm:$0xff]
      %s499 = scalar_lea.vmem %s2, 8
      %v500 = vld [vmem:[%s499] sm:$0xff]
      %v502 = vsel %vm300, %v491, 0
      %v505 = vsel %vm300, %v492, 0
      %v508 = vsel %vm300, %v493, 0
      %v511 = vsel %vm300, %v494, 0
      %v514 = vsel %vm300, %v495, 0
      %v517 = vsel %vm300, %v496, 0
      %v520 = vsel %vm300, %v497, 0
      %v523 = vsel %vm300, %v498, 0
      %525 = vmatprep.subr.mxu0 0.0
      %526 = vmatpush1.msra.mxu0 0.0
      %527 = vmatprep.subr.mxu0 0.0
      %528 = vmatpush1.msra.mxu0 0.0
      %529 = vmatprep.subr.mxu0 0.0
      %530 = vmatpush1.msra.mxu0 0.0
      %531 = vmatprep.subr.mxu0 0.0
      %532 = vmatpush1.msra.mxu0 0.0
      %533 = vmatprep.subr.mxu0 0.0
      %534 = vmatpush1.msra.mxu0 0.0
      %535 = vmatprep.subr.mxu0 0.0
      %536 = vmatpush1.msra.mxu0 0.0
      %537 = vmatprep.subr.mxu0 0.0
      %538 = vmatpush1.msra.mxu0 0.0
      %539 = vmatprep.subr.mxu0 0.0
      %540 = vmatpush1.msra.mxu0 0.0
      %541 = vmatprep.subr.mxu0 0.0
      %542 = vmatpush1.msra.mxu0 0.0
      %543 = vmatprep.subr.mxu0 0.0
      %544 = vmatpush1.msra.mxu0 0.0
      %545 = vmatprep.subr.mxu0 0.0
      %546 = vmatpush1.msra.mxu0 0.0
      %547 = vmatprep.subr.mxu0 0.0
      %548 = vmatpush1.msra.mxu0 0.0
      %549 = vmatprep.subr.mxu0 0.0
      %550 = vmatpush1.msra.mxu0 0.0
      %551 = vmatprep.subr.mxu0 0.0
      %552 = vmatpush1.msra.mxu0 0.0
      %553 = vmatprep.subr.mxu0 0.0
      %554 = vmatpush1.msra.mxu0 0.0
      %555 = vmatprep.subr.mxu0 0.0
      %556 = vmatpush1.msra.mxu0 %v500
      %557 = vmatprep.subr.mxu0 0.0
      %558 = vmatpush2.msra.mxu0 0.0
      %559 = vmatprep.subr.mxu0 0.0
      %560 = vmatpush2.msra.mxu0 0.0
      %561 = vmatprep.subr.mxu0 0.0
      %562 = vmatpush2.msra.mxu0 0.0
      %563 = vmatprep.subr.mxu0 0.0
      %564 = vmatpush2.msra.mxu0 0.0
      %565 = vmatprep.subr.mxu0 0.0
      %566 = vmatpush2.msra.mxu0 0.0
      %567 = vmatprep.subr.mxu0 0.0
      %568 = vmatpush2.msra.mxu0 0.0
      %569 = vmatprep.subr.mxu0 0.0
      %570 = vmatpush2.msra.mxu0 0.0
      %571 = vmatprep.subr.mxu0 0.0
      %572 = vmatpush2.msra.mxu0 0.0
      %573 = vmatprep.subr.mxu0 0.0
      %574 = vmatpush2.msra.mxu0 0.0
      %575 = vmatprep.subr.mxu0 0.0
      %576 = vmatpush2.msra.mxu0 0.0
      %577 = vmatprep.subr.mxu0 0.0
      %578 = vmatpush2.msra.mxu0 0.0
      %579 = vmatprep.subr.mxu0 0.0
      %580 = vmatpush2.msra.mxu0 0.0
      %581 = vmatprep.subr.mxu0 0.0
      %582 = vmatpush2.msra.mxu0 0.0
      %583 = vmatprep.subr.mxu0 0.0
      %584 = vmatpush2.msra.mxu0 0.0
      %585 = vmatprep.subr.mxu0 0.0
      %586 = vmatpush2.msra.mxu0 0.0
      %587 = vmatprep.subr.mxu0 0.0
      %588 = vmatpush2.msra.mxu0 0.0
      %589 = vmatprep.mubr.f32.mxu0 0.0
      %590 = vmatmul.mubr.f32.gmra.mxu0 %v502
      %v591 = vpop.f32.mrf.mxu0
      %v592 = vadd.f32 0.0, %v591
      %v593 = vpop.f32.mrf.mxu0
      %594 = vmatprep.mubr.f32.mxu0 0.0
      %595 = vmatmul.mubr.f32.gmra.mxu0 %v505
      %v596 = vpop.f32.mrf.mxu0
      %v597 = vadd.f32 0.0, %v596
      %v598 = vpop.f32.mrf.mxu0
      %599 = vmatprep.mubr.f32.mxu0 0.0
      %600 = vmatmul.mubr.f32.gmra.mxu0 %v508
      %v601 = vpop.f32.mrf.mxu0
      %v602 = vadd.f32 0.0, %v601
      %v603 = vpop.f32.mrf.mxu0
      %604 = vmatprep.mubr.f32.mxu0 0.0
      %605 = vmatmul.mubr.f32.gmra.mxu0 %v511
      %v606 = vpop.f32.mrf.mxu0
      %v607 = vadd.f32 0.0, %v606
      %v608 = vpop.f32.mrf.mxu0
      %609 = vmatprep.mubr.f32.mxu0 0.0
      %610 = vmatmul.mubr.f32.gmra.mxu0 %v514
      %v611 = vpop.f32.mrf.mxu0
      %v612 = vadd.f32 0.0, %v611
      %v613 = vpop.f32.mrf.mxu0
      %614 = vmatprep.mubr.f32.mxu0 0.0
      %615 = vmatmul.mubr.f32.gmra.mxu0 %v517
      %v616 = vpop.f32.mrf.mxu0
      %v617 = vadd.f32 0.0, %v616
      %v618 = vpop.f32.mrf.mxu0
      %619 = vmatprep.mubr.f32.mxu0 0.0
      %620 = vmatmul.mubr.f32.gmra.mxu0 %v520
      %v621 = vpop.f32.mrf.mxu0
      %v622 = vadd.f32 0.0, %v621
      %v623 = vpop.f32.mrf.mxu0
      %624 = vmatprep.mubr.f32.mxu0 0.0
      %625 = vmatmul.mubr.f32.gmra.mxu0 %v523
      %v626 = vpop.f32.mrf.mxu0
      %v627 = vadd.f32 0.0, %v626
      %v628 = vpop.f32.mrf.mxu0
      %629 = vdwg.mxu0
      %v631 = vsel %vm300, %v482, 0
      %v634 = vsel %vm300, %v483, 0
      %v637 = vsel %vm300, %v484, 0
      %v640 = vsel %vm300, %v485, 0
      %v643 = vsel %vm300, %v486, 0
      %v646 = vsel %vm300, %v487, 0
      %v649 = vsel %vm300, %v488, 0
      %v652 = vsel %vm300, %v489, 0
      %654 = vmatprep.subr.mxu0 0.0
      %655 = vmatpush1.msra.mxu0 0.0
      %656 = vmatprep.subr.mxu0 0.0
      %657 = vmatpush1.msra.mxu0 0.0
      %658 = vmatprep.subr.mxu0 0.0
      %659 = vmatpush1.msra.mxu0 0.0
      %660 = vmatprep.subr.mxu0 0.0
      %661 = vmatpush1.msra.mxu0 0.0
      %662 = vmatprep.subr.mxu0 0.0
      %663 = vmatpush1.msra.mxu0 0.0
      %664 = vmatprep.subr.mxu0 0.0
      %665 = vmatpush1.msra.mxu0 0.0
      %666 = vmatprep.subr.mxu0 0.0
      %667 = vmatpush1.msra.mxu0 0.0
      %668 = vmatprep.subr.mxu0 0.0
      %669 = vmatpush1.msra.mxu0 0.0
      %670 = vmatprep.subr.mxu0 0.0
      %671 = vmatpush1.msra.mxu0 0.0
      %672 = vmatprep.subr.mxu0 0.0
      %673 = vmatpush1.msra.mxu0 0.0
      %674 = vmatprep.subr.mxu0 0.0
      %675 = vmatpush1.msra.mxu0 0.0
      %676 = vmatprep.subr.mxu0 0.0
      %677 = vmatpush1.msra.mxu0 0.0
      %678 = vmatprep.subr.mxu0 0.0
      %679 = vmatpush1.msra.mxu0 0.0
      %680 = vmatprep.subr.mxu0 0.0
      %681 = vmatpush1.msra.mxu0 0.0
      %682 = vmatprep.subr.mxu0 0.0
      %683 = vmatpush1.msra.mxu0 0.0
      %684 = vmatprep.subr.mxu0 0.0
      %685 = vmatpush1.msra.mxu0 %v490
      %686 = vmatprep.subr.mxu0 0.0
      %687 = vmatpush2.msra.mxu0 0.0
      %688 = vmatprep.subr.mxu0 0.0
      %689 = vmatpush2.msra.mxu0 0.0
      %690 = vmatprep.subr.mxu0 0.0
      %691 = vmatpush2.msra.mxu0 0.0
      %692 = vmatprep.subr.mxu0 0.0
      %693 = vmatpush2.msra.mxu0 0.0
      %694 = vmatprep.subr.mxu0 0.0
      %695 = vmatpush2.msra.mxu0 0.0
      %696 = vmatprep.subr.mxu0 0.0
      %697 = vmatpush2.msra.mxu0 0.0
      %698 = vmatprep.subr.mxu0 0.0
      %699 = vmatpush2.msra.mxu0 0.0
      %700 = vmatprep.subr.mxu0 0.0
      %701 = vmatpush2.msra.mxu0 0.0
      %702 = vmatprep.subr.mxu0 0.0
      %703 = vmatpush2.msra.mxu0 0.0
      %704 = vmatprep.subr.mxu0 0.0
      %705 = vmatpush2.msra.mxu0 0.0
      %706 = vmatprep.subr.mxu0 0.0
      %707 = vmatpush2.msra.mxu0 0.0
      %708 = vmatprep.subr.mxu0 0.0
      %709 = vmatpush2.msra.mxu0 0.0
      %710 = vmatprep.subr.mxu0 0.0
      %711 = vmatpush2.msra.mxu0 0.0
      %712 = vmatprep.subr.mxu0 0.0
      %713 = vmatpush2.msra.mxu0 0.0
      %714 = vmatprep.subr.mxu0 0.0
      %715 = vmatpush2.msra.mxu0 0.0
      %716 = vmatprep.subr.mxu0 0.0
      %717 = vmatpush2.msra.mxu0 0.0
      %718 = vmatprep.mubr.f32.mxu0 0.0
      %719 = vmatmul.mubr.f32.gmra.mxu0 %v631
      %v720 = vpop.f32.mrf.mxu0
      %v721 = vadd.f32 %v592, %v720
      %v722 = vpop.f32.mrf.mxu0
      %723 = vmatprep.mubr.f32.mxu0 0.0
      %724 = vmatmul.mubr.f32.gmra.mxu0 %v634
      %v725 = vpop.f32.mrf.mxu0
      %v726 = vadd.f32 %v597, %v725
      %v727 = vpop.f32.mrf.mxu0
      %728 = vmatprep.mubr.f32.mxu0 0.0
      %729 = vmatmul.mubr.f32.gmra.mxu0 %v637
      %v730 = vpop.f32.mrf.mxu0
      %v731 = vadd.f32 %v602, %v730
      %v732 = vpop.f32.mrf.mxu0
      %733 = vmatprep.mubr.f32.mxu0 0.0
      %734 = vmatmul.mubr.f32.gmra.mxu0 %v640
      %v735 = vpop.f32.mrf.mxu0
      %v736 = vadd.f32 %v607, %v735
      %v737 = vpop.f32.mrf.mxu0
      %738 = vmatprep.mubr.f32.mxu0 0.0
      %739 = vmatmul.mubr.f32.gmra.mxu0 %v643
      %v740 = vpop.f32.mrf.mxu0
      %v741 = vadd.f32 %v612, %v740
      %v742 = vpop.f32.mrf.mxu0
      %743 = vmatprep.mubr.f32.mxu0 0.0
      %744 = vmatmul.mubr.f32.gmra.mxu0 %v646
      %v745 = vpop.f32.mrf.mxu0
      %v746 = vadd.f32 %v617, %v745
      %v747 = vpop.f32.mrf.mxu0
      %748 = vmatprep.mubr.f32.mxu0 0.0
      %749 = vmatmul.mubr.f32.gmra.mxu0 %v649
      %v750 = vpop.f32.mrf.mxu0
      %v751 = vadd.f32 %v622, %v750
      %v752 = vpop.f32.mrf.mxu0
      %753 = vmatprep.mubr.f32.mxu0 0.0
      %754 = vmatmul.mubr.f32.gmra.mxu0 %v652
      %v755 = vpop.f32.mrf.mxu0
      %v756 = vadd.f32 %v627, %v755
      %v757 = vpop.f32.mrf.mxu0
      %758 = vdwg.mxu0
      %v759 = vld [vmem:[#allocation2 + $0x9] sm:$0xff]
      %v760 = vld [vmem:[#allocation2 + $0x11] sm:$0xff]
      %v761 = vld [vmem:[#allocation2 + $0x19] sm:$0xff]
      %v762 = vld [vmem:[#allocation2 + $0x21] sm:$0xff]
      %v763 = vld [vmem:[#allocation2 + $0x29] sm:$0xff]
      %v764 = vld [vmem:[#allocation2 + $0x31] sm:$0xff]
      %v765 = vld [vmem:[#allocation2 + $0x39] sm:$0xff]
      %v766 = vld [vmem:[#allocation2 + $0x41] sm:$0xff]
      %v767 = vmul.f32 %v759, %v466
      %v768 = vmul.f32 %v760, %v467
      %v769 = vmul.f32 %v761, %v468
      %v770 = vmul.f32 %v762, %v469
      %v771 = vmul.f32 %v763, %v470
      %v772 = vmul.f32 %v764, %v471
      %v773 = vmul.f32 %v765, %v472
      %v774 = vmul.f32 %v766, %v473
      %s775 = scalar_lea.vmem %s2, 16
      %v776 = vld [vmem:[%s775] sm:$0xff]
      %v778 = vsel %vm300, %v767, 0
      %v781 = vsel %vm300, %v768, 0
      %v784 = vsel %vm300, %v769, 0
      %v787 = vsel %vm300, %v770, 0
      %v790 = vsel %vm300, %v771, 0
      %v793 = vsel %vm300, %v772, 0
      %v796 = vsel %vm300, %v773, 0
      %v799 = vsel %vm300, %v774, 0
      %801 = vmatprep.subr.mxu0 0.0
      %802 = vmatpush1.msra.mxu0 0.0
      %803 = vmatprep.subr.mxu0 0.0
      %804 = vmatpush1.msra.mxu0 0.0
      %805 = vmatprep.subr.mxu0 0.0
      %806 = vmatpush1.msra.mxu0 0.0
      %807 = vmatprep.subr.mxu0 0.0
      %808 = vmatpush1.msra.mxu0 0.0
      %809 = vmatprep.subr.mxu0 0.0
      %810 = vmatpush1.msra.mxu0 0.0
      %811 = vmatprep.subr.mxu0 0.0
      %812 = vmatpush1.msra.mxu0 0.0
      %813 = vmatprep.subr.mxu0 0.0
      %814 = vmatpush1.msra.mxu0 0.0
      %815 = vmatprep.subr.mxu0 0.0
      %816 = vmatpush1.msra.mxu0 0.0
      %817 = vmatprep.subr.mxu0 0.0
      %818 = vmatpush1.msra.mxu0 0.0
      %819 = vmatprep.subr.mxu0 0.0
      %820 = vmatpush1.msra.mxu0 0.0
      %821 = vmatprep.subr.mxu0 0.0
      %822 = vmatpush1.msra.mxu0 0.0
      %823 = vmatprep.subr.mxu0 0.0
      %824 = vmatpush1.msra.mxu0 0.0
      %825 = vmatprep.subr.mxu0 0.0
      %826 = vmatpush1.msra.mxu0 0.0
      %827 = vmatprep.subr.mxu0 0.0
      %828 = vmatpush1.msra.mxu0 0.0
      %829 = vmatprep.subr.mxu0 0.0
      %830 = vmatpush1.msra.mxu0 0.0
      %831 = vmatprep.subr.mxu0 0.0
      %832 = vmatpush1.msra.mxu0 %v776
      %833 = vmatprep.subr.mxu0 0.0
      %834 = vmatpush2.msra.mxu0 0.0
      %835 = vmatprep.subr.mxu0 0.0
      %836 = vmatpush2.msra.mxu0 0.0
      %837 = vmatprep.subr.mxu0 0.0
      %838 = vmatpush2.msra.mxu0 0.0
      %839 = vmatprep.subr.mxu0 0.0
      %840 = vmatpush2.msra.mxu0 0.0
      %841 = vmatprep.subr.mxu0 0.0
      %842 = vmatpush2.msra.mxu0 0.0
      %843 = vmatprep.subr.mxu0 0.0
      %844 = vmatpush2.msra.mxu0 0.0
      %845 = vmatprep.subr.mxu0 0.0
      %846 = vmatpush2.msra.mxu0 0.0
      %847 = vmatprep.subr.mxu0 0.0
      %848 = vmatpush2.msra.mxu0 0.0
      %849 = vmatprep.subr.mxu0 0.0
      %850 = vmatpush2.msra.mxu0 0.0
      %851 = vmatprep.subr.mxu0 0.0
      %852 = vmatpush2.msra.mxu0 0.0
      %853 = vmatprep.subr.mxu0 0.0
      %854 = vmatpush2.msra.mxu0 0.0
      %855 = vmatprep.subr.mxu0 0.0
      %856 = vmatpush2.msra.mxu0 0.0
      %857 = vmatprep.subr.mxu0 0.0
      %858 = vmatpush2.msra.mxu0 0.0
      %859 = vmatprep.subr.mxu0 0.0
      %860 = vmatpush2.msra.mxu0 0.0
      %861 = vmatprep.subr.mxu0 0.0
      %862 = vmatpush2.msra.mxu0 0.0
      %863 = vmatprep.subr.mxu0 0.0
      %864 = vmatpush2.msra.mxu0 0.0
      %865 = vmatprep.mubr.f32.mxu0 0.0
      %866 = vmatmul.mubr.f32.gmra.mxu0 %v778
      %v867 = vpop.f32.mrf.mxu0
      %v868 = vadd.f32 0.0, %v867
      %v869 = vpop.f32.mrf.mxu0
      %870 = vmatprep.mubr.f32.mxu0 0.0
      %871 = vmatmul.mubr.f32.gmra.mxu0 %v781
      %v872 = vpop.f32.mrf.mxu0
      %v873 = vadd.f32 0.0, %v872
      %v874 = vpop.f32.mrf.mxu0
      %875 = vmatprep.mubr.f32.mxu0 0.0
      %876 = vmatmul.mubr.f32.gmra.mxu0 %v784
      %v877 = vpop.f32.mrf.mxu0
      %v878 = vadd.f32 0.0, %v877
      %v879 = vpop.f32.mrf.mxu0
      %880 = vmatprep.mubr.f32.mxu0 0.0
      %881 = vmatmul.mubr.f32.gmra.mxu0 %v787
      %v882 = vpop.f32.mrf.mxu0
      %v883 = vadd.f32 0.0, %v882
      %v884 = vpop.f32.mrf.mxu0
      %885 = vmatprep.mubr.f32.mxu0 0.0
      %886 = vmatmul.mubr.f32.gmra.mxu0 %v790
      %v887 = vpop.f32.mrf.mxu0
      %v888 = vadd.f32 0.0, %v887
      %v889 = vpop.f32.mrf.mxu0
      %890 = vmatprep.mubr.f32.mxu0 0.0
      %891 = vmatmul.mubr.f32.gmra.mxu0 %v793
      %v892 = vpop.f32.mrf.mxu0
      %v893 = vadd.f32 0.0, %v892
      %v894 = vpop.f32.mrf.mxu0
      %895 = vmatprep.mubr.f32.mxu0 0.0
      %896 = vmatmul.mubr.f32.gmra.mxu0 %v796
      %v897 = vpop.f32.mrf.mxu0
      %v898 = vadd.f32 0.0, %v897
      %v899 = vpop.f32.mrf.mxu0
      %900 = vmatprep.mubr.f32.mxu0 0.0
      %901 = vmatmul.mubr.f32.gmra.mxu0 %v799
      %v902 = vpop.f32.mrf.mxu0
      %v903 = vadd.f32 0.0, %v902
      %v904 = vpop.f32.mrf.mxu0
      %905 = vdwg.mxu0
      %v906 = vadd.f32 %v721, %v868
      %v907 = vadd.f32 %v726, %v873
      %v908 = vadd.f32 %v731, %v878
      %v909 = vadd.f32 %v736, %v883
      %v910 = vadd.f32 %v741, %v888
      %v911 = vadd.f32 %v746, %v893
      %v912 = vadd.f32 %v751, %v898
      %v913 = vadd.f32 %v756, %v903
      %v914 = vld [vmem:[#allocation2 + $0xf] sm:$0xff]
      %v915 = vld [vmem:[#allocation2 + $0x17] sm:$0xff]
      %v916 = vld [vmem:[#allocation2 + $0x1f] sm:$0xff]
      %v917 = vld [vmem:[#allocation2 + $0x27] sm:$0xff]
      %v918 = vld [vmem:[#allocation2 + $0x2f] sm:$0xff]
      %v919 = vld [vmem:[#allocation2 + $0x37] sm:$0xff]
      %v920 = vld [vmem:[#allocation2 + $0x3f] sm:$0xff]
      %v921 = vld [vmem:[#allocation2 + $0x47] sm:$0xff]
      %v922 = vmul.f32 %v914, %v442
      %v923 = vmul.f32 %v915, %v443
      %v924 = vmul.f32 %v916, %v444
      %v925 = vmul.f32 %v917, %v445
      %v926 = vmul.f32 %v918, %v446
      %v927 = vmul.f32 %v919, %v447
      %v928 = vmul.f32 %v920, %v448
      %v929 = vmul.f32 %v921, %v449
      %s930 = scalar_lea.vmem %s2, 24
      %v931 = vld [vmem:[%s930] sm:$0xff]
      %v933 = vsel %vm300, %v922, 0
      %v936 = vsel %vm300, %v923, 0
      %v939 = vsel %vm300, %v924, 0
      %v942 = vsel %vm300, %v925, 0
      %v945 = vsel %vm300, %v926, 0
      %v948 = vsel %vm300, %v927, 0
      %v951 = vsel %vm300, %v928, 0
      %v954 = vsel %vm300, %v929, 0
      %956 = vmatprep.subr.mxu0 0.0
      %957 = vmatpush1.msra.mxu0 0.0
      %958 = vmatprep.subr.mxu0 0.0
      %959 = vmatpush1.msra.mxu0 0.0
      %960 = vmatprep.subr.mxu0 0.0
      %961 = vmatpush1.msra.mxu0 0.0
      %962 = vmatprep.subr.mxu0 0.0
      %963 = vmatpush1.msra.mxu0 0.0
      %964 = vmatprep.subr.mxu0 0.0
      %965 = vmatpush1.msra.mxu0 0.0
      %966 = vmatprep.subr.mxu0 0.0
      %967 = vmatpush1.msra.mxu0 0.0
      %968 = vmatprep.subr.mxu0 0.0
      %969 = vmatpush1.msra.mxu0 0.0
      %970 = vmatprep.subr.mxu0 0.0
      %971 = vmatpush1.msra.mxu0 0.0
      %972 = vmatprep.subr.mxu0 0.0
      %973 = vmatpush1.msra.mxu0 0.0
      %974 = vmatprep.subr.mxu0 0.0
      %975 = vmatpush1.msra.mxu0 0.0
      %976 = vmatprep.subr.mxu0 0.0
      %977 = vmatpush1.msra.mxu0 0.0
      %978 = vmatprep.subr.mxu0 0.0
      %979 = vmatpush1.msra.mxu0 0.0
      %980 = vmatprep.subr.mxu0 0.0
      %981 = vmatpush1.msra.mxu0 0.0
      %982 = vmatprep.subr.mxu0 0.0
      %983 = vmatpush1.msra.mxu0 0.0
      %984 = vmatprep.subr.mxu0 0.0
      %985 = vmatpush1.msra.mxu0 0.0
      %986 = vmatprep.subr.mxu0 0.0
      %987 = vmatpush1.msra.mxu0 %v931
      %988 = vmatprep.subr.mxu0 0.0
      %989 = vmatpush2.msra.mxu0 0.0
      %990 = vmatprep.subr.mxu0 0.0
      %991 = vmatpush2.msra.mxu0 0.0
      %992 = vmatprep.subr.mxu0 0.0
      %993 = vmatpush2.msra.mxu0 0.0
      %994 = vmatprep.subr.mxu0 0.0
      %995 = vmatpush2.msra.mxu0 0.0
      %996 = vmatprep.subr.mxu0 0.0
      %997 = vmatpush2.msra.mxu0 0.0
      %998 = vmatprep.subr.mxu0 0.0
      %999 = vmatpush2.msra.mxu0 0.0
      %1000 = vmatprep.subr.mxu0 0.0
      %1001 = vmatpush2.msra.mxu0 0.0
      %1002 = vmatprep.subr.mxu0 0.0
      %1003 = vmatpush2.msra.mxu0 0.0
      %1004 = vmatprep.subr.mxu0 0.0
      %1005 = vmatpush2.msra.mxu0 0.0
      %1006 = vmatprep.subr.mxu0 0.0
      %1007 = vmatpush2.msra.mxu0 0.0
      %1008 = vmatprep.subr.mxu0 0.0
      %1009 = vmatpush2.msra.mxu0 0.0
      %1010 = vmatprep.subr.mxu0 0.0
      %1011 = vmatpush2.msra.mxu0 0.0
      %1012 = vmatprep.subr.mxu0 0.0
      %1013 = vmatpush2.msra.mxu0 0.0
      %1014 = vmatprep.subr.mxu0 0.0
      %1015 = vmatpush2.msra.mxu0 0.0
      %1016 = vmatprep.subr.mxu0 0.0
      %1017 = vmatpush2.msra.mxu0 0.0
      %1018 = vmatprep.subr.mxu0 0.0
      %1019 = vmatpush2.msra.mxu0 0.0
      %1020 = vmatprep.mubr.f32.mxu0 0.0
      %1021 = vmatmul.mubr.f32.gmra.mxu0 %v933
      %v1022 = vpop.f32.mrf.mxu0
      %v1023 = vadd.f32 0.0, %v1022
      %v1024 = vpop.f32.mrf.mxu0
      %1025 = vmatprep.mubr.f32.mxu0 0.0
      %1026 = vmatmul.mubr.f32.gmra.mxu0 %v936
      %v1027 = vpop.f32.mrf.mxu0
      %v1028 = vadd.f32 0.0, %v1027
      %v1029 = vpop.f32.mrf.mxu0
      %1030 = vmatprep.mubr.f32.mxu0 0.0
      %1031 = vmatmul.mubr.f32.gmra.mxu0 %v939
      %v1032 = vpop.f32.mrf.mxu0
      %v1033 = vadd.f32 0.0, %v1032
      %v1034 = vpop.f32.mrf.mxu0
      %1035 = vmatprep.mubr.f32.mxu0 0.0
      %1036 = vmatmul.mubr.f32.gmra.mxu0 %v942
      %v1037 = vpop.f32.mrf.mxu0
      %v1038 = vadd.f32 0.0, %v1037
      %v1039 = vpop.f32.mrf.mxu0
      %1040 = vmatprep.mubr.f32.mxu0 0.0
      %1041 = vmatmul.mubr.f32.gmra.mxu0 %v945
      %v1042 = vpop.f32.mrf.mxu0
      %v1043 = vadd.f32 0.0, %v1042
      %v1044 = vpop.f32.mrf.mxu0
      %1045 = vmatprep.mubr.f32.mxu0 0.0
      %1046 = vmatmul.mubr.f32.gmra.mxu0 %v948
      %v1047 = vpop.f32.mrf.mxu0
      %v1048 = vadd.f32 0.0, %v1047
      %v1049 = vpop.f32.mrf.mxu0
      %1050 = vmatprep.mubr.f32.mxu0 0.0
      %1051 = vmatmul.mubr.f32.gmra.mxu0 %v951
      %v1052 = vpop.f32.mrf.mxu0
      %v1053 = vadd.f32 0.0, %v1052
      %v1054 = vpop.f32.mrf.mxu0
      %1055 = vmatprep.mubr.f32.mxu0 0.0
      %1056 = vmatmul.mubr.f32.gmra.mxu0 %v954
      %v1057 = vpop.f32.mrf.mxu0
      %v1058 = vadd.f32 0.0, %v1057
      %v1059 = vpop.f32.mrf.mxu0
      %1060 = vdwg.mxu0
      %v1061 = vadd.f32 %v906, %v1023
      %v1062 = vadd.f32 %v907, %v1028
      %v1063 = vadd.f32 %v908, %v1033
      %v1064 = vadd.f32 %v909, %v1038
      %v1065 = vadd.f32 %v910, %v1043
      %v1066 = vadd.f32 %v911, %v1048
      %v1067 = vadd.f32 %v912, %v1053
      %v1068 = vadd.f32 %v913, %v1058
      %v1069 = vld [vmem:[#allocation2 + $0x10] sm:$0xff]
      %v1070 = vld [vmem:[#allocation2 + $0x18] sm:$0xff]
      %v1071 = vld [vmem:[#allocation2 + $0x20] sm:$0xff]
      %v1072 = vld [vmem:[#allocation2 + $0x28] sm:$0xff]
      %v1073 = vld [vmem:[#allocation2 + $0x30] sm:$0xff]
      %v1074 = vld [vmem:[#allocation2 + $0x38] sm:$0xff]
      %v1075 = vld [vmem:[#allocation2 + $0x40] sm:$0xff]
      %v1076 = vld [vmem:[#allocation2 + $0x48] sm:$0xff]
      %s1077 = scalar_lea.vmem %s2, 32
      %v1078 = vld [vmem:[%s1077] sm:$0xff]
      %v1080 = vsel %vm300, %v1069, 0
      %v1083 = vsel %vm300, %v1070, 0
      %v1086 = vsel %vm300, %v1071, 0
      %v1089 = vsel %vm300, %v1072, 0
      %v1092 = vsel %vm300, %v1073, 0
      %v1095 = vsel %vm300, %v1074, 0
      %v1098 = vsel %vm300, %v1075, 0
      %v1101 = vsel %vm300, %v1076, 0
      %1103 = vmatprep.subr.mxu0 0.0
      %1104 = vmatpush1.msra.mxu0 0.0
      %1105 = vmatprep.subr.mxu0 0.0
      %1106 = vmatpush1.msra.mxu0 0.0
      %1107 = vmatprep.subr.mxu0 0.0
      %1108 = vmatpush1.msra.mxu0 0.0
      %1109 = vmatprep.subr.mxu0 0.0
      %1110 = vmatpush1.msra.mxu0 0.0
      %1111 = vmatprep.subr.mxu0 0.0
      %1112 = vmatpush1.msra.mxu0 0.0
      %1113 = vmatprep.subr.mxu0 0.0
      %1114 = vmatpush1.msra.mxu0 0.0
      %1115 = vmatprep.subr.mxu0 0.0
      %1116 = vmatpush1.msra.mxu0 0.0
      %1117 = vmatprep.subr.mxu0 0.0
      %1118 = vmatpush1.msra.mxu0 0.0
      %1119 = vmatprep.subr.mxu0 0.0
      %1120 = vmatpush1.msra.mxu0 0.0
      %1121 = vmatprep.subr.mxu0 0.0
      %1122 = vmatpush1.msra.mxu0 0.0
      %1123 = vmatprep.subr.mxu0 0.0
      %1124 = vmatpush1.msra.mxu0 0.0
      %1125 = vmatprep.subr.mxu0 0.0
      %1126 = vmatpush1.msra.mxu0 0.0
      %1127 = vmatprep.subr.mxu0 0.0
      %1128 = vmatpush1.msra.mxu0 0.0
      %1129 = vmatprep.subr.mxu0 0.0
      %1130 = vmatpush1.msra.mxu0 0.0
      %1131 = vmatprep.subr.mxu0 0.0
      %1132 = vmatpush1.msra.mxu0 0.0
      %1133 = vmatprep.subr.mxu0 0.0
      %1134 = vmatpush1.msra.mxu0 %v1078
      %1135 = vmatprep.subr.mxu0 0.0
      %1136 = vmatpush2.msra.mxu0 0.0
      %1137 = vmatprep.subr.mxu0 0.0
      %1138 = vmatpush2.msra.mxu0 0.0
      %1139 = vmatprep.subr.mxu0 0.0
      %1140 = vmatpush2.msra.mxu0 0.0
      %1141 = vmatprep.subr.mxu0 0.0
      %1142 = vmatpush2.msra.mxu0 0.0
      %1143 = vmatprep.subr.mxu0 0.0
      %1144 = vmatpush2.msra.mxu0 0.0
      %1145 = vmatprep.subr.mxu0 0.0
      %1146 = vmatpush2.msra.mxu0 0.0
      %1147 = vmatprep.subr.mxu0 0.0
      %1148 = vmatpush2.msra.mxu0 0.0
      %1149 = vmatprep.subr.mxu0 0.0
      %1150 = vmatpush2.msra.mxu0 0.0
      %1151 = vmatprep.subr.mxu0 0.0
      %1152 = vmatpush2.msra.mxu0 0.0
      %1153 = vmatprep.subr.mxu0 0.0
      %1154 = vmatpush2.msra.mxu0 0.0
      %1155 = vmatprep.subr.mxu0 0.0
      %1156 = vmatpush2.msra.mxu0 0.0
      %1157 = vmatprep.subr.mxu0 0.0
      %1158 = vmatpush2.msra.mxu0 0.0
      %1159 = vmatprep.subr.mxu0 0.0
      %1160 = vmatpush2.msra.mxu0 0.0
      %1161 = vmatprep.subr.mxu0 0.0
      %1162 = vmatpush2.msra.mxu0 0.0
      %1163 = vmatprep.subr.mxu0 0.0
      %1164 = vmatpush2.msra.mxu0 0.0
      %1165 = vmatprep.subr.mxu0 0.0
      %1166 = vmatpush2.msra.mxu0 0.0
      %1167 = vmatprep.mubr.f32.mxu0 0.0
      %1168 = vmatmul.mubr.f32.gmra.mxu0 %v1080
      %v1169 = vpop.f32.mrf.mxu0
      %v1170 = vadd.f32 0.0, %v1169
      %v1171 = vpop.f32.mrf.mxu0
      %1172 = vmatprep.mubr.f32.mxu0 0.0
      %1173 = vmatmul.mubr.f32.gmra.mxu0 %v1083
      %v1174 = vpop.f32.mrf.mxu0
      %v1175 = vadd.f32 0.0, %v1174
      %v1176 = vpop.f32.mrf.mxu0
      %1177 = vmatprep.mubr.f32.mxu0 0.0
      %1178 = vmatmul.mubr.f32.gmra.mxu0 %v1086
      %v1179 = vpop.f32.mrf.mxu0
      %v1180 = vadd.f32 0.0, %v1179
      %v1181 = vpop.f32.mrf.mxu0
      %1182 = vmatprep.mubr.f32.mxu0 0.0
      %1183 = vmatmul.mubr.f32.gmra.mxu0 %v1089
      %v1184 = vpop.f32.mrf.mxu0
      %v1185 = vadd.f32 0.0, %v1184
      %v1186 = vpop.f32.mrf.mxu0
      %1187 = vmatprep.mubr.f32.mxu0 0.0
      %1188 = vmatmul.mubr.f32.gmra.mxu0 %v1092
      %v1189 = vpop.f32.mrf.mxu0
      %v1190 = vadd.f32 0.0, %v1189
      %v1191 = vpop.f32.mrf.mxu0
      %1192 = vmatprep.mubr.f32.mxu0 0.0
      %1193 = vmatmul.mubr.f32.gmra.mxu0 %v1095
      %v1194 = vpop.f32.mrf.mxu0
      %v1195 = vadd.f32 0.0, %v1194
      %v1196 = vpop.f32.mrf.mxu0
      %1197 = vmatprep.mubr.f32.mxu0 0.0
      %1198 = vmatmul.mubr.f32.gmra.mxu0 %v1098
      %v1199 = vpop.f32.mrf.mxu0
      %v1200 = vadd.f32 0.0, %v1199
      %v1201 = vpop.f32.mrf.mxu0
      %1202 = vmatprep.mubr.f32.mxu0 0.0
      %1203 = vmatmul.mubr.f32.gmra.mxu0 %v1101
      %v1204 = vpop.f32.mrf.mxu0
      %v1205 = vadd.f32 0.0, %v1204
      %v1206 = vpop.f32.mrf.mxu0
      %1207 = vdwg.mxu0
      %v1208 = vadd.f32 %v1061, %v1170
      %v1209 = vadd.f32 %v1062, %v1175
      %v1210 = vadd.f32 %v1063, %v1180
      %v1211 = vadd.f32 %v1064, %v1185
      %v1212 = vadd.f32 %v1065, %v1190
      %v1213 = vadd.f32 %v1066, %v1195
      %v1214 = vadd.f32 %v1067, %v1200
      %v1215 = vadd.f32 %v1068, %v1205
      %v1216 = vld [vmem:[#allocation2 + $0x11] sm:$0xff]
      %v1217 = vld [vmem:[#allocation2 + $0x19] sm:$0xff]
      %v1218 = vld [vmem:[#allocation2 + $0x21] sm:$0xff]
      %v1219 = vld [vmem:[#allocation2 + $0x29] sm:$0xff]
      %v1220 = vld [vmem:[#allocation2 + $0x31] sm:$0xff]
      %v1221 = vld [vmem:[#allocation2 + $0x39] sm:$0xff]
      %v1222 = vld [vmem:[#allocation2 + $0x41] sm:$0xff]
      %v1223 = vld [vmem:[#allocation2 + $0x49] sm:$0xff]
      %v1224 = vmul.f32 %v1216, %v466
      %v1225 = vmul.f32 %v1217, %v467
      %v1226 = vmul.f32 %v1218, %v468
      %v1227 = vmul.f32 %v1219, %v469
      %v1228 = vmul.f32 %v1220, %v470
      %v1229 = vmul.f32 %v1221, %v471
      %v1230 = vmul.f32 %v1222, %v472
      %v1231 = vmul.f32 %v1223, %v473
      %s1232 = scalar_lea.vmem %s2, 40
      %v1233 = vld [vmem:[%s1232] sm:$0xff]
      %v1235 = vsel %vm300, %v1224, 0
      %v1238 = vsel %vm300, %v1225, 0
      %v1241 = vsel %vm300, %v1226, 0
      %v1244 = vsel %vm300, %v1227, 0
      %v1247 = vsel %vm300, %v1228, 0
      %v1250 = vsel %vm300, %v1229, 0
      %v1253 = vsel %vm300, %v1230, 0
      %v1256 = vsel %vm300, %v1231, 0
      %1258 = vmatprep.subr.mxu0 0.0
      %1259 = vmatpush1.msra.mxu0 0.0
      %1260 = vmatprep.subr.mxu0 0.0
      %1261 = vmatpush1.msra.mxu0 0.0
      %1262 = vmatprep.subr.mxu0 0.0
      %1263 = vmatpush1.msra.mxu0 0.0
      %1264 = vmatprep.subr.mxu0 0.0
      %1265 = vmatpush1.msra.mxu0 0.0
      %1266 = vmatprep.subr.mxu0 0.0
      %1267 = vmatpush1.msra.mxu0 0.0
      %1268 = vmatprep.subr.mxu0 0.0
      %1269 = vmatpush1.msra.mxu0 0.0
      %1270 = vmatprep.subr.mxu0 0.0
      %1271 = vmatpush1.msra.mxu0 0.0
      %1272 = vmatprep.subr.mxu0 0.0
      %1273 = vmatpush1.msra.mxu0 0.0
      %1274 = vmatprep.subr.mxu0 0.0
      %1275 = vmatpush1.msra.mxu0 0.0
      %1276 = vmatprep.subr.mxu0 0.0
      %1277 = vmatpush1.msra.mxu0 0.0
      %1278 = vmatprep.subr.mxu0 0.0
      %1279 = vmatpush1.msra.mxu0 0.0
      %1280 = vmatprep.subr.mxu0 0.0
      %1281 = vmatpush1.msra.mxu0 0.0
      %1282 = vmatprep.subr.mxu0 0.0
      %1283 = vmatpush1.msra.mxu0 0.0
      %1284 = vmatprep.subr.mxu0 0.0
      %1285 = vmatpush1.msra.mxu0 0.0
      %1286 = vmatprep.subr.mxu0 0.0
      %1287 = vmatpush1.msra.mxu0 0.0
      %1288 = vmatprep.subr.mxu0 0.0
      %1289 = vmatpush1.msra.mxu0 %v1233
      %1290 = vmatprep.subr.mxu0 0.0
      %1291 = vmatpush2.msra.mxu0 0.0
      %1292 = vmatprep.subr.mxu0 0.0
      %1293 = vmatpush2.msra.mxu0 0.0
      %1294 = vmatprep.subr.mxu0 0.0
      %1295 = vmatpush2.msra.mxu0 0.0
      %1296 = vmatprep.subr.mxu0 0.0
      %1297 = vmatpush2.msra.mxu0 0.0
      %1298 = vmatprep.subr.mxu0 0.0
      %1299 = vmatpush2.msra.mxu0 0.0
      %1300 = vmatprep.subr.mxu0 0.0
      %1301 = vmatpush2.msra.mxu0 0.0
      %1302 = vmatprep.subr.mxu0 0.0
      %1303 = vmatpush2.msra.mxu0 0.0
      %1304 = vmatprep.subr.mxu0 0.0
      %1305 = vmatpush2.msra.mxu0 0.0
      %1306 = vmatprep.subr.mxu0 0.0
      %1307 = vmatpush2.msra.mxu0 0.0
      %1308 = vmatprep.subr.mxu0 0.0
      %1309 = vmatpush2.msra.mxu0 0.0
      %1310 = vmatprep.subr.mxu0 0.0
      %1311 = vmatpush2.msra.mxu0 0.0
      %1312 = vmatprep.subr.mxu0 0.0
      %1313 = vmatpush2.msra.mxu0 0.0
      %1314 = vmatprep.subr.mxu0 0.0
      %1315 = vmatpush2.msra.mxu0 0.0
      %1316 = vmatprep.subr.mxu0 0.0
      %1317 = vmatpush2.msra.mxu0 0.0
      %1318 = vmatprep.subr.mxu0 0.0
      %1319 = vmatpush2.msra.mxu0 0.0
      %1320 = vmatprep.subr.mxu0 0.0
      %1321 = vmatpush2.msra.mxu0 0.0
      %1322 = vmatprep.mubr.f32.mxu0 0.0
      %1323 = vmatmul.mubr.f32.gmra.mxu0 %v1235
      %v1324 = vpop.f32.mrf.mxu0
      %v1325 = vadd.f32 0.0, %v1324
      %v1326 = vpop.f32.mrf.mxu0
      %1327 = vmatprep.mubr.f32.mxu0 0.0
      %1328 = vmatmul.mubr.f32.gmra.mxu0 %v1238
      %v1329 = vpop.f32.mrf.mxu0
      %v1330 = vadd.f32 0.0, %v1329
      %v1331 = vpop.f32.mrf.mxu0
      %1332 = vmatprep.mubr.f32.mxu0 0.0
      %1333 = vmatmul.mubr.f32.gmra.mxu0 %v1241
      %v1334 = vpop.f32.mrf.mxu0
      %v1335 = vadd.f32 0.0, %v1334
      %v1336 = vpop.f32.mrf.mxu0
      %1337 = vmatprep.mubr.f32.mxu0 0.0
      %1338 = vmatmul.mubr.f32.gmra.mxu0 %v1244
      %v1339 = vpop.f32.mrf.mxu0
      %v1340 = vadd.f32 0.0, %v1339
      %v1341 = vpop.f32.mrf.mxu0
      %1342 = vmatprep.mubr.f32.mxu0 0.0
      %1343 = vmatmul.mubr.f32.gmra.mxu0 %v1247
      %v1344 = vpop.f32.mrf.mxu0
      %v1345 = vadd.f32 0.0, %v1344
      %v1346 = vpop.f32.mrf.mxu0
      %1347 = vmatprep.mubr.f32.mxu0 0.0
      %1348 = vmatmul.mubr.f32.gmra.mxu0 %v1250
      %v1349 = vpop.f32.mrf.mxu0
      %v1350 = vadd.f32 0.0, %v1349
      %v1351 = vpop.f32.mrf.mxu0
      %1352 = vmatprep.mubr.f32.mxu0 0.0
      %1353 = vmatmul.mubr.f32.gmra.mxu0 %v1253
      %v1354 = vpop.f32.mrf.mxu0
      %v1355 = vadd.f32 0.0, %v1354
      %v1356 = vpop.f32.mrf.mxu0
      %1357 = vmatprep.mubr.f32.mxu0 0.0
      %1358 = vmatmul.mubr.f32.gmra.mxu0 %v1256
      %v1359 = vpop.f32.mrf.mxu0
      %v1360 = vadd.f32 0.0, %v1359
      %v1361 = vpop.f32.mrf.mxu0
      %1362 = vdwg.mxu0
      %v1363 = vadd.f32 %v1208, %v1325
      %v1364 = vadd.f32 %v1209, %v1330
      %v1365 = vadd.f32 %v1210, %v1335
      %v1366 = vadd.f32 %v1211, %v1340
      %v1367 = vadd.f32 %v1212, %v1345
      %v1368 = vadd.f32 %v1213, %v1350
      %v1369 = vadd.f32 %v1214, %v1355
      %v1370 = vadd.f32 %v1215, %v1360
      %v1371 = vld [vmem:[#allocation2 + $0x17] sm:$0xff]
      %v1372 = vld [vmem:[#allocation2 + $0x1f] sm:$0xff]
      %v1373 = vld [vmem:[#allocation2 + $0x27] sm:$0xff]
      %v1374 = vld [vmem:[#allocation2 + $0x2f] sm:$0xff]
      %v1375 = vld [vmem:[#allocation2 + $0x37] sm:$0xff]
      %v1376 = vld [vmem:[#allocation2 + $0x3f] sm:$0xff]
      %v1377 = vld [vmem:[#allocation2 + $0x47] sm:$0xff]
      %v1378 = vld [vmem:[#allocation2 + $0x4f] sm:$0xff]
      %v1379 = vmul.f32 %v1371, %v442
      %v1380 = vmul.f32 %v1372, %v443
      %v1381 = vmul.f32 %v1373, %v444
      %v1382 = vmul.f32 %v1374, %v445
      %v1383 = vmul.f32 %v1375, %v446
      %v1384 = vmul.f32 %v1376, %v447
      %v1385 = vmul.f32 %v1377, %v448
      %v1386 = vmul.f32 %v1378, %v449
      %s1387 = scalar_lea.vmem %s2, 48
      %v1388 = vld [vmem:[%s1387] sm:$0xff]
      %v1390 = vsel %vm300, %v1379, 0
      %v1393 = vsel %vm300, %v1380, 0
      %v1396 = vsel %vm300, %v1381, 0
      %v1399 = vsel %vm300, %v1382, 0
      %v1402 = vsel %vm300, %v1383, 0
      %v1405 = vsel %vm300, %v1384, 0
      %v1408 = vsel %vm300, %v1385, 0
      %v1411 = vsel %vm300, %v1386, 0
      %1413 = vmatprep.subr.mxu0 0.0
      %1414 = vmatpush1.msra.mxu0 0.0
      %1415 = vmatprep.subr.mxu0 0.0
      %1416 = vmatpush1.msra.mxu0 0.0
      %1417 = vmatprep.subr.mxu0 0.0
      %1418 = vmatpush1.msra.mxu0 0.0
      %1419 = vmatprep.subr.mxu0 0.0
      %1420 = vmatpush1.msra.mxu0 0.0
      %1421 = vmatprep.subr.mxu0 0.0
      %1422 = vmatpush1.msra.mxu0 0.0
      %1423 = vmatprep.subr.mxu0 0.0
      %1424 = vmatpush1.msra.mxu0 0.0
      %1425 = vmatprep.subr.mxu0 0.0
      %1426 = vmatpush1.msra.mxu0 0.0
      %1427 = vmatprep.subr.mxu0 0.0
      %1428 = vmatpush1.msra.mxu0 0.0
      %1429 = vmatprep.subr.mxu0 0.0
      %1430 = vmatpush1.msra.mxu0 0.0
      %1431 = vmatprep.subr.mxu0 0.0
      %1432 = vmatpush1.msra.mxu0 0.0
      %1433 = vmatprep.subr.mxu0 0.0
      %1434 = vmatpush1.msra.mxu0 0.0
      %1435 = vmatprep.subr.mxu0 0.0
      %1436 = vmatpush1.msra.mxu0 0.0
      %1437 = vmatprep.subr.mxu0 0.0
      %1438 = vmatpush1.msra.mxu0 0.0
      %1439 = vmatprep.subr.mxu0 0.0
      %1440 = vmatpush1.msra.mxu0 0.0
      %1441 = vmatprep.subr.mxu0 0.0
      %1442 = vmatpush1.msra.mxu0 0.0
      %1443 = vmatprep.subr.mxu0 0.0
      %1444 = vmatpush1.msra.mxu0 %v1388
      %1445 = vmatprep.subr.mxu0 0.0
      %1446 = vmatpush2.msra.mxu0 0.0
      %1447 = vmatprep.subr.mxu0 0.0
      %1448 = vmatpush2.msra.mxu0 0.0
      %1449 = vmatprep.subr.mxu0 0.0
      %1450 = vmatpush2.msra.mxu0 0.0
      %1451 = vmatprep.subr.mxu0 0.0
      %1452 = vmatpush2.msra.mxu0 0.0
      %1453 = vmatprep.subr.mxu0 0.0
      %1454 = vmatpush2.msra.mxu0 0.0
      %1455 = vmatprep.subr.mxu0 0.0
      %1456 = vmatpush2.msra.mxu0 0.0
      %1457 = vmatprep.subr.mxu0 0.0
      %1458 = vmatpush2.msra.mxu0 0.0
      %1459 = vmatprep.subr.mxu0 0.0
      %1460 = vmatpush2.msra.mxu0 0.0
      %1461 = vmatprep.subr.mxu0 0.0
      %1462 = vmatpush2.msra.mxu0 0.0
      %1463 = vmatprep.subr.mxu0 0.0
      %1464 = vmatpush2.msra.mxu0 0.0
      %1465 = vmatprep.subr.mxu0 0.0
      %1466 = vmatpush2.msra.mxu0 0.0
      %1467 = vmatprep.subr.mxu0 0.0
      %1468 = vmatpush2.msra.mxu0 0.0
      %1469 = vmatprep.subr.mxu0 0.0
      %1470 = vmatpush2.msra.mxu0 0.0
      %1471 = vmatprep.subr.mxu0 0.0
      %1472 = vmatpush2.msra.mxu0 0.0
      %1473 = vmatprep.subr.mxu0 0.0
      %1474 = vmatpush2.msra.mxu0 0.0
      %1475 = vmatprep.subr.mxu0 0.0
      %1476 = vmatpush2.msra.mxu0 0.0
      %1477 = vmatprep.mubr.f32.mxu0 0.0
      %1478 = vmatmul.mubr.f32.gmra.mxu0 %v1390
      %v1479 = vpop.f32.mrf.mxu0
      %v1480 = vadd.f32 0.0, %v1479
      %v1481 = vpop.f32.mrf.mxu0
      %1482 = vmatprep.mubr.f32.mxu0 0.0
      %1483 = vmatmul.mubr.f32.gmra.mxu0 %v1393
      %v1484 = vpop.f32.mrf.mxu0
      %v1485 = vadd.f32 0.0, %v1484
      %v1486 = vpop.f32.mrf.mxu0
      %1487 = vmatprep.mubr.f32.mxu0 0.0
      %1488 = vmatmul.mubr.f32.gmra.mxu0 %v1396
      %v1489 = vpop.f32.mrf.mxu0
      %v1490 = vadd.f32 0.0, %v1489
      %v1491 = vpop.f32.mrf.mxu0
      %1492 = vmatprep.mubr.f32.mxu0 0.0
      %1493 = vmatmul.mubr.f32.gmra.mxu0 %v1399
      %v1494 = vpop.f32.mrf.mxu0
      %v1495 = vadd.f32 0.0, %v1494
      %v1496 = vpop.f32.mrf.mxu0
      %1497 = vmatprep.mubr.f32.mxu0 0.0
      %1498 = vmatmul.mubr.f32.gmra.mxu0 %v1402
      %v1499 = vpop.f32.mrf.mxu0
      %v1500 = vadd.f32 0.0, %v1499
      %v1501 = vpop.f32.mrf.mxu0
      %1502 = vmatprep.mubr.f32.mxu0 0.0
      %1503 = vmatmul.mubr.f32.gmra.mxu0 %v1405
      %v1504 = vpop.f32.mrf.mxu0
      %v1505 = vadd.f32 0.0, %v1504
      %v1506 = vpop.f32.mrf.mxu0
      %1507 = vmatprep.mubr.f32.mxu0 0.0
      %1508 = vmatmul.mubr.f32.gmra.mxu0 %v1408
      %v1509 = vpop.f32.mrf.mxu0
      %v1510 = vadd.f32 0.0, %v1509
      %v1511 = vpop.f32.mrf.mxu0
      %1512 = vmatprep.mubr.f32.mxu0 0.0
      %1513 = vmatmul.mubr.f32.gmra.mxu0 %v1411
      %v1514 = vpop.f32.mrf.mxu0
      %v1515 = vadd.f32 0.0, %v1514
      %v1516 = vpop.f32.mrf.mxu0
      %1517 = vdwg.mxu0
      %v1518 = vadd.f32 %v1363, %v1480
      %v1519 = vadd.f32 %v1364, %v1485
      %v1520 = vadd.f32 %v1365, %v1490
      %v1521 = vadd.f32 %v1366, %v1495
      %v1522 = vadd.f32 %v1367, %v1500
      %v1523 = vadd.f32 %v1368, %v1505
      %v1524 = vadd.f32 %v1369, %v1510
      %v1525 = vadd.f32 %v1370, %v1515
      %v1526 = vld [vmem:[#allocation2 + $0x18] sm:$0xff]
      %v1527 = vld [vmem:[#allocation2 + $0x20] sm:$0xff]
      %v1528 = vld [vmem:[#allocation2 + $0x28] sm:$0xff]
      %v1529 = vld [vmem:[#allocation2 + $0x30] sm:$0xff]
      %v1530 = vld [vmem:[#allocation2 + $0x38] sm:$0xff]
      %v1531 = vld [vmem:[#allocation2 + $0x40] sm:$0xff]
      %v1532 = vld [vmem:[#allocation2 + $0x48] sm:$0xff]
      %v1533 = vld [vmem:[#allocation2 + $0x50] sm:$0xff]
      %s1534 = scalar_lea.vmem %s2, 56
      %v1535 = vld [vmem:[%s1534] sm:$0xff]
      %v1537 = vsel %vm300, %v1526, 0
      %v1540 = vsel %vm300, %v1527, 0
      %v1543 = vsel %vm300, %v1528, 0
      %v1546 = vsel %vm300, %v1529, 0
      %v1549 = vsel %vm300, %v1530, 0
      %v1552 = vsel %vm300, %v1531, 0
      %v1555 = vsel %vm300, %v1532, 0
      %v1558 = vsel %vm300, %v1533, 0
      %1560 = vmatprep.subr.mxu0 0.0
      %1561 = vmatpush1.msra.mxu0 0.0
      %1562 = vmatprep.subr.mxu0 0.0
      %1563 = vmatpush1.msra.mxu0 0.0
      %1564 = vmatprep.subr.mxu0 0.0
      %1565 = vmatpush1.msra.mxu0 0.0
      %1566 = vmatprep.subr.mxu0 0.0
      %1567 = vmatpush1.msra.mxu0 0.0
      %1568 = vmatprep.subr.mxu0 0.0
      %1569 = vmatpush1.msra.mxu0 0.0
      %1570 = vmatprep.subr.mxu0 0.0
      %1571 = vmatpush1.msra.mxu0 0.0
      %1572 = vmatprep.subr.mxu0 0.0
      %1573 = vmatpush1.msra.mxu0 0.0
      %1574 = vmatprep.subr.mxu0 0.0
      %1575 = vmatpush1.msra.mxu0 0.0
      %1576 = vmatprep.subr.mxu0 0.0
      %1577 = vmatpush1.msra.mxu0 0.0
      %1578 = vmatprep.subr.mxu0 0.0
      %1579 = vmatpush1.msra.mxu0 0.0
      %1580 = vmatprep.subr.mxu0 0.0
      %1581 = vmatpush1.msra.mxu0 0.0
      %1582 = vmatprep.subr.mxu0 0.0
      %1583 = vmatpush1.msra.mxu0 0.0
      %1584 = vmatprep.subr.mxu0 0.0
      %1585 = vmatpush1.msra.mxu0 0.0
      %1586 = vmatprep.subr.mxu0 0.0
      %1587 = vmatpush1.msra.mxu0 0.0
      %1588 = vmatprep.subr.mxu0 0.0
      %1589 = vmatpush1.msra.mxu0 0.0
      %1590 = vmatprep.subr.mxu0 0.0
      %1591 = vmatpush1.msra.mxu0 %v1535
      %1592 = vmatprep.subr.mxu0 0.0
      %1593 = vmatpush2.msra.mxu0 0.0
      %1594 = vmatprep.subr.mxu0 0.0
      %1595 = vmatpush2.msra.mxu0 0.0
      %1596 = vmatprep.subr.mxu0 0.0
      %1597 = vmatpush2.msra.mxu0 0.0
      %1598 = vmatprep.subr.mxu0 0.0
      %1599 = vmatpush2.msra.mxu0 0.0
      %1600 = vmatprep.subr.mxu0 0.0
      %1601 = vmatpush2.msra.mxu0 0.0
      %1602 = vmatprep.subr.mxu0 0.0
      %1603 = vmatpush2.msra.mxu0 0.0
      %1604 = vmatprep.subr.mxu0 0.0
      %1605 = vmatpush2.msra.mxu0 0.0
      %1606 = vmatprep.subr.mxu0 0.0
      %1607 = vmatpush2.msra.mxu0 0.0
      %1608 = vmatprep.subr.mxu0 0.0
      %1609 = vmatpush2.msra.mxu0 0.0
      %1610 = vmatprep.subr.mxu0 0.0
      %1611 = vmatpush2.msra.mxu0 0.0
      %1612 = vmatprep.subr.mxu0 0.0
      %1613 = vmatpush2.msra.mxu0 0.0
      %1614 = vmatprep.subr.mxu0 0.0
      %1615 = vmatpush2.msra.mxu0 0.0
      %1616 = vmatprep.subr.mxu0 0.0
      %1617 = vmatpush2.msra.mxu0 0.0
      %1618 = vmatprep.subr.mxu0 0.0
      %1619 = vmatpush2.msra.mxu0 0.0
      %1620 = vmatprep.subr.mxu0 0.0
      %1621 = vmatpush2.msra.mxu0 0.0
      %1622 = vmatprep.subr.mxu0 0.0
      %1623 = vmatpush2.msra.mxu0 0.0
      %1624 = vmatprep.mubr.f32.mxu0 0.0
      %1625 = vmatmul.mubr.f32.gmra.mxu0 %v1537
      %v1626 = vpop.f32.mrf.mxu0
      %v1627 = vadd.f32 0.0, %v1626
      %v1628 = vpop.f32.mrf.mxu0
      %1629 = vmatprep.mubr.f32.mxu0 0.0
      %1630 = vmatmul.mubr.f32.gmra.mxu0 %v1540
      %v1631 = vpop.f32.mrf.mxu0
      %v1632 = vadd.f32 0.0, %v1631
      %v1633 = vpop.f32.mrf.mxu0
      %1634 = vmatprep.mubr.f32.mxu0 0.0
      %1635 = vmatmul.mubr.f32.gmra.mxu0 %v1543
      %v1636 = vpop.f32.mrf.mxu0
      %v1637 = vadd.f32 0.0, %v1636
      %v1638 = vpop.f32.mrf.mxu0
      %1639 = vmatprep.mubr.f32.mxu0 0.0
      %1640 = vmatmul.mubr.f32.gmra.mxu0 %v1546
      %v1641 = vpop.f32.mrf.mxu0
      %v1642 = vadd.f32 0.0, %v1641
      %v1643 = vpop.f32.mrf.mxu0
      %1644 = vmatprep.mubr.f32.mxu0 0.0
      %1645 = vmatmul.mubr.f32.gmra.mxu0 %v1549
      %v1646 = vpop.f32.mrf.mxu0
      %v1647 = vadd.f32 0.0, %v1646
      %v1648 = vpop.f32.mrf.mxu0
      %1649 = vmatprep.mubr.f32.mxu0 0.0
      %1650 = vmatmul.mubr.f32.gmra.mxu0 %v1552
      %v1651 = vpop.f32.mrf.mxu0
      %v1652 = vadd.f32 0.0, %v1651
      %v1653 = vpop.f32.mrf.mxu0
      %1654 = vmatprep.mubr.f32.mxu0 0.0
      %1655 = vmatmul.mubr.f32.gmra.mxu0 %v1555
      %v1656 = vpop.f32.mrf.mxu0
      %v1657 = vadd.f32 0.0, %v1656
      %v1658 = vpop.f32.mrf.mxu0
      %1659 = vmatprep.mubr.f32.mxu0 0.0
      %1660 = vmatmul.mubr.f32.gmra.mxu0 %v1558
      %v1661 = vpop.f32.mrf.mxu0
      %v1662 = vadd.f32 0.0, %v1661
      %v1663 = vpop.f32.mrf.mxu0
      %1664 = vdwg.mxu0
      %v1665 = vadd.f32 %v1518, %v1627
      %v1666 = vadd.f32 %v1519, %v1632
      %v1667 = vadd.f32 %v1520, %v1637
      %v1668 = vadd.f32 %v1521, %v1642
      %v1669 = vadd.f32 %v1522, %v1647
      %v1670 = vadd.f32 %v1523, %v1652
      %v1671 = vadd.f32 %v1524, %v1657
      %v1672 = vadd.f32 %v1525, %v1662
      %v1673 = vld [vmem:[#allocation2 + $0x19] sm:$0xff]
      %v1674 = vld [vmem:[#allocation2 + $0x21] sm:$0xff]
      %v1675 = vld [vmem:[#allocation2 + $0x29] sm:$0xff]
      %v1676 = vld [vmem:[#allocation2 + $0x31] sm:$0xff]
      %v1677 = vld [vmem:[#allocation2 + $0x39] sm:$0xff]
      %v1678 = vld [vmem:[#allocation2 + $0x41] sm:$0xff]
      %v1679 = vld [vmem:[#allocation2 + $0x49] sm:$0xff]
      %v1680 = vld [vmem:[#allocation2 + $0x51] sm:$0xff]
      %v1681 = vmul.f32 %v1673, %v466
      %v1682 = vmul.f32 %v1674, %v467
      %v1683 = vmul.f32 %v1675, %v468
      %v1684 = vmul.f32 %v1676, %v469
      %v1685 = vmul.f32 %v1677, %v470
      %v1686 = vmul.f32 %v1678, %v471
      %v1687 = vmul.f32 %v1679, %v472
      %v1688 = vmul.f32 %v1680, %v473
      %s1689 = scalar_lea.vmem %s2, 64
      %v1690 = vld [vmem:[%s1689] sm:$0xff]
      %v1692 = vsel %vm300, %v1681, 0
      %v1695 = vsel %vm300, %v1682, 0
      %v1698 = vsel %vm300, %v1683, 0
      %v1701 = vsel %vm300, %v1684, 0
      %v1704 = vsel %vm300, %v1685, 0
      %v1707 = vsel %vm300, %v1686, 0
      %v1710 = vsel %vm300, %v1687, 0
      %v1713 = vsel %vm300, %v1688, 0
      %1715 = vmatprep.subr.mxu0 0.0
      %1716 = vmatpush1.msra.mxu0 0.0
      %1717 = vmatprep.subr.mxu0 0.0
      %1718 = vmatpush1.msra.mxu0 0.0
      %1719 = vmatprep.subr.mxu0 0.0
      %1720 = vmatpush1.msra.mxu0 0.0
      %1721 = vmatprep.subr.mxu0 0.0
      %1722 = vmatpush1.msra.mxu0 0.0
      %1723 = vmatprep.subr.mxu0 0.0
      %1724 = vmatpush1.msra.mxu0 0.0
      %1725 = vmatprep.subr.mxu0 0.0
      %1726 = vmatpush1.msra.mxu0 0.0
      %1727 = vmatprep.subr.mxu0 0.0
      %1728 = vmatpush1.msra.mxu0 0.0
      %1729 = vmatprep.subr.mxu0 0.0
      %1730 = vmatpush1.msra.mxu0 0.0
      %1731 = vmatprep.subr.mxu0 0.0
      %1732 = vmatpush1.msra.mxu0 0.0
      %1733 = vmatprep.subr.mxu0 0.0
      %1734 = vmatpush1.msra.mxu0 0.0
      %1735 = vmatprep.subr.mxu0 0.0
      %1736 = vmatpush1.msra.mxu0 0.0
      %1737 = vmatprep.subr.mxu0 0.0
      %1738 = vmatpush1.msra.mxu0 0.0
      %1739 = vmatprep.subr.mxu0 0.0
      %1740 = vmatpush1.msra.mxu0 0.0
      %1741 = vmatprep.subr.mxu0 0.0
      %1742 = vmatpush1.msra.mxu0 0.0
      %1743 = vmatprep.subr.mxu0 0.0
      %1744 = vmatpush1.msra.mxu0 0.0
      %1745 = vmatprep.subr.mxu0 0.0
      %1746 = vmatpush1.msra.mxu0 %v1690
      %1747 = vmatprep.subr.mxu0 0.0
      %1748 = vmatpush2.msra.mxu0 0.0
      %1749 = vmatprep.subr.mxu0 0.0
      %1750 = vmatpush2.msra.mxu0 0.0
      %1751 = vmatprep.subr.mxu0 0.0
      %1752 = vmatpush2.msra.mxu0 0.0
      %1753 = vmatprep.subr.mxu0 0.0
      %1754 = vmatpush2.msra.mxu0 0.0
      %1755 = vmatprep.subr.mxu0 0.0
      %1756 = vmatpush2.msra.mxu0 0.0
      %1757 = vmatprep.subr.mxu0 0.0
      %1758 = vmatpush2.msra.mxu0 0.0
      %1759 = vmatprep.subr.mxu0 0.0
      %1760 = vmatpush2.msra.mxu0 0.0
      %1761 = vmatprep.subr.mxu0 0.0
      %1762 = vmatpush2.msra.mxu0 0.0
      %1763 = vmatprep.subr.mxu0 0.0
      %1764 = vmatpush2.msra.mxu0 0.0
      %1765 = vmatprep.subr.mxu0 0.0
      %1766 = vmatpush2.msra.mxu0 0.0
      %1767 = vmatprep.subr.mxu0 0.0
      %1768 = vmatpush2.msra.mxu0 0.0
      %1769 = vmatprep.subr.mxu0 0.0
      %1770 = vmatpush2.msra.mxu0 0.0
      %1771 = vmatprep.subr.mxu0 0.0
      %1772 = vmatpush2.msra.mxu0 0.0
      %1773 = vmatprep.subr.mxu0 0.0
      %1774 = vmatpush2.msra.mxu0 0.0
      %1775 = vmatprep.subr.mxu0 0.0
      %1776 = vmatpush2.msra.mxu0 0.0
      %1777 = vmatprep.subr.mxu0 0.0
      %1778 = vmatpush2.msra.mxu0 0.0
      %1779 = vmatprep.mubr.f32.mxu0 0.0
      %1780 = vmatmul.mubr.f32.gmra.mxu0 %v1692
      %v1781 = vpop.f32.mrf.mxu0
      %v1782 = vadd.f32 0.0, %v1781
      %v1783 = vpop.f32.mrf.mxu0
      %1784 = vmatprep.mubr.f32.mxu0 0.0
      %1785 = vmatmul.mubr.f32.gmra.mxu0 %v1695
      %v1786 = vpop.f32.mrf.mxu0
      %v1787 = vadd.f32 0.0, %v1786
      %v1788 = vpop.f32.mrf.mxu0
      %1789 = vmatprep.mubr.f32.mxu0 0.0
      %1790 = vmatmul.mubr.f32.gmra.mxu0 %v1698
      %v1791 = vpop.f32.mrf.mxu0
      %v1792 = vadd.f32 0.0, %v1791
      %v1793 = vpop.f32.mrf.mxu0
      %1794 = vmatprep.mubr.f32.mxu0 0.0
      %1795 = vmatmul.mubr.f32.gmra.mxu0 %v1701
      %v1796 = vpop.f32.mrf.mxu0
      %v1797 = vadd.f32 0.0, %v1796
      %v1798 = vpop.f32.mrf.mxu0
      %1799 = vmatprep.mubr.f32.mxu0 0.0
      %1800 = vmatmul.mubr.f32.gmra.mxu0 %v1704
      %v1801 = vpop.f32.mrf.mxu0
      %v1802 = vadd.f32 0.0, %v1801
      %v1803 = vpop.f32.mrf.mxu0
      %1804 = vmatprep.mubr.f32.mxu0 0.0
      %1805 = vmatmul.mubr.f32.gmra.mxu0 %v1707
      %v1806 = vpop.f32.mrf.mxu0
      %v1807 = vadd.f32 0.0, %v1806
      %v1808 = vpop.f32.mrf.mxu0
      %1809 = vmatprep.mubr.f32.mxu0 0.0
      %1810 = vmatmul.mubr.f32.gmra.mxu0 %v1710
      %v1811 = vpop.f32.mrf.mxu0
      %v1812 = vadd.f32 0.0, %v1811
      %v1813 = vpop.f32.mrf.mxu0
      %1814 = vmatprep.mubr.f32.mxu0 0.0
      %1815 = vmatmul.mubr.f32.gmra.mxu0 %v1713
      %v1816 = vpop.f32.mrf.mxu0
      %v1817 = vadd.f32 0.0, %v1816
      %v1818 = vpop.f32.mrf.mxu0
      %1819 = vdwg.mxu0
      %v1820 = vadd.f32 %v1665, %v1782
      %v1821 = vadd.f32 %v1666, %v1787
      %v1822 = vadd.f32 %v1667, %v1792
      %v1823 = vadd.f32 %v1668, %v1797
      %v1824 = vadd.f32 %v1669, %v1802
      %v1825 = vadd.f32 %v1670, %v1807
      %v1826 = vadd.f32 %v1671, %v1812
      %v1827 = vadd.f32 %v1672, %v1817
      %1828 = vst.msk [vmem:[%s235] sm:$0xff] %vm300, %v1820
      %1829 = vst.msk [vmem:[%s235 + $0x8] sm:$0xff] %vm300, %v1821
      %1830 = vst.msk [vmem:[%s235 + $0x10] sm:$0xff] %vm300, %v1822
      %1831 = vst.msk [vmem:[%s235 + $0x18] sm:$0xff] %vm300, %v1823
      %1832 = vst.msk [vmem:[%s235 + $0x20] sm:$0xff] %vm300, %v1824
      %1833 = vst.msk [vmem:[%s235 + $0x28] sm:$0xff] %vm300, %v1825
      %1834 = vst.msk [vmem:[%s235 + $0x30] sm:$0xff] %vm300, %v1826
      %1835 = vst.msk [vmem:[%s235 + $0x38] sm:$0xff] %vm300, %v1827
      %v1836 = vsel %vm300, %v1820, 0.0
      %v1837 = vsel %vm300, %v1821, 0.0
      %v1838 = vadd.f32 %v1836, %v1837
      %v1839 = vsel %vm300, %v1822, 0.0
      %v1840 = vadd.f32 %v1838, %v1839
      %v1841 = vsel %vm300, %v1823, 0.0
      %v1842 = vadd.f32 %v1840, %v1841
      %v1843 = vsel %vm300, %v1824, 0.0
      %v1844 = vadd.f32 %v1842, %v1843
      %v1845 = vsel %vm300, %v1825, 0.0
      %v1846 = vadd.f32 %v1844, %v1845
      %v1847 = vsel %vm300, %v1826, 0.0
      %v1848 = vadd.f32 %v1846, %v1847
      %v1849 = vsel %vm300, %v1827, 0.0
      %v1850 = vadd.f32 %v1848, %v1849
      %v1851 = vrot.slane %v1850, 4
      %v1852 = vadd.f32 %v1850, %v1851
      %v1853 = vrot.slane %v1852, 2
      %v1854 = vadd.f32 %v1852, %v1853
      %v1855 = vrot.slane %v1854, 1
      %v1856 = vadd.f32 %v1854, %v1855
      %vm1857 = vcmask 57344
      %1858 = vst.msk [vmem:[%s238] sm:$0x1] %vm1857, %v1856
      %v1859 = vmul.f32 %v1820, %v1820
      %v1860 = vmul.f32 %v1821, %v1821
      %v1861 = vmul.f32 %v1822, %v1822
      %v1862 = vmul.f32 %v1823, %v1823
      %v1863 = vmul.f32 %v1824, %v1824
      %v1864 = vmul.f32 %v1825, %v1825
      %v1865 = vmul.f32 %v1826, %v1826
      %v1866 = vmul.f32 %v1827, %v1827
      %v1867 = vsel %vm300, %v1859, 0.0
      %v1868 = vsel %vm300, %v1860, 0.0
      %v1869 = vadd.f32 %v1867, %v1868
      %v1870 = vsel %vm300, %v1861, 0.0
      %v1871 = vadd.f32 %v1869, %v1870
      %v1872 = vsel %vm300, %v1862, 0.0
      %v1873 = vadd.f32 %v1871, %v1872
      %v1874 = vsel %vm300, %v1863, 0.0
      %v1875 = vadd.f32 %v1873, %v1874
      %v1876 = vsel %vm300, %v1864, 0.0
      %v1877 = vadd.f32 %v1875, %v1876
      %v1878 = vsel %vm300, %v1865, 0.0
      %v1879 = vadd.f32 %v1877, %v1878
      %v1880 = vsel %vm300, %v1866, 0.0
      %v1881 = vadd.f32 %v1879, %v1880
      %v1882 = vrot.slane %v1881, 4
      %v1883 = vadd.f32 %v1881, %v1882
      %v1884 = vrot.slane %v1883, 2
      %v1885 = vadd.f32 %v1883, %v1884
      %v1886 = vrot.slane %v1885, 1
      %v1887 = vadd.f32 %v1885, %v1886
      %1888 = vst.msk [vmem:[%s241] sm:$0x1] %vm1857, %v1887
      %p1889 = scmp.lt.s32.totalorder %s17, 1
      %s1890 = scalar_select %p1889, %s17, 1
      %s1891 = smul.addr %s1890, 8
      %s1892 = smul.addr %s1891, 8
      %s1893 = scalar_lea.vmem %s3, %s1892
      %p1894 = scmp.lt.s32.totalorder %s17, 1
      %s1895 = scalar_select %p1894, %s17, 1
      %s1896 = scalar_lea.vmem %s4, %s1895
      %p1897 = scmp.lt.s32.totalorder %s17, 1
      %s1898 = scalar_select %p1897, %s17, 1
      %s1899 = scalar_lea.vmem %s5, %s1898
      // Predicated region
      $region33: #{down_forward.4} parent=31 // pred_check
        %p1900 = pneg %p103
      $region34: #{down_forward.4} parent=31 // pred_check_branch
        %1902 = sbr.rel (%p1900) target = $region36
      $region35: #{down_forward.4} parent=31 // pred_region
        _
      $region36: #{down_forward.4} parent=31 // pred_fallthru
        _
      // Predicated region
      $region37: #{down_forward.4} parent=31 // pred_check
        %p1903 = pneg %p129
      $region38: #{down_forward.4} parent=31 // pred_check_branch
        %1905 = sbr.rel (%p1903) target = $region40
      $region39: #{down_forward.4} parent=31 // pred_region
        _
      $region40: #{down_forward.4} parent=31 // pred_fallthru
        _
      // Predicated region
      $region41: #{down_forward.4} parent=31 // pred_check
        %p1906 = pneg %p155
      $region42: #{down_forward.4} parent=31 // pred_check_branch
        %1908 = sbr.rel (%p1906) target = $region44
      $region43: #{down_forward.4} parent=31 // pred_region
        _
      $region44: #{down_forward.4} parent=31 // pred_fallthru
        _
    $region32: #{down_forward.4} parent=5 // pred_fallthru
      _
    %p1909 = scmp.le.s32.totalorder 2, %s12
    // Predicated region
    $region45: #{down_forward.4} parent=5 // pred_check
      %p1910 = pneg %p1909
    $region46: #{down_forward.4} parent=5 // pred_check_branch
      %1912 = sbr.rel (%p1910) target = $region48
    $region47: #{down_forward.4} parent=5 // pred_region
      %s1913 = ssub.s32 %s12, 2
      // Predicated region
      $region49: #{down_forward.4} parent=47 // pred_check
        %p1914 = pneg %p109
      $region50: #{down_forward.4} parent=47 // pred_check_branch
        %1916 = sbr.rel (%p1914) target = $region52
      $region51: #{down_forward.4} parent=47 // pred_region
        %p1917 = scmp.lt.s32.totalorder %s18, 1
        %s1918 = scalar_select %p1917, %s18, 1
        %s1919 = smul.addr %s1918, 8
        %s1920 = smul.addr %s1919, 8
        %s1921 = scalar_lea.vmem %s3, %s1920
      $region52: #{down_forward.4} parent=47 // pred_fallthru
        _
      // Predicated region
      $region53: #{down_forward.4} parent=47 // pred_check
        %p1922 = pneg %p135
      $region54: #{down_forward.4} parent=47 // pred_check_branch
        %1924 = sbr.rel (%p1922) target = $region56
      $region55: #{down_forward.4} parent=47 // pred_region
        %p1925 = scmp.lt.s32.totalorder %s18, 1
        %s1926 = scalar_select %p1925, %s18, 1
        %s1927 = scalar_lea.vmem %s4, %s1926
      $region56: #{down_forward.4} parent=47 // pred_fallthru
        _
      // Predicated region
      $region57: #{down_forward.4} parent=47 // pred_check
        %p1928 = pneg %p161
      $region58: #{down_forward.4} parent=47 // pred_check_branch
        %1930 = sbr.rel (%p1928) target = $region60
      $region59: #{down_forward.4} parent=47 // pred_region
        %p1931 = scmp.lt.s32.totalorder %s18, 1
        %s1932 = scalar_select %p1931, %s18, 1
        %s1933 = scalar_lea.vmem %s5, %s1932
      $region60: #{down_forward.4} parent=47 // pred_fallthru
        _
    $region48: #{down_forward.4} parent=5 // pred_fallthru
      _
  $region6: #{down_forward.4} parent=0 // loop_footer
    %s16 = sadd.s32 1, %s12
  $region7: #{down_forward.4} parent=0 // loop_footer_branch
    %11 = sbr.rel target = $region3
  $region8: #{down_forward.4} parent=0 // loop_exit
    _

// kernel: down_forward.3
$region0: #{down_forward.3}
  #allocation0 [shape = 'u32[]', space=smem, size = 0x4, offset = 0x4, fixed_abs, tag = 'smem constant byte address 0x4 - core index']
  #allocation1 [shape = 'u32[144,128]{1,0:T(1,128)}', space=vmem, size = 0x12000, scoped, tag = 'internal scratch']
  #allocation2 [shape = 'f32[96,4]{1,0:T(8,128)}', space=vmem, size = 0xc000, scoped, tag = 'scratch operand']
  %s0 = inlined_call_operand.vmem [shape: f32[2,64,16], index: 0, kind: input, shape index: {}]
  %s1 = inlined_call_operand.vmem [shape: f32[16,4], index: 1, kind: input, shape index: {}]
  %s2 = inlined_call_operand.vmem [shape: f32[1,4], index: 2, kind: input, shape index: {}]
  %s3 = inlined_call_operand.vmem [shape: f32[9,4,8], index: 3, kind: input, shape index: {}]
  %s4 = inlined_call_operand.vmem [shape: f32[2,64,8], index: 4, kind: output, shape index: {0}]
  %s5 = inlined_call_operand.vmem [shape: f32[2,1,8], index: 5, kind: output, shape index: {1}]
  %s6 = inlined_call_operand.vmem [shape: f32[2,1,8], index: 6, kind: output, shape index: {2}]
  %7 = xla_tuple %s4, %s5, %s6
  %s8 = sld [smem:[#allocation0]]
  $region65: #{down_forward.3} parent=0
    _
  %s10 = ssub.s32 1, %s8
  %s11 = scalar_select 0, %s10, %s8
  loop: start=0, step=1, limit=4
  $region2: #{down_forward.3} parent=0 // loop_pre_header
    _
  $region3: #{down_forward.3} parent=0 // loop_header
    %s13 = sphi 0, %s17
    %p14 = scmp.ge.s32.totalorder %s13, 4
    %s23 = sphi 0, %s25
    %s26 = sphi 0, %s23
    %s27 = sphi 0, %s26
    %s43 = sphi 0, %s27
    %s47 = sphi 0, %s47
    %s49 = sphi 0, %s47
    %s50 = sphi 0, %s49
    %s64 = sphi 0, %s50
    %s68 = sphi 0, %s68
    %s70 = sphi 0, %s68
    %s71 = sphi 0, %s70
    %s85 = sphi 0, %s71
    %s89 = sphi 0, %s89
    %s91 = sphi 0, %s89
    %s92 = sphi 0, %s91
    %s106 = sphi 0, %s92
    %s112 = sphi 0, %s114
    %s115 = sphi 0, %s112
    %s116 = sphi 0, %s115
    %s132 = sphi 0, %s116
    %s138 = sphi 0, %s140
    %s141 = sphi 0, %s138
    %s142 = sphi 0, %s141
    %s158 = sphi 0, %s142
    %s164 = sphi 0, %s166
    %s167 = sphi 0, %s164
    %s168 = sphi 0, %s167
    %s184 = sphi 0, %s168
  $region4: #{down_forward.3} parent=0 // loop_header_branch
    %16 = sbr.rel (%p14) target = $region8
  $region5: #{down_forward.3} parent=0 // loop_body
    %s18 = ssub.s32 %s13, 1
    %s19 = ssub.s32 %s13, 2
    %s20 = sadd.s32 %s13, 1
    %s21 = ssub.s32 %s13, %s20
    %p22 = scmp.eq.s32.totalorder %s21, 0
    %s24 = sadd.s32 %s23, 1
    %s25 = scalar_select %p22, %s23, %s24
    %p28 = pneg %p22
    %p29 = scmp.eq.s32.totalorder %s13, 1
    %p30 = por %p28, %p29
    %p31 = scmp.ne.s32.totalorder %s23, %s26
    %p32 = scmp.eq.s32.totalorder %s13, 0
    %p33 = por %p31, %p32
    %p34 = scmp.ne.s32.totalorder %s23, %s26
    %p35 = scmp.eq.s32.totalorder %s18, 1
    %p36 = por %p34, %p35
    %p37 = scmp.ne.s32.totalorder %s26, %s27
    %p38 = scmp.eq.s32.totalorder %s18, 0
    %p39 = por %p37, %p38
    %p40 = scmp.ne.s32.totalorder %s26, %s27
    %p41 = scmp.eq.s32.totalorder %s19, 1
    %p42 = por %p40, %p41
    %p44 = scmp.ne.s32.totalorder %s27, %s43
    %p45 = scmp.eq.s32.totalorder %s19, 0
    %p46 = por %p44, %p45
    %s48 = sadd.s32 %s47, 1
    %p51 = scmp.eq.s32.totalorder %s13, 1
    %p52 = scmp.ne.s32.totalorder %s47, %s49
    %p53 = scmp.eq.s32.totalorder %s13, 0
    %p54 = por %p52, %p53
    %p55 = scmp.ne.s32.totalorder %s47, %s49
    %p56 = scmp.eq.s32.totalorder %s18, 1
    %p57 = por %p55, %p56
    %p58 = scmp.ne.s32.totalorder %s49, %s50
    %p59 = scmp.eq.s32.totalorder %s18, 0
    %p60 = por %p58, %p59
    %p61 = scmp.ne.s32.totalorder %s49, %s50
    %p62 = scmp.eq.s32.totalorder %s19, 1
    %p63 = por %p61, %p62
    %p65 = scmp.ne.s32.totalorder %s50, %s64
    %p66 = scmp.eq.s32.totalorder %s19, 0
    %p67 = por %p65, %p66
    %s69 = sadd.s32 %s68, 1
    %p72 = scmp.eq.s32.totalorder %s13, 1
    %p73 = scmp.ne.s32.totalorder %s68, %s70
    %p74 = scmp.eq.s32.totalorder %s13, 0
    %p75 = por %p73, %p74
    %p76 = scmp.ne.s32.totalorder %s68, %s70
    %p77 = scmp.eq.s32.totalorder %s18, 1
    %p78 = por %p76, %p77
    %p79 = scmp.ne.s32.totalorder %s70, %s71
    %p80 = scmp.eq.s32.totalorder %s18, 0
    %p81 = por %p79, %p80
    %p82 = scmp.ne.s32.totalorder %s70, %s71
    %p83 = scmp.eq.s32.totalorder %s19, 1
    %p84 = por %p82, %p83
    %p86 = scmp.ne.s32.totalorder %s71, %s85
    %p87 = scmp.eq.s32.totalorder %s19, 0
    %p88 = por %p86, %p87
    %s90 = sadd.s32 %s89, 1
    %p93 = scmp.eq.s32.totalorder %s13, 1
    %p94 = scmp.ne.s32.totalorder %s89, %s91
    %p95 = scmp.eq.s32.totalorder %s13, 0
    %p96 = por %p94, %p95
    %p97 = scmp.ne.s32.totalorder %s89, %s91
    %p98 = scmp.eq.s32.totalorder %s18, 1
    %p99 = por %p97, %p98
    %p100 = scmp.ne.s32.totalorder %s91, %s92
    %p101 = scmp.eq.s32.totalorder %s18, 0
    %p102 = por %p100, %p101
    %p103 = scmp.ne.s32.totalorder %s91, %s92
    %p104 = scmp.eq.s32.totalorder %s19, 1
    %p105 = por %p103, %p104
    %p107 = scmp.ne.s32.totalorder %s92, %s106
    %p108 = scmp.eq.s32.totalorder %s19, 0
    %p109 = por %p107, %p108
    %s110 = ssub.s32 %s13, %s20
    %p111 = scmp.eq.s32.totalorder %s110, 0
    %s113 = sadd.s32 %s112, 1
    %s114 = scalar_select %p111, %s112, %s113
    %p117 = pneg %p111
    %p118 = scmp.eq.s32.totalorder %s13, 1
    %p119 = por %p117, %p118
    %p120 = scmp.ne.s32.totalorder %s112, %s115
    %p121 = scmp.eq.s32.totalorder %s13, 0
    %p122 = por %p120, %p121
    %p123 = scmp.ne.s32.totalorder %s112, %s115
    %p124 = scmp.eq.s32.totalorder %s18, 1
    %p125 = por %p123, %p124
    %p126 = scmp.ne.s32.totalorder %s115, %s116
    %p127 = scmp.eq.s32.totalorder %s18, 0
    %p128 = por %p126, %p127
    %p129 = scmp.ne.s32.totalorder %s115, %s116
    %p130 = scmp.eq.s32.totalorder %s19, 1
    %p131 = por %p129, %p130
    %p133 = scmp.ne.s32.totalorder %s116, %s132
    %p134 = scmp.eq.s32.totalorder %s19, 0
    %p135 = por %p133, %p134
    %s136 = ssub.s32 %s13, %s20
    %p137 = scmp.eq.s32.totalorder %s136, 0
    %s139 = sadd.s32 %s138, 1
    %s140 = scalar_select %p137, %s138, %s139
    %p143 = pneg %p137
    %p144 = scmp.eq.s32.totalorder %s13, 1
    %p145 = por %p143, %p144
    %p146 = scmp.ne.s32.totalorder %s138, %s141
    %p147 = scmp.eq.s32.totalorder %s13, 0
    %p148 = por %p146, %p147
    %p149 = scmp.ne.s32.totalorder %s138, %s141
    %p150 = scmp.eq.s32.totalorder %s18, 1
    %p151 = por %p149, %p150
    %p152 = scmp.ne.s32.totalorder %s141, %s142
    %p153 = scmp.eq.s32.totalorder %s18, 0
    %p154 = por %p152, %p153
    %p155 = scmp.ne.s32.totalorder %s141, %s142
    %p156 = scmp.eq.s32.totalorder %s19, 1
    %p157 = por %p155, %p156
    %p159 = scmp.ne.s32.totalorder %s142, %s158
    %p160 = scmp.eq.s32.totalorder %s19, 0
    %p161 = por %p159, %p160
    %s162 = ssub.s32 %s13, %s20
    %p163 = scmp.eq.s32.totalorder %s162, 0
    %s165 = sadd.s32 %s164, 1
    %s166 = scalar_select %p163, %s164, %s165
    %p169 = pneg %p163
    %p170 = scmp.eq.s32.totalorder %s13, 1
    %p171 = por %p169, %p170
    %p172 = scmp.ne.s32.totalorder %s164, %s167
    %p173 = scmp.eq.s32.totalorder %s13, 0
    %p174 = por %p172, %p173
    %p175 = scmp.ne.s32.totalorder %s164, %s167
    %p176 = scmp.eq.s32.totalorder %s18, 1
    %p177 = por %p175, %p176
    %p178 = scmp.ne.s32.totalorder %s167, %s168
    %p179 = scmp.eq.s32.totalorder %s18, 0
    %p180 = por %p178, %p179
    %p181 = scmp.ne.s32.totalorder %s167, %s168
    %p182 = scmp.eq.s32.totalorder %s19, 1
    %p183 = por %p181, %p182
    %p185 = scmp.ne.s32.totalorder %s168, %s184
    %p186 = scmp.eq.s32.totalorder %s19, 0
    %p187 = por %p185, %p186
    %p188 = scmp.le.s32.totalorder 1, %s13
    %p189 = scmp.lt.s32.totalorder %s13, 3
    %p190 = pnand %p188, %p189
    %p191 = pneg %p190
    // Predicated region
    $region9: #{down_forward.3} parent=5 // pred_check
      _
    $region10: #{down_forward.3} parent=5 // pred_check_branch
      %193 = sbr.rel (%p190) target = $region12
    $region11: #{down_forward.3} parent=5 // pred_region
      %s194 = ssub.s32 %s13, 1
      // Predicated region
      $region13: #{down_forward.3} parent=11 // pred_check
        %p195 = pneg %p60
      $region14: #{down_forward.3} parent=11 // pred_check_branch
        %197 = sbr.rel (%p195) target = $region16
      $region15: #{down_forward.3} parent=11 // pred_region
        _
      $region16: #{down_forward.3} parent=11 // pred_fallthru
        _
      // Predicated region
      $region17: #{down_forward.3} parent=11 // pred_check
        %p198 = pneg %p81
      $region18: #{down_forward.3} parent=11 // pred_check_branch
        %200 = sbr.rel (%p198) target = $region20
      $region19: #{down_forward.3} parent=11 // pred_region
        _
      $region20: #{down_forward.3} parent=11 // pred_fallthru
        _
      // Predicated region
      $region21: #{down_forward.3} parent=11 // pred_check
        %p201 = pneg %p102
      $region22: #{down_forward.3} parent=11 // pred_check_branch
        %203 = sbr.rel (%p201) target = $region24
      $region23: #{down_forward.3} parent=11 // pred_region
        _
      $region24: #{down_forward.3} parent=11 // pred_fallthru
        _
    $region12: #{down_forward.3} parent=5 // pred_fallthru
      _
    %p204 = scmp.lt.s32.totalorder %s13, 2
    // Predicated region
    $region25: #{down_forward.3} parent=5 // pred_check
      %p205 = pneg %p204
    $region26: #{down_forward.3} parent=5 // pred_check_branch
      %207 = sbr.rel (%p205) target = $region28
    $region27: #{down_forward.3} parent=5 // pred_region
      // Predicated region
      $region29: #{down_forward.3} parent=27 // pred_check
        %p208 = pneg %p33
      $region30: #{down_forward.3} parent=27 // pred_check_branch
        %210 = sbr.rel (%p208) target = $region32
      $region31: #{down_forward.3} parent=27 // pred_region
        %p211 = scmp.lt.s32.totalorder %s13, 1
        %s212 = scalar_select %p211, %s13, 1
        %s213 = smul.addr %s212, 8
        %s214 = smul.addr %s213, 8
        %s215 = scalar_lea.vmem %s0, %s214
      $region32: #{down_forward.3} parent=27 // pred_fallthru
        _
    $region28: #{down_forward.3} parent=5 // pred_fallthru
      _
    %p216 = scmp.le.s32.totalorder 1, %s13
    %p217 = scmp.lt.s32.totalorder %s13, 3
    %p218 = pnand %p216, %p217
    %p219 = pneg %p218
    // Predicated region
    $region33: #{down_forward.3} parent=5 // pred_check
      _
    $region34: #{down_forward.3} parent=5 // pred_check_branch
      %221 = sbr.rel (%p218) target = $region36
    $region35: #{down_forward.3} parent=5 // pred_region
      %s222 = ssub.s32 %s13, 1
      %p223 = scmp.lt.s32.totalorder %s18, 1
      %s224 = scalar_select %p223, %s18, 1
      %s225 = smul.addr %s224, 8
      %s226 = smul.addr %s225, 8
      %s227 = scalar_lea.vmem %s0, %s226
      %p228 = pneg %p39
      %p229 = pneg %p36
      %p230 = pneg %p60
      %p231 = pneg %p57
      %p232 = pneg %p81
      %p233 = pneg %p78
      %p234 = pneg %p102
      %p235 = pneg %p99
      %p236 = pneg %p128
      %p237 = pneg %p125
      %p238 = scmp.lt.s32.totalorder %s18, 1
      %s239 = scalar_select %p238, %s18, 1
      %s240 = smul.addr %s239, 8
      %s241 = smul.addr %s240, 8
      %s242 = scalar_lea.vmem %s4, %s241
      %p243 = pneg %p154
      %p244 = pneg %p151
      %p245 = scmp.lt.s32.totalorder %s18, 1
      %s246 = scalar_select %p245, %s18, 1
      %s247 = scalar_lea.vmem %s5, %s246
      %p248 = pneg %p180
      %p249 = pneg %p177
      %p250 = scmp.lt.s32.totalorder %s18, 1
      %s251 = scalar_select %p250, %s18, 1
      %s252 = scalar_lea.vmem %s6, %s251
      %p253 = scmp.lt.s32.totalorder %s18, 1
      %s254 = scalar_select %p253, %s18, 1
      %s255 = smul.addr %s254, 8
      %s256 = smul.addr %s255, 8
      %s257 = scalar_lea.vmem %s0, %s256
      %p258 = scmp.lt.s32.totalorder %s18, 1
      %s259 = scalar_select %p258, %s18, 1
      %s260 = smul.addr %s259, 8
      %s261 = smul.addr %s260, 8
      %s262 = scalar_lea.vmem %s4, %s261
      %p263 = scmp.lt.s32.totalorder %s18, 1
      %s264 = scalar_select %p263, %s18, 1
      %s265 = scalar_lea.vmem %s5, %s264
      %p266 = scmp.lt.s32.totalorder %s18, 1
      %s267 = scalar_select %p266, %s18, 1
      %s268 = scalar_lea.vmem %s6, %s267
      %v269 = vld [vmem:[%s257] sm:$0xff]
      %v270 = vld [vmem:[%s257 + $0x8] sm:$0xff]
      %v271 = vld [vmem:[%s257 + $0x10] sm:$0xff]
      %v272 = vld [vmem:[%s257 + $0x18] sm:$0xff]
      %v273 = vld [vmem:[%s257 + $0x20] sm:$0xff]
      %v274 = vld [vmem:[%s257 + $0x28] sm:$0xff]
      %v275 = vld [vmem:[%s257 + $0x30] sm:$0xff]
      %v276 = vld [vmem:[%s257 + $0x38] sm:$0xff]
      %v277 = vld [vmem:[%s1] sm:$0xff]
      %v278 = vld [vmem:[%s1 + $0x8] sm:$0xff]
      %v279 = vld [vmem:[%s2] sm:$0x1]
      %v281 = vlaneseq
      %v282 = vshrl.u32 %v281, 7
      %v283 = vsub.s32 0, %v282
      %v284 = vrot.slane %v279, %v283
      %vm286 = vcmask 130048
      %v288 = vsel %vm286, %v269, 0
      %v291 = vsel %vm286, %v270, 0
      %v294 = vsel %vm286, %v271, 0
      %v297 = vsel %vm286, %v272, 0
      %v300 = vsel %vm286, %v273, 0
      %v303 = vsel %vm286, %v274, 0
      %v306 = vsel %vm286, %v275, 0
      %v309 = vsel %vm286, %v276, 0
      %311 = vmatprep.subr.mxu0 0.0
      %312 = vmatpush1.msra.mxu0 0.0
      %313 = vmatprep.subr.mxu0 0.0
      %314 = vmatpush1.msra.mxu0 0.0
      %315 = vmatprep.subr.mxu0 0.0
      %316 = vmatpush1.msra.mxu0 0.0
      %317 = vmatprep.subr.mxu0 0.0
      %318 = vmatpush1.msra.mxu0 0.0
      %319 = vmatprep.subr.mxu0 0.0
      %320 = vmatpush1.msra.mxu0 0.0
      %321 = vmatprep.subr.mxu0 0.0
      %322 = vmatpush1.msra.mxu0 0.0
      %323 = vmatprep.subr.mxu0 0.0
      %324 = vmatpush1.msra.mxu0 0.0
      %325 = vmatprep.subr.mxu0 0.0
      %326 = vmatpush1.msra.mxu0 0.0
      %327 = vmatprep.subr.mxu0 0.0
      %328 = vmatpush1.msra.mxu0 0.0
      %329 = vmatprep.subr.mxu0 0.0
      %330 = vmatpush1.msra.mxu0 0.0
      %331 = vmatprep.subr.mxu0 0.0
      %332 = vmatpush1.msra.mxu0 0.0
      %333 = vmatprep.subr.mxu0 0.0
      %334 = vmatpush1.msra.mxu0 0.0
      %335 = vmatprep.subr.mxu0 0.0
      %336 = vmatpush1.msra.mxu0 0.0
      %337 = vmatprep.subr.mxu0 0.0
      %338 = vmatpush1.msra.mxu0 0.0
      %339 = vmatprep.subr.mxu0 0.0
      %340 = vmatpush1.msra.mxu0 %v278
      %341 = vmatprep.subr.mxu0 0.0
      %342 = vmatpush1.msra.mxu0 %v277
      %343 = vmatprep.subr.mxu0 0.0
      %344 = vmatpush2.msra.mxu0 0.0
      %345 = vmatprep.subr.mxu0 0.0
      %346 = vmatpush2.msra.mxu0 0.0
      %347 = vmatprep.subr.mxu0 0.0
      %348 = vmatpush2.msra.mxu0 0.0
      %349 = vmatprep.subr.mxu0 0.0
      %350 = vmatpush2.msra.mxu0 0.0
      %351 = vmatprep.subr.mxu0 0.0
      %352 = vmatpush2.msra.mxu0 0.0
      %353 = vmatprep.subr.mxu0 0.0
      %354 = vmatpush2.msra.mxu0 0.0
      %355 = vmatprep.subr.mxu0 0.0
      %356 = vmatpush2.msra.mxu0 0.0
      %357 = vmatprep.subr.mxu0 0.0
      %358 = vmatpush2.msra.mxu0 0.0
      %359 = vmatprep.subr.mxu0 0.0
      %360 = vmatpush2.msra.mxu0 0.0
      %361 = vmatprep.subr.mxu0 0.0
      %362 = vmatpush2.msra.mxu0 0.0
      %363 = vmatprep.subr.mxu0 0.0
      %364 = vmatpush2.msra.mxu0 0.0
      %365 = vmatprep.subr.mxu0 0.0
      %366 = vmatpush2.msra.mxu0 0.0
      %367 = vmatprep.subr.mxu0 0.0
      %368 = vmatpush2.msra.mxu0 0.0
      %369 = vmatprep.subr.mxu0 0.0
      %370 = vmatpush2.msra.mxu0 0.0
      %371 = vmatprep.subr.mxu0 0.0
      %372 = vmatpush2.msra.mxu0 0.0
      %373 = vmatprep.subr.mxu0 0.0
      %374 = vmatpush2.msra.mxu0 0.0
      %375 = vmatprep.mubr.f32.mxu0 0.0
      %376 = vmatmul.mubr.f32.gmra.mxu0 %v288
      %v377 = vpop.f32.mrf.mxu0
      %v378 = vadd.f32 %v284, %v377
      %v379 = vpop.f32.mrf.mxu0
      %380 = vmatprep.mubr.f32.mxu0 0.0
      %381 = vmatmul.mubr.f32.gmra.mxu0 %v291
      %v382 = vpop.f32.mrf.mxu0
      %v383 = vadd.f32 %v284, %v382
      %v384 = vpop.f32.mrf.mxu0
      %385 = vmatprep.mubr.f32.mxu0 0.0
      %386 = vmatmul.mubr.f32.gmra.mxu0 %v294
      %v387 = vpop.f32.mrf.mxu0
      %v388 = vadd.f32 %v284, %v387
      %v389 = vpop.f32.mrf.mxu0
      %390 = vmatprep.mubr.f32.mxu0 0.0
      %391 = vmatmul.mubr.f32.gmra.mxu0 %v297
      %v392 = vpop.f32.mrf.mxu0
      %v393 = vadd.f32 %v284, %v392
      %v394 = vpop.f32.mrf.mxu0
      %395 = vmatprep.mubr.f32.mxu0 0.0
      %396 = vmatmul.mubr.f32.gmra.mxu0 %v300
      %v397 = vpop.f32.mrf.mxu0
      %v398 = vadd.f32 %v284, %v397
      %v399 = vpop.f32.mrf.mxu0
      %400 = vmatprep.mubr.f32.mxu0 0.0
      %401 = vmatmul.mubr.f32.gmra.mxu0 %v303
      %v402 = vpop.f32.mrf.mxu0
      %v403 = vadd.f32 %v284, %v402
      %v404 = vpop.f32.mrf.mxu0
      %405 = vmatprep.mubr.f32.mxu0 0.0
      %406 = vmatmul.mubr.f32.gmra.mxu0 %v306
      %v407 = vpop.f32.mrf.mxu0
      %v408 = vadd.f32 %v284, %v407
      %v409 = vpop.f32.mrf.mxu0
      %410 = vmatprep.mubr.f32.mxu0 0.0
      %411 = vmatmul.mubr.f32.gmra.mxu0 %v309
      %v412 = vpop.f32.mrf.mxu0
      %v413 = vadd.f32 %v284, %v412
      %v414 = vpop.f32.mrf.mxu0
      %415 = vdwg.mxu0
      %vm416 = vcmask 31744
      %417 = vst.msk [vmem:[#allocation2] sm:$0xff] %vm416, 0.0
      %418 = vst.msk [vmem:[#allocation2 + $0x8] sm:$0xff] %vm416, 0.0
      %419 = vst.msk [vmem:[#allocation2 + $0x10] sm:$0xff] %vm416, 0.0
      %420 = vst.msk [vmem:[#allocation2 + $0x18] sm:$0xff] %vm416, 0.0
      %421 = vst.msk [vmem:[#allocation2 + $0x20] sm:$0xff] %vm416, 0.0
      %422 = vst.msk [vmem:[#allocation2 + $0x28] sm:$0xff] %vm416, 0.0
      %423 = vst.msk [vmem:[#allocation2 + $0x30] sm:$0xff] %vm416, 0.0
      %424 = vst.msk [vmem:[#allocation2 + $0x38] sm:$0xff] %vm416, 0.0
      %425 = vst.msk [vmem:[#allocation2 + $0x40] sm:$0xff] %vm416, 0.0
      %426 = vst.msk [vmem:[#allocation2 + $0x48] sm:$0xff] %vm416, 0.0
      %427 = vst.msk [vmem:[#allocation2 + $0x50] sm:$0xff] %vm416, 0.0
      %428 = vst.msk [vmem:[#allocation2 + $0x58] sm:$0xff] %vm416, 0.0
      %429 = vst.msk [vmem:[#allocation2 + $0x10] sm:$0xff] %vm416, %v378
      %430 = vst.msk [vmem:[#allocation2 + $0x18] sm:$0xff] %vm416, %v383
      %431 = vst.msk [vmem:[#allocation2 + $0x20] sm:$0xff] %vm416, %v388
      %432 = vst.msk [vmem:[#allocation2 + $0x28] sm:$0xff] %vm416, %v393
      %433 = vst.msk [vmem:[#allocation2 + $0x30] sm:$0xff] %vm416, %v398
      %434 = vst.msk [vmem:[#allocation2 + $0x38] sm:$0xff] %vm416, %v403
      %435 = vst.msk [vmem:[#allocation2 + $0x40] sm:$0xff] %vm416, %v408
      %436 = vst.msk [vmem:[#allocation2 + $0x48] sm:$0xff] %vm416, %v413
      %v437 = vlaneseq
      %v438 = vshrl.u32 %v437, 7
      %v439 = vadd.s32 %v438, 8
      %v440 = vadd.s32 %v438, 16
      %v441 = vadd.s32 %v438, 24
      %v442 = vadd.s32 %v438, 32
      %v443 = vadd.s32 %v438, 40
      %v444 = vadd.s32 %v438, 48
      %v445 = vadd.s32 %v438, 56
      %vm446 = vcmp.lt.s32.totalorder %v438, 0
      %v447 = vsub.s32 0, %v438
      %v448 = vsel %vm446, %v447, %v438
      %v449 = vshrl.u32 %v448, 3
      %v450 = vand.u32 %v448, 7
      %v451 = vsub.s32 0, %v450
      %v452 = vsel %vm446, %v451, %v450
      %vm453 = vcmp.lt.s32.totalorder %v439, 0
      %v454 = vsub.s32 0, %v439
      %v455 = vsel %vm453, %v454, %v439
      %v456 = vshrl.u32 %v455, 3
      %v457 = vand.u32 %v455, 7
      %v458 = vsub.s32 0, %v457
      %v459 = vsel %vm453, %v458, %v457
      %vm460 = vcmp.lt.s32.totalorder %v440, 0
      %v461 = vsub.s32 0, %v440
      %v462 = vsel %vm460, %v461, %v440
      %v463 = vshrl.u32 %v462, 3
      %v464 = vand.u32 %v462, 7
      %v465 = vsub.s32 0, %v464
      %v466 = vsel %vm460, %v465, %v464
      %vm467 = vcmp.lt.s32.totalorder %v441, 0
      %v468 = vsub.s32 0, %v441
      %v469 = vsel %vm467, %v468, %v441
      %v470 = vshrl.u32 %v469, 3
      %v471 = vand.u32 %v469, 7
      %v472 = vsub.s32 0, %v471
      %v473 = vsel %vm467, %v472, %v471
      %vm474 = vcmp.lt.s32.totalorder %v442, 0
      %v475 = vsub.s32 0, %v442
      %v476 = vsel %vm474, %v475, %v442
      %v477 = vshrl.u32 %v476, 3
      %v478 = vand.u32 %v476, 7
      %v479 = vsub.s32 0, %v478
      %v480 = vsel %vm474, %v479, %v478
      %vm481 = vcmp.lt.s32.totalorder %v443, 0
      %v482 = vsub.s32 0, %v443
      %v483 = vsel %vm481, %v482, %v443
      %v484 = vshrl.u32 %v483, 3
      %v485 = vand.u32 %v483, 7
      %v486 = vsub.s32 0, %v485
      %v487 = vsel %vm481, %v486, %v485
      %vm488 = vcmp.lt.s32.totalorder %v444, 0
      %v489 = vsub.s32 0, %v444
      %v490 = vsel %vm488, %v489, %v444
      %v491 = vshrl.u32 %v490, 3
      %v492 = vand.u32 %v490, 7
      %v493 = vsub.s32 0, %v492
      %v494 = vsel %vm488, %v493, %v492
      %vm495 = vcmp.lt.s32.totalorder %v445, 0
      %v496 = vsub.s32 0, %v445
      %v497 = vsel %vm495, %v496, %v445
      %v498 = vshrl.u32 %v497, 3
      %v499 = vand.u32 %v497, 7
      %v500 = vsub.s32 0, %v499
      %v501 = vsel %vm495, %v500, %v499
      %vm502 = vcmp.ne.s32.totalorder %v452, 0
      %vm503 = vcmp.ne.s32.totalorder %v459, 0
      %vm504 = vcmp.ne.s32.totalorder %v466, 0
      %vm505 = vcmp.ne.s32.totalorder %v473, 0
      %vm506 = vcmp.ne.s32.totalorder %v480, 0
      %vm507 = vcmp.ne.s32.totalorder %v487, 0
      %vm508 = vcmp.ne.s32.totalorder %v494, 0
      %vm509 = vcmp.ne.s32.totalorder %v501, 0
      %vm510 = vcmp.lt.s32.totalorder %v452, 0
      %vm511 = vcmp.lt.s32.totalorder %v459, 0
      %vm512 = vcmp.lt.s32.totalorder %v466, 0
      %vm513 = vcmp.lt.s32.totalorder %v473, 0
      %vm514 = vcmp.lt.s32.totalorder %v480, 0
      %vm515 = vcmp.lt.s32.totalorder %v487, 0
      %vm516 = vcmp.lt.s32.totalorder %v494, 0
      %vm517 = vcmp.lt.s32.totalorder %v501, 0
      %vm518 = vmand %vm510, %vm502
      %vm519 = vmand %vm511, %vm503
      %vm520 = vmand %vm512, %vm504
      %vm521 = vmand %vm513, %vm505
      %vm522 = vmand %vm514, %vm506
      %vm523 = vmand %vm515, %vm507
      %vm524 = vmand %vm516, %vm508
      %vm525 = vmand %vm517, %vm509
      %v526 = vadd.s32 %v452, 8
      %v527 = vadd.s32 %v459, 8
      %v528 = vadd.s32 %v466, 8
      %v529 = vadd.s32 %v473, 8
      %v530 = vadd.s32 %v480, 8
      %v531 = vadd.s32 %v487, 8
      %v532 = vadd.s32 %v494, 8
      %v533 = vadd.s32 %v501, 8
      %v534 = vsel %vm518, %v526, %v452
      %v535 = vsel %vm519, %v527, %v459
      %v536 = vsel %vm520, %v528, %v466
      %v537 = vsel %vm521, %v529, %v473
      %v538 = vsel %vm522, %v530, %v480
      %v539 = vsel %vm523, %v531, %v487
      %v540 = vsel %vm524, %v532, %v494
      %v541 = vsel %vm525, %v533, %v501
      %vm542 = vcmp.gt.s32.totalorder %v534, 0
      %vm543 = vcmp.gt.s32.totalorder %v535, 0
      %vm544 = vcmp.gt.s32.totalorder %v536, 0
      %vm545 = vcmp.gt.s32.totalorder %v537, 0
      %vm546 = vcmp.gt.s32.totalorder %v538, 0
      %vm547 = vcmp.gt.s32.totalorder %v539, 0
      %vm548 = vcmp.gt.s32.totalorder %v540, 0
      %vm549 = vcmp.gt.s32.totalorder %v541, 0
      %v550 = vsel %vm542, 1, 0
      %v551 = vsel %vm543, 1, 0
      %v552 = vsel %vm544, 1, 0
      %v553 = vsel %vm545, 1, 0
      %v554 = vsel %vm546, 1, 0
      %v555 = vsel %vm547, 1, 0
      %v556 = vsel %vm548, 1, 0
      %v557 = vsel %vm549, 1, 0
      %v558 = vcvt.s32.f32 %v550
      %v559 = vcvt.s32.f32 %v551
      %v560 = vcvt.s32.f32 %v552
      %v561 = vcvt.s32.f32 %v553
      %v562 = vcvt.s32.f32 %v554
      %v563 = vcvt.s32.f32 %v555
      %v564 = vcvt.s32.f32 %v556
      %v565 = vcvt.s32.f32 %v557
      %vm566 = vcmp.lt.s32.totalorder %v534, 7
      %vm567 = vcmp.lt.s32.totalorder %v535, 7
      %vm568 = vcmp.lt.s32.totalorder %v536, 7
      %vm569 = vcmp.lt.s32.totalorder %v537, 7
      %vm570 = vcmp.lt.s32.totalorder %v538, 7
      %vm571 = vcmp.lt.s32.totalorder %v539, 7
      %vm572 = vcmp.lt.s32.totalorder %v540, 7
      %vm573 = vcmp.lt.s32.totalorder %v541, 7
      %v574 = vsel %vm566, 1, 0
      %v575 = vsel %vm567, 1, 0
      %v576 = vsel %vm568, 1, 0
      %v577 = vsel %vm569, 1, 0
      %v578 = vsel %vm570, 1, 0
      %v579 = vsel %vm571, 1, 0
      %v580 = vsel %vm572, 1, 0
      %v581 = vsel %vm573, 1, 0
      %v582 = vcvt.s32.f32 %v574
      %v583 = vcvt.s32.f32 %v575
      %v584 = vcvt.s32.f32 %v576
      %v585 = vcvt.s32.f32 %v577
      %v586 = vcvt.s32.f32 %v578
      %v587 = vcvt.s32.f32 %v579
      %v588 = vcvt.s32.f32 %v580
      %v589 = vcvt.s32.f32 %v581
      %v590 = vld [vmem:[#allocation2 + $0x7] sm:$0xff]
      %v591 = vld [vmem:[#allocation2 + $0xf] sm:$0xff]
      %v592 = vld [vmem:[#allocation2 + $0x17] sm:$0xff]
      %v593 = vld [vmem:[#allocation2 + $0x1f] sm:$0xff]
      %v594 = vld [vmem:[#allocation2 + $0x27] sm:$0xff]
      %v595 = vld [vmem:[#allocation2 + $0x2f] sm:$0xff]
      %v596 = vld [vmem:[#allocation2 + $0x37] sm:$0xff]
      %v597 = vld [vmem:[#allocation2 + $0x3f] sm:$0xff]
      %v598 = vmul.f32 %v590, %v558
      %v599 = vmul.f32 %v591, %v559
      %v600 = vmul.f32 %v592, %v560
      %v601 = vmul.f32 %v593, %v561
      %v602 = vmul.f32 %v594, %v562
      %v603 = vmul.f32 %v595, %v563
      %v604 = vmul.f32 %v596, %v564
      %v605 = vmul.f32 %v597, %v565
      %v606 = vld [vmem:[%s3] sm:$0xf]
      %v607 = vld [vmem:[#allocation2 + $0x8] sm:$0xff]
      %v608 = vld [vmem:[#allocation2 + $0x10] sm:$0xff]
      %v609 = vld [vmem:[#allocation2 + $0x18] sm:$0xff]
      %v610 = vld [vmem:[#allocation2 + $0x20] sm:$0xff]
      %v611 = vld [vmem:[#allocation2 + $0x28] sm:$0xff]
      %v612 = vld [vmem:[#allocation2 + $0x30] sm:$0xff]
      %v613 = vld [vmem:[#allocation2 + $0x38] sm:$0xff]
      %v614 = vld [vmem:[#allocation2 + $0x40] sm:$0xff]
      %s615 = scalar_lea.vmem %s3, 4
      %v616 = vld [vmem:[%s615] sm:$0xf]
      %v618 = vsel %vm416, %v607, 0
      %v621 = vsel %vm416, %v608, 0
      %v624 = vsel %vm416, %v609, 0
      %v627 = vsel %vm416, %v610, 0
      %v630 = vsel %vm416, %v611, 0
      %v633 = vsel %vm416, %v612, 0
      %v636 = vsel %vm416, %v613, 0
      %v639 = vsel %vm416, %v614, 0
      %vm641 = vcmask 1043456
      %v643 = vsel %vm641, %v616, 0
      %645 = vmatprep.subr.mxu0 0.0
      %646 = vmatpush1.msra.mxu0 0.0
      %647 = vmatprep.subr.mxu0 0.0
      %648 = vmatpush1.msra.mxu0 0.0
      %649 = vmatprep.subr.mxu0 0.0
      %650 = vmatpush1.msra.mxu0 0.0
      %651 = vmatprep.subr.mxu0 0.0
      %652 = vmatpush1.msra.mxu0 0.0
      %653 = vmatprep.subr.mxu0 0.0
      %654 = vmatpush1.msra.mxu0 0.0
      %655 = vmatprep.subr.mxu0 0.0
      %656 = vmatpush1.msra.mxu0 0.0
      %657 = vmatprep.subr.mxu0 0.0
      %658 = vmatpush1.msra.mxu0 0.0
      %659 = vmatprep.subr.mxu0 0.0
      %660 = vmatpush1.msra.mxu0 0.0
      %661 = vmatprep.subr.mxu0 0.0
      %662 = vmatpush1.msra.mxu0 0.0
      %663 = vmatprep.subr.mxu0 0.0
      %664 = vmatpush1.msra.mxu0 0.0
      %665 = vmatprep.subr.mxu0 0.0
      %666 = vmatpush1.msra.mxu0 0.0
      %667 = vmatprep.subr.mxu0 0.0
      %668 = vmatpush1.msra.mxu0 0.0
      %669 = vmatprep.subr.mxu0 0.0
      %670 = vmatpush1.msra.mxu0 0.0
      %671 = vmatprep.subr.mxu0 0.0
      %672 = vmatpush1.msra.mxu0 0.0
      %673 = vmatprep.subr.mxu0 0.0
      %674 = vmatpush1.msra.mxu0 0.0
      %675 = vmatprep.subr.mxu0 0.0
      %676 = vmatpush1.msra.mxu0 %v643
      %677 = vmatprep.subr.mxu0 0.0
      %678 = vmatpush2.msra.mxu0 0.0
      %679 = vmatprep.subr.mxu0 0.0
      %680 = vmatpush2.msra.mxu0 0.0
      %681 = vmatprep.subr.mxu0 0.0
      %682 = vmatpush2.msra.mxu0 0.0
      %683 = vmatprep.subr.mxu0 0.0
      %684 = vmatpush2.msra.mxu0 0.0
      %685 = vmatprep.subr.mxu0 0.0
      %686 = vmatpush2.msra.mxu0 0.0
      %687 = vmatprep.subr.mxu0 0.0
      %688 = vmatpush2.msra.mxu0 0.0
      %689 = vmatprep.subr.mxu0 0.0
      %690 = vmatpush2.msra.mxu0 0.0
      %691 = vmatprep.subr.mxu0 0.0
      %692 = vmatpush2.msra.mxu0 0.0
      %693 = vmatprep.subr.mxu0 0.0
      %694 = vmatpush2.msra.mxu0 0.0
      %695 = vmatprep.subr.mxu0 0.0
      %696 = vmatpush2.msra.mxu0 0.0
      %697 = vmatprep.subr.mxu0 0.0
      %698 = vmatpush2.msra.mxu0 0.0
      %699 = vmatprep.subr.mxu0 0.0
      %700 = vmatpush2.msra.mxu0 0.0
      %701 = vmatprep.subr.mxu0 0.0
      %702 = vmatpush2.msra.mxu0 0.0
      %703 = vmatprep.subr.mxu0 0.0
      %704 = vmatpush2.msra.mxu0 0.0
      %705 = vmatprep.subr.mxu0 0.0
      %706 = vmatpush2.msra.mxu0 0.0
      %707 = vmatprep.subr.mxu0 0.0
      %708 = vmatpush2.msra.mxu0 0.0
      %709 = vmatprep.mubr.f32.mxu0 0.0
      %710 = vmatmul.mubr.f32.gmra.mxu0 %v618
      %v711 = vpop.f32.mrf.mxu0
      %v712 = vadd.f32 0.0, %v711
      %v713 = vpop.f32.mrf.mxu0
      %714 = vmatprep.mubr.f32.mxu0 0.0
      %715 = vmatmul.mubr.f32.gmra.mxu0 %v621
      %v716 = vpop.f32.mrf.mxu0
      %v717 = vadd.f32 0.0, %v716
      %v718 = vpop.f32.mrf.mxu0
      %719 = vmatprep.mubr.f32.mxu0 0.0
      %720 = vmatmul.mubr.f32.gmra.mxu0 %v624
      %v721 = vpop.f32.mrf.mxu0
      %v722 = vadd.f32 0.0, %v721
      %v723 = vpop.f32.mrf.mxu0
      %724 = vmatprep.mubr.f32.mxu0 0.0
      %725 = vmatmul.mubr.f32.gmra.mxu0 %v627
      %v726 = vpop.f32.mrf.mxu0
      %v727 = vadd.f32 0.0, %v726
      %v728 = vpop.f32.mrf.mxu0
      %729 = vmatprep.mubr.f32.mxu0 0.0
      %730 = vmatmul.mubr.f32.gmra.mxu0 %v630
      %v731 = vpop.f32.mrf.mxu0
      %v732 = vadd.f32 0.0, %v731
      %v733 = vpop.f32.mrf.mxu0
      %734 = vmatprep.mubr.f32.mxu0 0.0
      %735 = vmatmul.mubr.f32.gmra.mxu0 %v633
      %v736 = vpop.f32.mrf.mxu0
      %v737 = vadd.f32 0.0, %v736
      %v738 = vpop.f32.mrf.mxu0
      %739 = vmatprep.mubr.f32.mxu0 0.0
      %740 = vmatmul.mubr.f32.gmra.mxu0 %v636
      %v741 = vpop.f32.mrf.mxu0
      %v742 = vadd.f32 0.0, %v741
      %v743 = vpop.f32.mrf.mxu0
      %744 = vmatprep.mubr.f32.mxu0 0.0
      %745 = vmatmul.mubr.f32.gmra.mxu0 %v639
      %v746 = vpop.f32.mrf.mxu0
      %v747 = vadd.f32 0.0, %v746
      %v748 = vpop.f32.mrf.mxu0
      %749 = vdwg.mxu0
      %v751 = vsel %vm416, %v598, 0
      %v754 = vsel %vm416, %v599, 0
      %v757 = vsel %vm416, %v600, 0
      %v760 = vsel %vm416, %v601, 0
      %v763 = vsel %vm416, %v602, 0
      %v766 = vsel %vm416, %v603, 0
      %v769 = vsel %vm416, %v604, 0
      %v772 = vsel %vm416, %v605, 0
      %v775 = vsel %vm641, %v606, 0
      %777 = vmatprep.subr.mxu0 0.0
      %778 = vmatpush1.msra.mxu0 0.0
      %779 = vmatprep.subr.mxu0 0.0
      %780 = vmatpush1.msra.mxu0 0.0
      %781 = vmatprep.subr.mxu0 0.0
      %782 = vmatpush1.msra.mxu0 0.0
      %783 = vmatprep.subr.mxu0 0.0
      %784 = vmatpush1.msra.mxu0 0.0
      %785 = vmatprep.subr.mxu0 0.0
      %786 = vmatpush1.msra.mxu0 0.0
      %787 = vmatprep.subr.mxu0 0.0
      %788 = vmatpush1.msra.mxu0 0.0
      %789 = vmatprep.subr.mxu0 0.0
      %790 = vmatpush1.msra.mxu0 0.0
      %791 = vmatprep.subr.mxu0 0.0
      %792 = vmatpush1.msra.mxu0 0.0
      %793 = vmatprep.subr.mxu0 0.0
      %794 = vmatpush1.msra.mxu0 0.0
      %795 = vmatprep.subr.mxu0 0.0
      %796 = vmatpush1.msra.mxu0 0.0
      %797 = vmatprep.subr.mxu0 0.0
      %798 = vmatpush1.msra.mxu0 0.0
      %799 = vmatprep.subr.mxu0 0.0
      %800 = vmatpush1.msra.mxu0 0.0
      %801 = vmatprep.subr.mxu0 0.0
      %802 = vmatpush1.msra.mxu0 0.0
      %803 = vmatprep.subr.mxu0 0.0
      %804 = vmatpush1.msra.mxu0 0.0
      %805 = vmatprep.subr.mxu0 0.0
      %806 = vmatpush1.msra.mxu0 0.0
      %807 = vmatprep.subr.mxu0 0.0
      %808 = vmatpush1.msra.mxu0 %v775
      %809 = vmatprep.subr.mxu0 0.0
      %810 = vmatpush2.msra.mxu0 0.0
      %811 = vmatprep.subr.mxu0 0.0
      %812 = vmatpush2.msra.mxu0 0.0
      %813 = vmatprep.subr.mxu0 0.0
      %814 = vmatpush2.msra.mxu0 0.0
      %815 = vmatprep.subr.mxu0 0.0
      %816 = vmatpush2.msra.mxu0 0.0
      %817 = vmatprep.subr.mxu0 0.0
      %818 = vmatpush2.msra.mxu0 0.0
      %819 = vmatprep.subr.mxu0 0.0
      %820 = vmatpush2.msra.mxu0 0.0
      %821 = vmatprep.subr.mxu0 0.0
      %822 = vmatpush2.msra.mxu0 0.0
      %823 = vmatprep.subr.mxu0 0.0
      %824 = vmatpush2.msra.mxu0 0.0
      %825 = vmatprep.subr.mxu0 0.0
      %826 = vmatpush2.msra.mxu0 0.0
      %827 = vmatprep.subr.mxu0 0.0
      %828 = vmatpush2.msra.mxu0 0.0
      %829 = vmatprep.subr.mxu0 0.0
      %830 = vmatpush2.msra.mxu0 0.0
      %831 = vmatprep.subr.mxu0 0.0
      %832 = vmatpush2.msra.mxu0 0.0
      %833 = vmatprep.subr.mxu0 0.0
      %834 = vmatpush2.msra.mxu0 0.0
      %835 = vmatprep.subr.mxu0 0.0
      %836 = vmatpush2.msra.mxu0 0.0
      %837 = vmatprep.subr.mxu0 0.0
      %838 = vmatpush2.msra.mxu0 0.0
      %839 = vmatprep.subr.mxu0 0.0
      %840 = vmatpush2.msra.mxu0 0.0
      %841 = vmatprep.mubr.f32.mxu0 0.0
      %842 = vmatmul.mubr.f32.gmra.mxu0 %v751
      %v843 = vpop.f32.mrf.mxu0
      %v844 = vadd.f32 %v712, %v843
      %v845 = vpop.f32.mrf.mxu0
      %846 = vmatprep.mubr.f32.mxu0 0.0
      %847 = vmatmul.mubr.f32.gmra.mxu0 %v754
      %v848 = vpop.f32.mrf.mxu0
      %v849 = vadd.f32 %v717, %v848
      %v850 = vpop.f32.mrf.mxu0
      %851 = vmatprep.mubr.f32.mxu0 0.0
      %852 = vmatmul.mubr.f32.gmra.mxu0 %v757
      %v853 = vpop.f32.mrf.mxu0
      %v854 = vadd.f32 %v722, %v853
      %v855 = vpop.f32.mrf.mxu0
      %856 = vmatprep.mubr.f32.mxu0 0.0
      %857 = vmatmul.mubr.f32.gmra.mxu0 %v760
      %v858 = vpop.f32.mrf.mxu0
      %v859 = vadd.f32 %v727, %v858
      %v860 = vpop.f32.mrf.mxu0
      %861 = vmatprep.mubr.f32.mxu0 0.0
      %862 = vmatmul.mubr.f32.gmra.mxu0 %v763
      %v863 = vpop.f32.mrf.mxu0
      %v864 = vadd.f32 %v732, %v863
      %v865 = vpop.f32.mrf.mxu0
      %866 = vmatprep.mubr.f32.mxu0 0.0
      %867 = vmatmul.mubr.f32.gmra.mxu0 %v766
      %v868 = vpop.f32.mrf.mxu0
      %v869 = vadd.f32 %v737, %v868
      %v870 = vpop.f32.mrf.mxu0
      %871 = vmatprep.mubr.f32.mxu0 0.0
      %872 = vmatmul.mubr.f32.gmra.mxu0 %v769
      %v873 = vpop.f32.mrf.mxu0
      %v874 = vadd.f32 %v742, %v873
      %v875 = vpop.f32.mrf.mxu0
      %876 = vmatprep.mubr.f32.mxu0 0.0
      %877 = vmatmul.mubr.f32.gmra.mxu0 %v772
      %v878 = vpop.f32.mrf.mxu0
      %v879 = vadd.f32 %v747, %v878
      %v880 = vpop.f32.mrf.mxu0
      %881 = vdwg.mxu0
      %v882 = vld [vmem:[#allocation2 + $0x9] sm:$0xff]
      %v883 = vld [vmem:[#allocation2 + $0x11] sm:$0xff]
      %v884 = vld [vmem:[#allocation2 + $0x19] sm:$0xff]
      %v885 = vld [vmem:[#allocation2 + $0x21] sm:$0xff]
      %v886 = vld [vmem:[#allocation2 + $0x29] sm:$0xff]
      %v887 = vld [vmem:[#allocation2 + $0x31] sm:$0xff]
      %v888 = vld [vmem:[#allocation2 + $0x39] sm:$0xff]
      %v889 = vld [vmem:[#allocation2 + $0x41] sm:$0xff]
      %v890 = vmul.f32 %v882, %v582
      %v891 = vmul.f32 %v883, %v583
      %v892 = vmul.f32 %v884, %v584
      %v893 = vmul.f32 %v885, %v585
      %v894 = vmul.f32 %v886, %v586
      %v895 = vmul.f32 %v887, %v587
      %v896 = vmul.f32 %v888, %v588
      %v897 = vmul.f32 %v889, %v589
      %s898 = scalar_lea.vmem %s3, 8
      %v899 = vld [vmem:[%s898] sm:$0xf]
      %v901 = vsel %vm416, %v890, 0
      %v904 = vsel %vm416, %v891, 0
      %v907 = vsel %vm416, %v892, 0
      %v910 = vsel %vm416, %v893, 0
      %v913 = vsel %vm416, %v894, 0
      %v916 = vsel %vm416, %v895, 0
      %v919 = vsel %vm416, %v896, 0
      %v922 = vsel %vm416, %v897, 0
      %v925 = vsel %vm641, %v899, 0
      %927 = vmatprep.subr.mxu0 0.0
      %928 = vmatpush1.msra.mxu0 0.0
      %929 = vmatprep.subr.mxu0 0.0
      %930 = vmatpush1.msra.mxu0 0.0
      %931 = vmatprep.subr.mxu0 0.0
      %932 = vmatpush1.msra.mxu0 0.0
      %933 = vmatprep.subr.mxu0 0.0
      %934 = vmatpush1.msra.mxu0 0.0
      %935 = vmatprep.subr.mxu0 0.0
      %936 = vmatpush1.msra.mxu0 0.0
      %937 = vmatprep.subr.mxu0 0.0
      %938 = vmatpush1.msra.mxu0 0.0
      %939 = vmatprep.subr.mxu0 0.0
      %940 = vmatpush1.msra.mxu0 0.0
      %941 = vmatprep.subr.mxu0 0.0
      %942 = vmatpush1.msra.mxu0 0.0
      %943 = vmatprep.subr.mxu0 0.0
      %944 = vmatpush1.msra.mxu0 0.0
      %945 = vmatprep.subr.mxu0 0.0
      %946 = vmatpush1.msra.mxu0 0.0
      %947 = vmatprep.subr.mxu0 0.0
      %948 = vmatpush1.msra.mxu0 0.0
      %949 = vmatprep.subr.mxu0 0.0
      %950 = vmatpush1.msra.mxu0 0.0
      %951 = vmatprep.subr.mxu0 0.0
      %952 = vmatpush1.msra.mxu0 0.0
      %953 = vmatprep.subr.mxu0 0.0
      %954 = vmatpush1.msra.mxu0 0.0
      %955 = vmatprep.subr.mxu0 0.0
      %956 = vmatpush1.msra.mxu0 0.0
      %957 = vmatprep.subr.mxu0 0.0
      %958 = vmatpush1.msra.mxu0 %v925
      %959 = vmatprep.subr.mxu0 0.0
      %960 = vmatpush2.msra.mxu0 0.0
      %961 = vmatprep.subr.mxu0 0.0
      %962 = vmatpush2.msra.mxu0 0.0
      %963 = vmatprep.subr.mxu0 0.0
      %964 = vmatpush2.msra.mxu0 0.0
      %965 = vmatprep.subr.mxu0 0.0
      %966 = vmatpush2.msra.mxu0 0.0
      %967 = vmatprep.subr.mxu0 0.0
      %968 = vmatpush2.msra.mxu0 0.0
      %969 = vmatprep.subr.mxu0 0.0
      %970 = vmatpush2.msra.mxu0 0.0
      %971 = vmatprep.subr.mxu0 0.0
      %972 = vmatpush2.msra.mxu0 0.0
      %973 = vmatprep.subr.mxu0 0.0
      %974 = vmatpush2.msra.mxu0 0.0
      %975 = vmatprep.subr.mxu0 0.0
      %976 = vmatpush2.msra.mxu0 0.0
      %977 = vmatprep.subr.mxu0 0.0
      %978 = vmatpush2.msra.mxu0 0.0
      %979 = vmatprep.subr.mxu0 0.0
      %980 = vmatpush2.msra.mxu0 0.0
      %981 = vmatprep.subr.mxu0 0.0
      %982 = vmatpush2.msra.mxu0 0.0
      %983 = vmatprep.subr.mxu0 0.0
      %984 = vmatpush2.msra.mxu0 0.0
      %985 = vmatprep.subr.mxu0 0.0
      %986 = vmatpush2.msra.mxu0 0.0
      %987 = vmatprep.subr.mxu0 0.0
      %988 = vmatpush2.msra.mxu0 0.0
      %989 = vmatprep.subr.mxu0 0.0
      %990 = vmatpush2.msra.mxu0 0.0
      %991 = vmatprep.mubr.f32.mxu0 0.0
      %992 = vmatmul.mubr.f32.gmra.mxu0 %v901
      %v993 = vpop.f32.mrf.mxu0
      %v994 = vadd.f32 0.0, %v993
      %v995 = vpop.f32.mrf.mxu0
      %996 = vmatprep.mubr.f32.mxu0 0.0
      %997 = vmatmul.mubr.f32.gmra.mxu0 %v904
      %v998 = vpop.f32.mrf.mxu0
      %v999 = vadd.f32 0.0, %v998
      %v1000 = vpop.f32.mrf.mxu0
      %1001 = vmatprep.mubr.f32.mxu0 0.0
      %1002 = vmatmul.mubr.f32.gmra.mxu0 %v907
      %v1003 = vpop.f32.mrf.mxu0
      %v1004 = vadd.f32 0.0, %v1003
      %v1005 = vpop.f32.mrf.mxu0
      %1006 = vmatprep.mubr.f32.mxu0 0.0
      %1007 = vmatmul.mubr.f32.gmra.mxu0 %v910
      %v1008 = vpop.f32.mrf.mxu0
      %v1009 = vadd.f32 0.0, %v1008
      %v1010 = vpop.f32.mrf.mxu0
      %1011 = vmatprep.mubr.f32.mxu0 0.0
      %1012 = vmatmul.mubr.f32.gmra.mxu0 %v913
      %v1013 = vpop.f32.mrf.mxu0
      %v1014 = vadd.f32 0.0, %v1013
      %v1015 = vpop.f32.mrf.mxu0
      %1016 = vmatprep.mubr.f32.mxu0 0.0
      %1017 = vmatmul.mubr.f32.gmra.mxu0 %v916
      %v1018 = vpop.f32.mrf.mxu0
      %v1019 = vadd.f32 0.0, %v1018
      %v1020 = vpop.f32.mrf.mxu0
      %1021 = vmatprep.mubr.f32.mxu0 0.0
      %1022 = vmatmul.mubr.f32.gmra.mxu0 %v919
      %v1023 = vpop.f32.mrf.mxu0
      %v1024 = vadd.f32 0.0, %v1023
      %v1025 = vpop.f32.mrf.mxu0
      %1026 = vmatprep.mubr.f32.mxu0 0.0
      %1027 = vmatmul.mubr.f32.gmra.mxu0 %v922
      %v1028 = vpop.f32.mrf.mxu0
      %v1029 = vadd.f32 0.0, %v1028
      %v1030 = vpop.f32.mrf.mxu0
      %1031 = vdwg.mxu0
      %v1032 = vadd.f32 %v844, %v994
      %v1033 = vadd.f32 %v849, %v999
      %v1034 = vadd.f32 %v854, %v1004
      %v1035 = vadd.f32 %v859, %v1009
      %v1036 = vadd.f32 %v864, %v1014
      %v1037 = vadd.f32 %v869, %v1019
      %v1038 = vadd.f32 %v874, %v1024
      %v1039 = vadd.f32 %v879, %v1029
      %v1040 = vld [vmem:[#allocation2 + $0xf] sm:$0xff]
      %v1041 = vld [vmem:[#allocation2 + $0x17] sm:$0xff]
      %v1042 = vld [vmem:[#allocation2 + $0x1f] sm:$0xff]
      %v1043 = vld [vmem:[#allocation2 + $0x27] sm:$0xff]
      %v1044 = vld [vmem:[#allocation2 + $0x2f] sm:$0xff]
      %v1045 = vld [vmem:[#allocation2 + $0x37] sm:$0xff]
      %v1046 = vld [vmem:[#allocation2 + $0x3f] sm:$0xff]
      %v1047 = vld [vmem:[#allocation2 + $0x47] sm:$0xff]
      %v1048 = vmul.f32 %v1040, %v558
      %v1049 = vmul.f32 %v1041, %v559
      %v1050 = vmul.f32 %v1042, %v560
      %v1051 = vmul.f32 %v1043, %v561
      %v1052 = vmul.f32 %v1044, %v562
      %v1053 = vmul.f32 %v1045, %v563
      %v1054 = vmul.f32 %v1046, %v564
      %v1055 = vmul.f32 %v1047, %v565
      %s1056 = scalar_lea.vmem %s3, 12
      %v1057 = vld [vmem:[%s1056] sm:$0xf]
      %v1059 = vsel %vm416, %v1048, 0
      %v1062 = vsel %vm416, %v1049, 0
      %v1065 = vsel %vm416, %v1050, 0
      %v1068 = vsel %vm416, %v1051, 0
      %v1071 = vsel %vm416, %v1052, 0
      %v1074 = vsel %vm416, %v1053, 0
      %v1077 = vsel %vm416, %v1054, 0
      %v1080 = vsel %vm416, %v1055, 0
      %v1083 = vsel %vm641, %v1057, 0
      %1085 = vmatprep.subr.mxu0 0.0
      %1086 = vmatpush1.msra.mxu0 0.0
      %1087 = vmatprep.subr.mxu0 0.0
      %1088 = vmatpush1.msra.mxu0 0.0
      %1089 = vmatprep.subr.mxu0 0.0
      %1090 = vmatpush1.msra.mxu0 0.0
      %1091 = vmatprep.subr.mxu0 0.0
      %1092 = vmatpush1.msra.mxu0 0.0
      %1093 = vmatprep.subr.mxu0 0.0
      %1094 = vmatpush1.msra.mxu0 0.0
      %1095 = vmatprep.subr.mxu0 0.0
      %1096 = vmatpush1.msra.mxu0 0.0
      %1097 = vmatprep.subr.mxu0 0.0
      %1098 = vmatpush1.msra.mxu0 0.0
      %1099 = vmatprep.subr.mxu0 0.0
      %1100 = vmatpush1.msra.mxu0 0.0
      %1101 = vmatprep.subr.mxu0 0.0
      %1102 = vmatpush1.msra.mxu0 0.0
      %1103 = vmatprep.subr.mxu0 0.0
      %1104 = vmatpush1.msra.mxu0 0.0
      %1105 = vmatprep.subr.mxu0 0.0
      %1106 = vmatpush1.msra.mxu0 0.0
      %1107 = vmatprep.subr.mxu0 0.0
      %1108 = vmatpush1.msra.mxu0 0.0
      %1109 = vmatprep.subr.mxu0 0.0
      %1110 = vmatpush1.msra.mxu0 0.0
      %1111 = vmatprep.subr.mxu0 0.0
      %1112 = vmatpush1.msra.mxu0 0.0
      %1113 = vmatprep.subr.mxu0 0.0
      %1114 = vmatpush1.msra.mxu0 0.0
      %1115 = vmatprep.subr.mxu0 0.0
      %1116 = vmatpush1.msra.mxu0 %v1083
      %1117 = vmatprep.subr.mxu0 0.0
      %1118 = vmatpush2.msra.mxu0 0.0
      %1119 = vmatprep.subr.mxu0 0.0
      %1120 = vmatpush2.msra.mxu0 0.0
      %1121 = vmatprep.subr.mxu0 0.0
      %1122 = vmatpush2.msra.mxu0 0.0
      %1123 = vmatprep.subr.mxu0 0.0
      %1124 = vmatpush2.msra.mxu0 0.0
      %1125 = vmatprep.subr.mxu0 0.0
      %1126 = vmatpush2.msra.mxu0 0.0
      %1127 = vmatprep.subr.mxu0 0.0
      %1128 = vmatpush2.msra.mxu0 0.0
      %1129 = vmatprep.subr.mxu0 0.0
      %1130 = vmatpush2.msra.mxu0 0.0
      %1131 = vmatprep.subr.mxu0 0.0
      %1132 = vmatpush2.msra.mxu0 0.0
      %1133 = vmatprep.subr.mxu0 0.0
      %1134 = vmatpush2.msra.mxu0 0.0
      %1135 = vmatprep.subr.mxu0 0.0
      %1136 = vmatpush2.msra.mxu0 0.0
      %1137 = vmatprep.subr.mxu0 0.0
      %1138 = vmatpush2.msra.mxu0 0.0
      %1139 = vmatprep.subr.mxu0 0.0
      %1140 = vmatpush2.msra.mxu0 0.0
      %1141 = vmatprep.subr.mxu0 0.0
      %1142 = vmatpush2.msra.mxu0 0.0
      %1143 = vmatprep.subr.mxu0 0.0
      %1144 = vmatpush2.msra.mxu0 0.0
      %1145 = vmatprep.subr.mxu0 0.0
      %1146 = vmatpush2.msra.mxu0 0.0
      %1147 = vmatprep.subr.mxu0 0.0
      %1148 = vmatpush2.msra.mxu0 0.0
      %1149 = vmatprep.mubr.f32.mxu0 0.0
      %1150 = vmatmul.mubr.f32.gmra.mxu0 %v1059
      %v1151 = vpop.f32.mrf.mxu0
      %v1152 = vadd.f32 0.0, %v1151
      %v1153 = vpop.f32.mrf.mxu0
      %1154 = vmatprep.mubr.f32.mxu0 0.0
      %1155 = vmatmul.mubr.f32.gmra.mxu0 %v1062
      %v1156 = vpop.f32.mrf.mxu0
      %v1157 = vadd.f32 0.0, %v1156
      %v1158 = vpop.f32.mrf.mxu0
      %1159 = vmatprep.mubr.f32.mxu0 0.0
      %1160 = vmatmul.mubr.f32.gmra.mxu0 %v1065
      %v1161 = vpop.f32.mrf.mxu0
      %v1162 = vadd.f32 0.0, %v1161
      %v1163 = vpop.f32.mrf.mxu0
      %1164 = vmatprep.mubr.f32.mxu0 0.0
      %1165 = vmatmul.mubr.f32.gmra.mxu0 %v1068
      %v1166 = vpop.f32.mrf.mxu0
      %v1167 = vadd.f32 0.0, %v1166
      %v1168 = vpop.f32.mrf.mxu0
      %1169 = vmatprep.mubr.f32.mxu0 0.0
      %1170 = vmatmul.mubr.f32.gmra.mxu0 %v1071
      %v1171 = vpop.f32.mrf.mxu0
      %v1172 = vadd.f32 0.0, %v1171
      %v1173 = vpop.f32.mrf.mxu0
      %1174 = vmatprep.mubr.f32.mxu0 0.0
      %1175 = vmatmul.mubr.f32.gmra.mxu0 %v1074
      %v1176 = vpop.f32.mrf.mxu0
      %v1177 = vadd.f32 0.0, %v1176
      %v1178 = vpop.f32.mrf.mxu0
      %1179 = vmatprep.mubr.f32.mxu0 0.0
      %1180 = vmatmul.mubr.f32.gmra.mxu0 %v1077
      %v1181 = vpop.f32.mrf.mxu0
      %v1182 = vadd.f32 0.0, %v1181
      %v1183 = vpop.f32.mrf.mxu0
      %1184 = vmatprep.mubr.f32.mxu0 0.0
      %1185 = vmatmul.mubr.f32.gmra.mxu0 %v1080
      %v1186 = vpop.f32.mrf.mxu0
      %v1187 = vadd.f32 0.0, %v1186
      %v1188 = vpop.f32.mrf.mxu0
      %1189 = vdwg.mxu0
      %v1190 = vadd.f32 %v1032, %v1152
      %v1191 = vadd.f32 %v1033, %v1157
      %v1192 = vadd.f32 %v1034, %v1162
      %v1193 = vadd.f32 %v1035, %v1167
      %v1194 = vadd.f32 %v1036, %v1172
      %v1195 = vadd.f32 %v1037, %v1177
      %v1196 = vadd.f32 %v1038, %v1182
      %v1197 = vadd.f32 %v1039, %v1187
      %v1198 = vld [vmem:[#allocation2 + $0x10] sm:$0xff]
      %v1199 = vld [vmem:[#allocation2 + $0x18] sm:$0xff]
      %v1200 = vld [vmem:[#allocation2 + $0x20] sm:$0xff]
      %v1201 = vld [vmem:[#allocation2 + $0x28] sm:$0xff]
      %v1202 = vld [vmem:[#allocation2 + $0x30] sm:$0xff]
      %v1203 = vld [vmem:[#allocation2 + $0x38] sm:$0xff]
      %v1204 = vld [vmem:[#allocation2 + $0x40] sm:$0xff]
      %v1205 = vld [vmem:[#allocation2 + $0x48] sm:$0xff]
      %s1206 = scalar_lea.vmem %s3, 16
      %v1207 = vld [vmem:[%s1206] sm:$0xf]
      %v1209 = vsel %vm416, %v1198, 0
      %v1212 = vsel %vm416, %v1199, 0
      %v1215 = vsel %vm416, %v1200, 0
      %v1218 = vsel %vm416, %v1201, 0
      %v1221 = vsel %vm416, %v1202, 0
      %v1224 = vsel %vm416, %v1203, 0
      %v1227 = vsel %vm416, %v1204, 0
      %v1230 = vsel %vm416, %v1205, 0
      %v1233 = vsel %vm641, %v1207, 0
      %1235 = vmatprep.subr.mxu0 0.0
      %1236 = vmatpush1.msra.mxu0 0.0
      %1237 = vmatprep.subr.mxu0 0.0
      %1238 = vmatpush1.msra.mxu0 0.0
      %1239 = vmatprep.subr.mxu0 0.0
      %1240 = vmatpush1.msra.mxu0 0.0
      %1241 = vmatprep.subr.mxu0 0.0
      %1242 = vmatpush1.msra.mxu0 0.0
      %1243 = vmatprep.subr.mxu0 0.0
      %1244 = vmatpush1.msra.mxu0 0.0
      %1245 = vmatprep.subr.mxu0 0.0
      %1246 = vmatpush1.msra.mxu0 0.0
      %1247 = vmatprep.subr.mxu0 0.0
      %1248 = vmatpush1.msra.mxu0 0.0
      %1249 = vmatprep.subr.mxu0 0.0
      %1250 = vmatpush1.msra.mxu0 0.0
      %1251 = vmatprep.subr.mxu0 0.0
      %1252 = vmatpush1.msra.mxu0 0.0
      %1253 = vmatprep.subr.mxu0 0.0
      %1254 = vmatpush1.msra.mxu0 0.0
      %1255 = vmatprep.subr.mxu0 0.0
      %1256 = vmatpush1.msra.mxu0 0.0
      %1257 = vmatprep.subr.mxu0 0.0
      %1258 = vmatpush1.msra.mxu0 0.0
      %1259 = vmatprep.subr.mxu0 0.0
      %1260 = vmatpush1.msra.mxu0 0.0
      %1261 = vmatprep.subr.mxu0 0.0
      %1262 = vmatpush1.msra.mxu0 0.0
      %1263 = vmatprep.subr.mxu0 0.0
      %1264 = vmatpush1.msra.mxu0 0.0
      %1265 = vmatprep.subr.mxu0 0.0
      %1266 = vmatpush1.msra.mxu0 %v1233
      %1267 = vmatprep.subr.mxu0 0.0
      %1268 = vmatpush2.msra.mxu0 0.0
      %1269 = vmatprep.subr.mxu0 0.0
      %1270 = vmatpush2.msra.mxu0 0.0
      %1271 = vmatprep.subr.mxu0 0.0
      %1272 = vmatpush2.msra.mxu0 0.0
      %1273 = vmatprep.subr.mxu0 0.0
      %1274 = vmatpush2.msra.mxu0 0.0
      %1275 = vmatprep.subr.mxu0 0.0
      %1276 = vmatpush2.msra.mxu0 0.0
      %1277 = vmatprep.subr.mxu0 0.0
      %1278 = vmatpush2.msra.mxu0 0.0
      %1279 = vmatprep.subr.mxu0 0.0
      %1280 = vmatpush2.msra.mxu0 0.0
      %1281 = vmatprep.subr.mxu0 0.0
      %1282 = vmatpush2.msra.mxu0 0.0
      %1283 = vmatprep.subr.mxu0 0.0
      %1284 = vmatpush2.msra.mxu0 0.0
      %1285 = vmatprep.subr.mxu0 0.0
      %1286 = vmatpush2.msra.mxu0 0.0
      %1287 = vmatprep.subr.mxu0 0.0
      %1288 = vmatpush2.msra.mxu0 0.0
      %1289 = vmatprep.subr.mxu0 0.0
      %1290 = vmatpush2.msra.mxu0 0.0
      %1291 = vmatprep.subr.mxu0 0.0
      %1292 = vmatpush2.msra.mxu0 0.0
      %1293 = vmatprep.subr.mxu0 0.0
      %1294 = vmatpush2.msra.mxu0 0.0
      %1295 = vmatprep.subr.mxu0 0.0
      %1296 = vmatpush2.msra.mxu0 0.0
      %1297 = vmatprep.subr.mxu0 0.0
      %1298 = vmatpush2.msra.mxu0 0.0
      %1299 = vmatprep.mubr.f32.mxu0 0.0
      %1300 = vmatmul.mubr.f32.gmra.mxu0 %v1209
      %v1301 = vpop.f32.mrf.mxu0
      %v1302 = vadd.f32 0.0, %v1301
      %v1303 = vpop.f32.mrf.mxu0
      %1304 = vmatprep.mubr.f32.mxu0 0.0
      %1305 = vmatmul.mubr.f32.gmra.mxu0 %v1212
      %v1306 = vpop.f32.mrf.mxu0
      %v1307 = vadd.f32 0.0, %v1306
      %v1308 = vpop.f32.mrf.mxu0
      %1309 = vmatprep.mubr.f32.mxu0 0.0
      %1310 = vmatmul.mubr.f32.gmra.mxu0 %v1215
      %v1311 = vpop.f32.mrf.mxu0
      %v1312 = vadd.f32 0.0, %v1311
      %v1313 = vpop.f32.mrf.mxu0
      %1314 = vmatprep.mubr.f32.mxu0 0.0
      %1315 = vmatmul.mubr.f32.gmra.mxu0 %v1218
      %v1316 = vpop.f32.mrf.mxu0
      %v1317 = vadd.f32 0.0, %v1316
      %v1318 = vpop.f32.mrf.mxu0
      %1319 = vmatprep.mubr.f32.mxu0 0.0
      %1320 = vmatmul.mubr.f32.gmra.mxu0 %v1221
      %v1321 = vpop.f32.mrf.mxu0
      %v1322 = vadd.f32 0.0, %v1321
      %v1323 = vpop.f32.mrf.mxu0
      %1324 = vmatprep.mubr.f32.mxu0 0.0
      %1325 = vmatmul.mubr.f32.gmra.mxu0 %v1224
      %v1326 = vpop.f32.mrf.mxu0
      %v1327 = vadd.f32 0.0, %v1326
      %v1328 = vpop.f32.mrf.mxu0
      %1329 = vmatprep.mubr.f32.mxu0 0.0
      %1330 = vmatmul.mubr.f32.gmra.mxu0 %v1227
      %v1331 = vpop.f32.mrf.mxu0
      %v1332 = vadd.f32 0.0, %v1331
      %v1333 = vpop.f32.mrf.mxu0
      %1334 = vmatprep.mubr.f32.mxu0 0.0
      %1335 = vmatmul.mubr.f32.gmra.mxu0 %v1230
      %v1336 = vpop.f32.mrf.mxu0
      %v1337 = vadd.f32 0.0, %v1336
      %v1338 = vpop.f32.mrf.mxu0
      %1339 = vdwg.mxu0
      %v1340 = vadd.f32 %v1190, %v1302
      %v1341 = vadd.f32 %v1191, %v1307
      %v1342 = vadd.f32 %v1192, %v1312
      %v1343 = vadd.f32 %v1193, %v1317
      %v1344 = vadd.f32 %v1194, %v1322
      %v1345 = vadd.f32 %v1195, %v1327
      %v1346 = vadd.f32 %v1196, %v1332
      %v1347 = vadd.f32 %v1197, %v1337
      %v1348 = vld [vmem:[#allocation2 + $0x11] sm:$0xff]
      %v1349 = vld [vmem:[#allocation2 + $0x19] sm:$0xff]
      %v1350 = vld [vmem:[#allocation2 + $0x21] sm:$0xff]
      %v1351 = vld [vmem:[#allocation2 + $0x29] sm:$0xff]
      %v1352 = vld [vmem:[#allocation2 + $0x31] sm:$0xff]
      %v1353 = vld [vmem:[#allocation2 + $0x39] sm:$0xff]
      %v1354 = vld [vmem:[#allocation2 + $0x41] sm:$0xff]
      %v1355 = vld [vmem:[#allocation2 + $0x49] sm:$0xff]
      %v1356 = vmul.f32 %v1348, %v582
      %v1357 = vmul.f32 %v1349, %v583
      %v1358 = vmul.f32 %v1350, %v584
      %v1359 = vmul.f32 %v1351, %v585
      %v1360 = vmul.f32 %v1352, %v586
      %v1361 = vmul.f32 %v1353, %v587
      %v1362 = vmul.f32 %v1354, %v588
      %v1363 = vmul.f32 %v1355, %v589
      %s1364 = scalar_lea.vmem %s3, 20
      %v1365 = vld [vmem:[%s1364] sm:$0xf]
      %v1367 = vsel %vm416, %v1356, 0
      %v1370 = vsel %vm416, %v1357, 0
      %v1373 = vsel %vm416, %v1358, 0
      %v1376 = vsel %vm416, %v1359, 0
      %v1379 = vsel %vm416, %v1360, 0
      %v1382 = vsel %vm416, %v1361, 0
      %v1385 = vsel %vm416, %v1362, 0
      %v1388 = vsel %vm416, %v1363, 0
      %v1391 = vsel %vm641, %v1365, 0
      %1393 = vmatprep.subr.mxu0 0.0
      %1394 = vmatpush1.msra.mxu0 0.0
      %1395 = vmatprep.subr.mxu0 0.0
      %1396 = vmatpush1.msra.mxu0 0.0
      %1397 = vmatprep.subr.mxu0 0.0
      %1398 = vmatpush1.msra.mxu0 0.0
      %1399 = vmatprep.subr.mxu0 0.0
      %1400 = vmatpush1.msra.mxu0 0.0
      %1401 = vmatprep.subr.mxu0 0.0
      %1402 = vmatpush1.msra.mxu0 0.0
      %1403 = vmatprep.subr.mxu0 0.0
      %1404 = vmatpush1.msra.mxu0 0.0
      %1405 = vmatprep.subr.mxu0 0.0
      %1406 = vmatpush1.msra.mxu0 0.0
      %1407 = vmatprep.subr.mxu0 0.0
      %1408 = vmatpush1.msra.mxu0 0.0
      %1409 = vmatprep.subr.mxu0 0.0
      %1410 = vmatpush1.msra.mxu0 0.0
      %1411 = vmatprep.subr.mxu0 0.0
      %1412 = vmatpush1.msra.mxu0 0.0
      %1413 = vmatprep.subr.mxu0 0.0
      %1414 = vmatpush1.msra.mxu0 0.0
      %1415 = vmatprep.subr.mxu0 0.0
      %1416 = vmatpush1.msra.mxu0 0.0
      %1417 = vmatprep.subr.mxu0 0.0
      %1418 = vmatpush1.msra.mxu0 0.0
      %1419 = vmatprep.subr.mxu0 0.0
      %1420 = vmatpush1.msra.mxu0 0.0
      %1421 = vmatprep.subr.mxu0 0.0
      %1422 = vmatpush1.msra.mxu0 0.0
      %1423 = vmatprep.subr.mxu0 0.0
      %1424 = vmatpush1.msra.mxu0 %v1391
      %1425 = vmatprep.subr.mxu0 0.0
      %1426 = vmatpush2.msra.mxu0 0.0
      %1427 = vmatprep.subr.mxu0 0.0
      %1428 = vmatpush2.msra.mxu0 0.0
      %1429 = vmatprep.subr.mxu0 0.0
      %1430 = vmatpush2.msra.mxu0 0.0
      %1431 = vmatprep.subr.mxu0 0.0
      %1432 = vmatpush2.msra.mxu0 0.0
      %1433 = vmatprep.subr.mxu0 0.0
      %1434 = vmatpush2.msra.mxu0 0.0
      %1435 = vmatprep.subr.mxu0 0.0
      %1436 = vmatpush2.msra.mxu0 0.0
      %1437 = vmatprep.subr.mxu0 0.0
      %1438 = vmatpush2.msra.mxu0 0.0
      %1439 = vmatprep.subr.mxu0 0.0
      %1440 = vmatpush2.msra.mxu0 0.0
      %1441 = vmatprep.subr.mxu0 0.0
      %1442 = vmatpush2.msra.mxu0 0.0
      %1443 = vmatprep.subr.mxu0 0.0
      %1444 = vmatpush2.msra.mxu0 0.0
      %1445 = vmatprep.subr.mxu0 0.0
      %1446 = vmatpush2.msra.mxu0 0.0
      %1447 = vmatprep.subr.mxu0 0.0
      %1448 = vmatpush2.msra.mxu0 0.0
      %1449 = vmatprep.subr.mxu0 0.0
      %1450 = vmatpush2.msra.mxu0 0.0
      %1451 = vmatprep.subr.mxu0 0.0
      %1452 = vmatpush2.msra.mxu0 0.0
      %1453 = vmatprep.subr.mxu0 0.0
      %1454 = vmatpush2.msra.mxu0 0.0
      %1455 = vmatprep.subr.mxu0 0.0
      %1456 = vmatpush2.msra.mxu0 0.0
      %1457 = vmatprep.mubr.f32.mxu0 0.0
      %1458 = vmatmul.mubr.f32.gmra.mxu0 %v1367
      %v1459 = vpop.f32.mrf.mxu0
      %v1460 = vadd.f32 0.0, %v1459
      %v1461 = vpop.f32.mrf.mxu0
      %1462 = vmatprep.mubr.f32.mxu0 0.0
      %1463 = vmatmul.mubr.f32.gmra.mxu0 %v1370
      %v1464 = vpop.f32.mrf.mxu0
      %v1465 = vadd.f32 0.0, %v1464
      %v1466 = vpop.f32.mrf.mxu0
      %1467 = vmatprep.mubr.f32.mxu0 0.0
      %1468 = vmatmul.mubr.f32.gmra.mxu0 %v1373
      %v1469 = vpop.f32.mrf.mxu0
      %v1470 = vadd.f32 0.0, %v1469
      %v1471 = vpop.f32.mrf.mxu0
      %1472 = vmatprep.mubr.f32.mxu0 0.0
      %1473 = vmatmul.mubr.f32.gmra.mxu0 %v1376
      %v1474 = vpop.f32.mrf.mxu0
      %v1475 = vadd.f32 0.0, %v1474
      %v1476 = vpop.f32.mrf.mxu0
      %1477 = vmatprep.mubr.f32.mxu0 0.0
      %1478 = vmatmul.mubr.f32.gmra.mxu0 %v1379
      %v1479 = vpop.f32.mrf.mxu0
      %v1480 = vadd.f32 0.0, %v1479
      %v1481 = vpop.f32.mrf.mxu0
      %1482 = vmatprep.mubr.f32.mxu0 0.0
      %1483 = vmatmul.mubr.f32.gmra.mxu0 %v1382
      %v1484 = vpop.f32.mrf.mxu0
      %v1485 = vadd.f32 0.0, %v1484
      %v1486 = vpop.f32.mrf.mxu0
      %1487 = vmatprep.mubr.f32.mxu0 0.0
      %1488 = vmatmul.mubr.f32.gmra.mxu0 %v1385
      %v1489 = vpop.f32.mrf.mxu0
      %v1490 = vadd.f32 0.0, %v1489
      %v1491 = vpop.f32.mrf.mxu0
      %1492 = vmatprep.mubr.f32.mxu0 0.0
      %1493 = vmatmul.mubr.f32.gmra.mxu0 %v1388
      %v1494 = vpop.f32.mrf.mxu0
      %v1495 = vadd.f32 0.0, %v1494
      %v1496 = vpop.f32.mrf.mxu0
      %1497 = vdwg.mxu0
      %v1498 = vadd.f32 %v1340, %v1460
      %v1499 = vadd.f32 %v1341, %v1465
      %v1500 = vadd.f32 %v1342, %v1470
      %v1501 = vadd.f32 %v1343, %v1475
      %v1502 = vadd.f32 %v1344, %v1480
      %v1503 = vadd.f32 %v1345, %v1485
      %v1504 = vadd.f32 %v1346, %v1490
      %v1505 = vadd.f32 %v1347, %v1495
      %v1506 = vld [vmem:[#allocation2 + $0x17] sm:$0xff]
      %v1507 = vld [vmem:[#allocation2 + $0x1f] sm:$0xff]
      %v1508 = vld [vmem:[#allocation2 + $0x27] sm:$0xff]
      %v1509 = vld [vmem:[#allocation2 + $0x2f] sm:$0xff]
      %v1510 = vld [vmem:[#allocation2 + $0x37] sm:$0xff]
      %v1511 = vld [vmem:[#allocation2 + $0x3f] sm:$0xff]
      %v1512 = vld [vmem:[#allocation2 + $0x47] sm:$0xff]
      %v1513 = vld [vmem:[#allocation2 + $0x4f] sm:$0xff]
      %v1514 = vmul.f32 %v1506, %v558
      %v1515 = vmul.f32 %v1507, %v559
      %v1516 = vmul.f32 %v1508, %v560
      %v1517 = vmul.f32 %v1509, %v561
      %v1518 = vmul.f32 %v1510, %v562
      %v1519 = vmul.f32 %v1511, %v563
      %v1520 = vmul.f32 %v1512, %v564
      %v1521 = vmul.f32 %v1513, %v565
      %s1522 = scalar_lea.vmem %s3, 24
      %v1523 = vld [vmem:[%s1522] sm:$0xf]
      %v1525 = vsel %vm416, %v1514, 0
      %v1528 = vsel %vm416, %v1515, 0
      %v1531 = vsel %vm416, %v1516, 0
      %v1534 = vsel %vm416, %v1517, 0
      %v1537 = vsel %vm416, %v1518, 0
      %v1540 = vsel %vm416, %v1519, 0
      %v1543 = vsel %vm416, %v1520, 0
      %v1546 = vsel %vm416, %v1521, 0
      %v1549 = vsel %vm641, %v1523, 0
      %1551 = vmatprep.subr.mxu0 0.0
      %1552 = vmatpush1.msra.mxu0 0.0
      %1553 = vmatprep.subr.mxu0 0.0
      %1554 = vmatpush1.msra.mxu0 0.0
      %1555 = vmatprep.subr.mxu0 0.0
      %1556 = vmatpush1.msra.mxu0 0.0
      %1557 = vmatprep.subr.mxu0 0.0
      %1558 = vmatpush1.msra.mxu0 0.0
      %1559 = vmatprep.subr.mxu0 0.0
      %1560 = vmatpush1.msra.mxu0 0.0
      %1561 = vmatprep.subr.mxu0 0.0
      %1562 = vmatpush1.msra.mxu0 0.0
      %1563 = vmatprep.subr.mxu0 0.0
      %1564 = vmatpush1.msra.mxu0 0.0
      %1565 = vmatprep.subr.mxu0 0.0
      %1566 = vmatpush1.msra.mxu0 0.0
      %1567 = vmatprep.subr.mxu0 0.0
      %1568 = vmatpush1.msra.mxu0 0.0
      %1569 = vmatprep.subr.mxu0 0.0
      %1570 = vmatpush1.msra.mxu0 0.0
      %1571 = vmatprep.subr.mxu0 0.0
      %1572 = vmatpush1.msra.mxu0 0.0
      %1573 = vmatprep.subr.mxu0 0.0
      %1574 = vmatpush1.msra.mxu0 0.0
      %1575 = vmatprep.subr.mxu0 0.0
      %1576 = vmatpush1.msra.mxu0 0.0
      %1577 = vmatprep.subr.mxu0 0.0
      %1578 = vmatpush1.msra.mxu0 0.0
      %1579 = vmatprep.subr.mxu0 0.0
      %1580 = vmatpush1.msra.mxu0 0.0
      %1581 = vmatprep.subr.mxu0 0.0
      %1582 = vmatpush1.msra.mxu0 %v1549
      %1583 = vmatprep.subr.mxu0 0.0
      %1584 = vmatpush2.msra.mxu0 0.0
      %1585 = vmatprep.subr.mxu0 0.0
      %1586 = vmatpush2.msra.mxu0 0.0
      %1587 = vmatprep.subr.mxu0 0.0
      %1588 = vmatpush2.msra.mxu0 0.0
      %1589 = vmatprep.subr.mxu0 0.0
      %1590 = vmatpush2.msra.mxu0 0.0
      %1591 = vmatprep.subr.mxu0 0.0
      %1592 = vmatpush2.msra.mxu0 0.0
      %1593 = vmatprep.subr.mxu0 0.0
      %1594 = vmatpush2.msra.mxu0 0.0
      %1595 = vmatprep.subr.mxu0 0.0
      %1596 = vmatpush2.msra.mxu0 0.0
      %1597 = vmatprep.subr.mxu0 0.0
      %1598 = vmatpush2.msra.mxu0 0.0
      %1599 = vmatprep.subr.mxu0 0.0
      %1600 = vmatpush2.msra.mxu0 0.0
      %1601 = vmatprep.subr.mxu0 0.0
      %1602 = vmatpush2.msra.mxu0 0.0
      %1603 = vmatprep.subr.mxu0 0.0
      %1604 = vmatpush2.msra.mxu0 0.0
      %1605 = vmatprep.subr.mxu0 0.0
      %1606 = vmatpush2.msra.mxu0 0.0
      %1607 = vmatprep.subr.mxu0 0.0
      %1608 = vmatpush2.msra.mxu0 0.0
      %1609 = vmatprep.subr.mxu0 0.0
      %1610 = vmatpush2.msra.mxu0 0.0
      %1611 = vmatprep.subr.mxu0 0.0
      %1612 = vmatpush2.msra.mxu0 0.0
      %1613 = vmatprep.subr.mxu0 0.0
      %1614 = vmatpush2.msra.mxu0 0.0
      %1615 = vmatprep.mubr.f32.mxu0 0.0
      %1616 = vmatmul.mubr.f32.gmra.mxu0 %v1525
      %v1617 = vpop.f32.mrf.mxu0
      %v1618 = vadd.f32 0.0, %v1617
      %v1619 = vpop.f32.mrf.mxu0
      %1620 = vmatprep.mubr.f32.mxu0 0.0
      %1621 = vmatmul.mubr.f32.gmra.mxu0 %v1528
      %v1622 = vpop.f32.mrf.mxu0
      %v1623 = vadd.f32 0.0, %v1622
      %v1624 = vpop.f32.mrf.mxu0
      %1625 = vmatprep.mubr.f32.mxu0 0.0
      %1626 = vmatmul.mubr.f32.gmra.mxu0 %v1531
      %v1627 = vpop.f32.mrf.mxu0
      %v1628 = vadd.f32 0.0, %v1627
      %v1629 = vpop.f32.mrf.mxu0
      %1630 = vmatprep.mubr.f32.mxu0 0.0
      %1631 = vmatmul.mubr.f32.gmra.mxu0 %v1534
      %v1632 = vpop.f32.mrf.mxu0
      %v1633 = vadd.f32 0.0, %v1632
      %v1634 = vpop.f32.mrf.mxu0
      %1635 = vmatprep.mubr.f32.mxu0 0.0
      %1636 = vmatmul.mubr.f32.gmra.mxu0 %v1537
      %v1637 = vpop.f32.mrf.mxu0
      %v1638 = vadd.f32 0.0, %v1637
      %v1639 = vpop.f32.mrf.mxu0
      %1640 = vmatprep.mubr.f32.mxu0 0.0
      %1641 = vmatmul.mubr.f32.gmra.mxu0 %v1540
      %v1642 = vpop.f32.mrf.mxu0
      %v1643 = vadd.f32 0.0, %v1642
      %v1644 = vpop.f32.mrf.mxu0
      %1645 = vmatprep.mubr.f32.mxu0 0.0
      %1646 = vmatmul.mubr.f32.gmra.mxu0 %v1543
      %v1647 = vpop.f32.mrf.mxu0
      %v1648 = vadd.f32 0.0, %v1647
      %v1649 = vpop.f32.mrf.mxu0
      %1650 = vmatprep.mubr.f32.mxu0 0.0
      %1651 = vmatmul.mubr.f32.gmra.mxu0 %v1546
      %v1652 = vpop.f32.mrf.mxu0
      %v1653 = vadd.f32 0.0, %v1652
      %v1654 = vpop.f32.mrf.mxu0
      %1655 = vdwg.mxu0
      %v1656 = vadd.f32 %v1498, %v1618
      %v1657 = vadd.f32 %v1499, %v1623
      %v1658 = vadd.f32 %v1500, %v1628
      %v1659 = vadd.f32 %v1501, %v1633
      %v1660 = vadd.f32 %v1502, %v1638
      %v1661 = vadd.f32 %v1503, %v1643
      %v1662 = vadd.f32 %v1504, %v1648
      %v1663 = vadd.f32 %v1505, %v1653
      %v1664 = vld [vmem:[#allocation2 + $0x18] sm:$0xff]
      %v1665 = vld [vmem:[#allocation2 + $0x20] sm:$0xff]
      %v1666 = vld [vmem:[#allocation2 + $0x28] sm:$0xff]
      %v1667 = vld [vmem:[#allocation2 + $0x30] sm:$0xff]
      %v1668 = vld [vmem:[#allocation2 + $0x38] sm:$0xff]
      %v1669 = vld [vmem:[#allocation2 + $0x40] sm:$0xff]
      %v1670 = vld [vmem:[#allocation2 + $0x48] sm:$0xff]
      %v1671 = vld [vmem:[#allocation2 + $0x50] sm:$0xff]
      %s1672 = scalar_lea.vmem %s3, 28
      %v1673 = vld [vmem:[%s1672] sm:$0xf]
      %v1675 = vsel %vm416, %v1664, 0
      %v1678 = vsel %vm416, %v1665, 0
      %v1681 = vsel %vm416, %v1666, 0
      %v1684 = vsel %vm416, %v1667, 0
      %v1687 = vsel %vm416, %v1668, 0
      %v1690 = vsel %vm416, %v1669, 0
      %v1693 = vsel %vm416, %v1670, 0
      %v1696 = vsel %vm416, %v1671, 0
      %v1699 = vsel %vm641, %v1673, 0
      %1701 = vmatprep.subr.mxu0 0.0
      %1702 = vmatpush1.msra.mxu0 0.0
      %1703 = vmatprep.subr.mxu0 0.0
      %1704 = vmatpush1.msra.mxu0 0.0
      %1705 = vmatprep.subr.mxu0 0.0
      %1706 = vmatpush1.msra.mxu0 0.0
      %1707 = vmatprep.subr.mxu0 0.0
      %1708 = vmatpush1.msra.mxu0 0.0
      %1709 = vmatprep.subr.mxu0 0.0
      %1710 = vmatpush1.msra.mxu0 0.0
      %1711 = vmatprep.subr.mxu0 0.0
      %1712 = vmatpush1.msra.mxu0 0.0
      %1713 = vmatprep.subr.mxu0 0.0
      %1714 = vmatpush1.msra.mxu0 0.0
      %1715 = vmatprep.subr.mxu0 0.0
      %1716 = vmatpush1.msra.mxu0 0.0
      %1717 = vmatprep.subr.mxu0 0.0
      %1718 = vmatpush1.msra.mxu0 0.0
      %1719 = vmatprep.subr.mxu0 0.0
      %1720 = vmatpush1.msra.mxu0 0.0
      %1721 = vmatprep.subr.mxu0 0.0
      %1722 = vmatpush1.msra.mxu0 0.0
      %1723 = vmatprep.subr.mxu0 0.0
      %1724 = vmatpush1.msra.mxu0 0.0
      %1725 = vmatprep.subr.mxu0 0.0
      %1726 = vmatpush1.msra.mxu0 0.0
      %1727 = vmatprep.subr.mxu0 0.0
      %1728 = vmatpush1.msra.mxu0 0.0
      %1729 = vmatprep.subr.mxu0 0.0
      %1730 = vmatpush1.msra.mxu0 0.0
      %1731 = vmatprep.subr.mxu0 0.0
      %1732 = vmatpush1.msra.mxu0 %v1699
      %1733 = vmatprep.subr.mxu0 0.0
      %1734 = vmatpush2.msra.mxu0 0.0
      %1735 = vmatprep.subr.mxu0 0.0
      %1736 = vmatpush2.msra.mxu0 0.0
      %1737 = vmatprep.subr.mxu0 0.0
      %1738 = vmatpush2.msra.mxu0 0.0
      %1739 = vmatprep.subr.mxu0 0.0
      %1740 = vmatpush2.msra.mxu0 0.0
      %1741 = vmatprep.subr.mxu0 0.0
      %1742 = vmatpush2.msra.mxu0 0.0
      %1743 = vmatprep.subr.mxu0 0.0
      %1744 = vmatpush2.msra.mxu0 0.0
      %1745 = vmatprep.subr.mxu0 0.0
      %1746 = vmatpush2.msra.mxu0 0.0
      %1747 = vmatprep.subr.mxu0 0.0
      %1748 = vmatpush2.msra.mxu0 0.0
      %1749 = vmatprep.subr.mxu0 0.0
      %1750 = vmatpush2.msra.mxu0 0.0
      %1751 = vmatprep.subr.mxu0 0.0
      %1752 = vmatpush2.msra.mxu0 0.0
      %1753 = vmatprep.subr.mxu0 0.0
      %1754 = vmatpush2.msra.mxu0 0.0
      %1755 = vmatprep.subr.mxu0 0.0
      %1756 = vmatpush2.msra.mxu0 0.0
      %1757 = vmatprep.subr.mxu0 0.0
      %1758 = vmatpush2.msra.mxu0 0.0
      %1759 = vmatprep.subr.mxu0 0.0
      %1760 = vmatpush2.msra.mxu0 0.0
      %1761 = vmatprep.subr.mxu0 0.0
      %1762 = vmatpush2.msra.mxu0 0.0
      %1763 = vmatprep.subr.mxu0 0.0
      %1764 = vmatpush2.msra.mxu0 0.0
      %1765 = vmatprep.mubr.f32.mxu0 0.0
      %1766 = vmatmul.mubr.f32.gmra.mxu0 %v1675
      %v1767 = vpop.f32.mrf.mxu0
      %v1768 = vadd.f32 0.0, %v1767
      %v1769 = vpop.f32.mrf.mxu0
      %1770 = vmatprep.mubr.f32.mxu0 0.0
      %1771 = vmatmul.mubr.f32.gmra.mxu0 %v1678
      %v1772 = vpop.f32.mrf.mxu0
      %v1773 = vadd.f32 0.0, %v1772
      %v1774 = vpop.f32.mrf.mxu0
      %1775 = vmatprep.mubr.f32.mxu0 0.0
      %1776 = vmatmul.mubr.f32.gmra.mxu0 %v1681
      %v1777 = vpop.f32.mrf.mxu0
      %v1778 = vadd.f32 0.0, %v1777
      %v1779 = vpop.f32.mrf.mxu0
      %1780 = vmatprep.mubr.f32.mxu0 0.0
      %1781 = vmatmul.mubr.f32.gmra.mxu0 %v1684
      %v1782 = vpop.f32.mrf.mxu0
      %v1783 = vadd.f32 0.0, %v1782
      %v1784 = vpop.f32.mrf.mxu0
      %1785 = vmatprep.mubr.f32.mxu0 0.0
      %1786 = vmatmul.mubr.f32.gmra.mxu0 %v1687
      %v1787 = vpop.f32.mrf.mxu0
      %v1788 = vadd.f32 0.0, %v1787
      %v1789 = vpop.f32.mrf.mxu0
      %1790 = vmatprep.mubr.f32.mxu0 0.0
      %1791 = vmatmul.mubr.f32.gmra.mxu0 %v1690
      %v1792 = vpop.f32.mrf.mxu0
      %v1793 = vadd.f32 0.0, %v1792
      %v1794 = vpop.f32.mrf.mxu0
      %1795 = vmatprep.mubr.f32.mxu0 0.0
      %1796 = vmatmul.mubr.f32.gmra.mxu0 %v1693
      %v1797 = vpop.f32.mrf.mxu0
      %v1798 = vadd.f32 0.0, %v1797
      %v1799 = vpop.f32.mrf.mxu0
      %1800 = vmatprep.mubr.f32.mxu0 0.0
      %1801 = vmatmul.mubr.f32.gmra.mxu0 %v1696
      %v1802 = vpop.f32.mrf.mxu0
      %v1803 = vadd.f32 0.0, %v1802
      %v1804 = vpop.f32.mrf.mxu0
      %1805 = vdwg.mxu0
      %v1806 = vadd.f32 %v1656, %v1768
      %v1807 = vadd.f32 %v1657, %v1773
      %v1808 = vadd.f32 %v1658, %v1778
      %v1809 = vadd.f32 %v1659, %v1783
      %v1810 = vadd.f32 %v1660, %v1788
      %v1811 = vadd.f32 %v1661, %v1793
      %v1812 = vadd.f32 %v1662, %v1798
      %v1813 = vadd.f32 %v1663, %v1803
      %v1814 = vld [vmem:[#allocation2 + $0x19] sm:$0xff]
      %v1815 = vld [vmem:[#allocation2 + $0x21] sm:$0xff]
      %v1816 = vld [vmem:[#allocation2 + $0x29] sm:$0xff]
      %v1817 = vld [vmem:[#allocation2 + $0x31] sm:$0xff]
      %v1818 = vld [vmem:[#allocation2 + $0x39] sm:$0xff]
      %v1819 = vld [vmem:[#allocation2 + $0x41] sm:$0xff]
      %v1820 = vld [vmem:[#allocation2 + $0x49] sm:$0xff]
      %v1821 = vld [vmem:[#allocation2 + $0x51] sm:$0xff]
      %v1822 = vmul.f32 %v1814, %v582
      %v1823 = vmul.f32 %v1815, %v583
      %v1824 = vmul.f32 %v1816, %v584
      %v1825 = vmul.f32 %v1817, %v585
      %v1826 = vmul.f32 %v1818, %v586
      %v1827 = vmul.f32 %v1819, %v587
      %v1828 = vmul.f32 %v1820, %v588
      %v1829 = vmul.f32 %v1821, %v589
      %s1830 = scalar_lea.vmem %s3, 32
      %v1831 = vld [vmem:[%s1830] sm:$0xf]
      %v1833 = vsel %vm416, %v1822, 0
      %v1836 = vsel %vm416, %v1823, 0
      %v1839 = vsel %vm416, %v1824, 0
      %v1842 = vsel %vm416, %v1825, 0
      %v1845 = vsel %vm416, %v1826, 0
      %v1848 = vsel %vm416, %v1827, 0
      %v1851 = vsel %vm416, %v1828, 0
      %v1854 = vsel %vm416, %v1829, 0
      %v1857 = vsel %vm641, %v1831, 0
      %1859 = vmatprep.subr.mxu0 0.0
      %1860 = vmatpush1.msra.mxu0 0.0
      %1861 = vmatprep.subr.mxu0 0.0
      %1862 = vmatpush1.msra.mxu0 0.0
      %1863 = vmatprep.subr.mxu0 0.0
      %1864 = vmatpush1.msra.mxu0 0.0
      %1865 = vmatprep.subr.mxu0 0.0
      %1866 = vmatpush1.msra.mxu0 0.0
      %1867 = vmatprep.subr.mxu0 0.0
      %1868 = vmatpush1.msra.mxu0 0.0
      %1869 = vmatprep.subr.mxu0 0.0
      %1870 = vmatpush1.msra.mxu0 0.0
      %1871 = vmatprep.subr.mxu0 0.0
      %1872 = vmatpush1.msra.mxu0 0.0
      %1873 = vmatprep.subr.mxu0 0.0
      %1874 = vmatpush1.msra.mxu0 0.0
      %1875 = vmatprep.subr.mxu0 0.0
      %1876 = vmatpush1.msra.mxu0 0.0
      %1877 = vmatprep.subr.mxu0 0.0
      %1878 = vmatpush1.msra.mxu0 0.0
      %1879 = vmatprep.subr.mxu0 0.0
      %1880 = vmatpush1.msra.mxu0 0.0
      %1881 = vmatprep.subr.mxu0 0.0
      %1882 = vmatpush1.msra.mxu0 0.0
      %1883 = vmatprep.subr.mxu0 0.0
      %1884 = vmatpush1.msra.mxu0 0.0
      %1885 = vmatprep.subr.mxu0 0.0
      %1886 = vmatpush1.msra.mxu0 0.0
      %1887 = vmatprep.subr.mxu0 0.0
      %1888 = vmatpush1.msra.mxu0 0.0
      %1889 = vmatprep.subr.mxu0 0.0
      %1890 = vmatpush1.msra.mxu0 %v1857
      %1891 = vmatprep.subr.mxu0 0.0
      %1892 = vmatpush2.msra.mxu0 0.0
      %1893 = vmatprep.subr.mxu0 0.0
      %1894 = vmatpush2.msra.mxu0 0.0
      %1895 = vmatprep.subr.mxu0 0.0
      %1896 = vmatpush2.msra.mxu0 0.0
      %1897 = vmatprep.subr.mxu0 0.0
      %1898 = vmatpush2.msra.mxu0 0.0
      %1899 = vmatprep.subr.mxu0 0.0
      %1900 = vmatpush2.msra.mxu0 0.0
      %1901 = vmatprep.subr.mxu0 0.0
      %1902 = vmatpush2.msra.mxu0 0.0
      %1903 = vmatprep.subr.mxu0 0.0
      %1904 = vmatpush2.msra.mxu0 0.0
      %1905 = vmatprep.subr.mxu0 0.0
      %1906 = vmatpush2.msra.mxu0 0.0
      %1907 = vmatprep.subr.mxu0 0.0
      %1908 = vmatpush2.msra.mxu0 0.0
      %1909 = vmatprep.subr.mxu0 0.0
      %1910 = vmatpush2.msra.mxu0 0.0
      %1911 = vmatprep.subr.mxu0 0.0
      %1912 = vmatpush2.msra.mxu0 0.0
      %1913 = vmatprep.subr.mxu0 0.0
      %1914 = vmatpush2.msra.mxu0 0.0
      %1915 = vmatprep.subr.mxu0 0.0
      %1916 = vmatpush2.msra.mxu0 0.0
      %1917 = vmatprep.subr.mxu0 0.0
      %1918 = vmatpush2.msra.mxu0 0.0
      %1919 = vmatprep.subr.mxu0 0.0
      %1920 = vmatpush2.msra.mxu0 0.0
      %1921 = vmatprep.subr.mxu0 0.0
      %1922 = vmatpush2.msra.mxu0 0.0
      %1923 = vmatprep.mubr.f32.mxu0 0.0
      %1924 = vmatmul.mubr.f32.gmra.mxu0 %v1833
      %v1925 = vpop.f32.mrf.mxu0
      %v1926 = vadd.f32 0.0, %v1925
      %v1927 = vpop.f32.mrf.mxu0
      %1928 = vmatprep.mubr.f32.mxu0 0.0
      %1929 = vmatmul.mubr.f32.gmra.mxu0 %v1836
      %v1930 = vpop.f32.mrf.mxu0
      %v1931 = vadd.f32 0.0, %v1930
      %v1932 = vpop.f32.mrf.mxu0
      %1933 = vmatprep.mubr.f32.mxu0 0.0
      %1934 = vmatmul.mubr.f32.gmra.mxu0 %v1839
      %v1935 = vpop.f32.mrf.mxu0
      %v1936 = vadd.f32 0.0, %v1935
      %v1937 = vpop.f32.mrf.mxu0
      %1938 = vmatprep.mubr.f32.mxu0 0.0
      %1939 = vmatmul.mubr.f32.gmra.mxu0 %v1842
      %v1940 = vpop.f32.mrf.mxu0
      %v1941 = vadd.f32 0.0, %v1940
      %v1942 = vpop.f32.mrf.mxu0
      %1943 = vmatprep.mubr.f32.mxu0 0.0
      %1944 = vmatmul.mubr.f32.gmra.mxu0 %v1845
      %v1945 = vpop.f32.mrf.mxu0
      %v1946 = vadd.f32 0.0, %v1945
      %v1947 = vpop.f32.mrf.mxu0
      %1948 = vmatprep.mubr.f32.mxu0 0.0
      %1949 = vmatmul.mubr.f32.gmra.mxu0 %v1848
      %v1950 = vpop.f32.mrf.mxu0
      %v1951 = vadd.f32 0.0, %v1950
      %v1952 = vpop.f32.mrf.mxu0
      %1953 = vmatprep.mubr.f32.mxu0 0.0
      %1954 = vmatmul.mubr.f32.gmra.mxu0 %v1851
      %v1955 = vpop.f32.mrf.mxu0
      %v1956 = vadd.f32 0.0, %v1955
      %v1957 = vpop.f32.mrf.mxu0
      %1958 = vmatprep.mubr.f32.mxu0 0.0
      %1959 = vmatmul.mubr.f32.gmra.mxu0 %v1854
      %v1960 = vpop.f32.mrf.mxu0
      %v1961 = vadd.f32 0.0, %v1960
      %v1962 = vpop.f32.mrf.mxu0
      %1963 = vdwg.mxu0
      %v1964 = vadd.f32 %v1806, %v1926
      %v1965 = vadd.f32 %v1807, %v1931
      %v1966 = vadd.f32 %v1808, %v1936
      %v1967 = vadd.f32 %v1809, %v1941
      %v1968 = vadd.f32 %v1810, %v1946
      %v1969 = vadd.f32 %v1811, %v1951
      %v1970 = vadd.f32 %v1812, %v1956
      %v1971 = vadd.f32 %v1813, %v1961
      %vm1972 = vcmask 64512
      %1973 = vst.msk [vmem:[%s262] sm:$0xff] %vm1972, %v1964
      %1974 = vst.msk [vmem:[%s262 + $0x8] sm:$0xff] %vm1972, %v1965
      %1975 = vst.msk [vmem:[%s262 + $0x10] sm:$0xff] %vm1972, %v1966
      %1976 = vst.msk [vmem:[%s262 + $0x18] sm:$0xff] %vm1972, %v1967
      %1977 = vst.msk [vmem:[%s262 + $0x20] sm:$0xff] %vm1972, %v1968
      %1978 = vst.msk [vmem:[%s262 + $0x28] sm:$0xff] %vm1972, %v1969
      %1979 = vst.msk [vmem:[%s262 + $0x30] sm:$0xff] %vm1972, %v1970
      %1980 = vst.msk [vmem:[%s262 + $0x38] sm:$0xff] %vm1972, %v1971
      %v1981 = vsel %vm1972, %v1964, 0.0
      %v1982 = vsel %vm1972, %v1965, 0.0
      %v1983 = vadd.f32 %v1981, %v1982
      %v1984 = vsel %vm1972, %v1966, 0.0
      %v1985 = vadd.f32 %v1983, %v1984
      %v1986 = vsel %vm1972, %v1967, 0.0
      %v1987 = vadd.f32 %v1985, %v1986
      %v1988 = vsel %vm1972, %v1968, 0.0
      %v1989 = vadd.f32 %v1987, %v1988
      %v1990 = vsel %vm1972, %v1969, 0.0
      %v1991 = vadd.f32 %v1989, %v1990
      %v1992 = vsel %vm1972, %v1970, 0.0
      %v1993 = vadd.f32 %v1991, %v1992
      %v1994 = vsel %vm1972, %v1971, 0.0
      %v1995 = vadd.f32 %v1993, %v1994
      %v1996 = vrot.slane %v1995, 4
      %v1997 = vadd.f32 %v1995, %v1996
      %v1998 = vrot.slane %v1997, 2
      %v1999 = vadd.f32 %v1997, %v1998
      %v2000 = vrot.slane %v1999, 1
      %v2001 = vadd.f32 %v1999, %v2000
      %vm2002 = vcmask 57344
      %2003 = vst.msk [vmem:[%s265] sm:$0x1] %vm2002, %v2001
      %v2004 = vmul.f32 %v1964, %v1964
      %v2005 = vmul.f32 %v1965, %v1965
      %v2006 = vmul.f32 %v1966, %v1966
      %v2007 = vmul.f32 %v1967, %v1967
      %v2008 = vmul.f32 %v1968, %v1968
      %v2009 = vmul.f32 %v1969, %v1969
      %v2010 = vmul.f32 %v1970, %v1970
      %v2011 = vmul.f32 %v1971, %v1971
      %v2012 = vsel %vm1972, %v2004, 0.0
      %v2013 = vsel %vm1972, %v2005, 0.0
      %v2014 = vadd.f32 %v2012, %v2013
      %v2015 = vsel %vm1972, %v2006, 0.0
      %v2016 = vadd.f32 %v2014, %v2015
      %v2017 = vsel %vm1972, %v2007, 0.0
      %v2018 = vadd.f32 %v2016, %v2017
      %v2019 = vsel %vm1972, %v2008, 0.0
      %v2020 = vadd.f32 %v2018, %v2019
      %v2021 = vsel %vm1972, %v2009, 0.0
      %v2022 = vadd.f32 %v2020, %v2021
      %v2023 = vsel %vm1972, %v2010, 0.0
      %v2024 = vadd.f32 %v2022, %v2023
      %v2025 = vsel %vm1972, %v2011, 0.0
      %v2026 = vadd.f32 %v2024, %v2025
      %v2027 = vrot.slane %v2026, 4
      %v2028 = vadd.f32 %v2026, %v2027
      %v2029 = vrot.slane %v2028, 2
      %v2030 = vadd.f32 %v2028, %v2029
      %v2031 = vrot.slane %v2030, 1
      %v2032 = vadd.f32 %v2030, %v2031
      %2033 = vst.msk [vmem:[%s268] sm:$0x1] %vm2002, %v2032
      %p2034 = scmp.lt.s32.totalorder %s18, 1
      %s2035 = scalar_select %p2034, %s18, 1
      %s2036 = smul.addr %s2035, 8
      %s2037 = smul.addr %s2036, 8
      %s2038 = scalar_lea.vmem %s4, %s2037
      %p2039 = scmp.lt.s32.totalorder %s18, 1
      %s2040 = scalar_select %p2039, %s18, 1
      %s2041 = scalar_lea.vmem %s5, %s2040
      %p2042 = scmp.lt.s32.totalorder %s18, 1
      %s2043 = scalar_select %p2042, %s18, 1
      %s2044 = scalar_lea.vmem %s6, %s2043
      // Predicated region
      $region37: #{down_forward.3} parent=35 // pred_check
        %p2045 = pneg %p125
      $region38: #{down_forward.3} parent=35 // pred_check_branch
        %2047 = sbr.rel (%p2045) target = $region40
      $region39: #{down_forward.3} parent=35 // pred_region
        _
      $region40: #{down_forward.3} parent=35 // pred_fallthru
        _
      // Predicated region
      $region41: #{down_forward.3} parent=35 // pred_check
        %p2048 = pneg %p151
      $region42: #{down_forward.3} parent=35 // pred_check_branch
        %2050 = sbr.rel (%p2048) target = $region44
      $region43: #{down_forward.3} parent=35 // pred_region
        _
      $region44: #{down_forward.3} parent=35 // pred_fallthru
        _
      // Predicated region
      $region45: #{down_forward.3} parent=35 // pred_check
        %p2051 = pneg %p177
      $region46: #{down_forward.3} parent=35 // pred_check_branch
        %2053 = sbr.rel (%p2051) target = $region48
      $region47: #{down_forward.3} parent=35 // pred_region
        _
      $region48: #{down_forward.3} parent=35 // pred_fallthru
        _
    $region36: #{down_forward.3} parent=5 // pred_fallthru
      _
    %p2054 = scmp.le.s32.totalorder 2, %s13
    // Predicated region
    $region49: #{down_forward.3} parent=5 // pred_check
      %p2055 = pneg %p2054
    $region50: #{down_forward.3} parent=5 // pred_check_branch
      %2057 = sbr.rel (%p2055) target = $region52
    $region51: #{down_forward.3} parent=5 // pred_region
      %s2058 = ssub.s32 %s13, 2
      // Predicated region
      $region53: #{down_forward.3} parent=51 // pred_check
        %p2059 = pneg %p131
      $region54: #{down_forward.3} parent=51 // pred_check_branch
        %2061 = sbr.rel (%p2059) target = $region56
      $region55: #{down_forward.3} parent=51 // pred_region
        %p2062 = scmp.lt.s32.totalorder %s19, 1
        %s2063 = scalar_select %p2062, %s19, 1
        %s2064 = smul.addr %s2063, 8
        %s2065 = smul.addr %s2064, 8
        %s2066 = scalar_lea.vmem %s4, %s2065
      $region56: #{down_forward.3} parent=51 // pred_fallthru
        _
      // Predicated region
      $region57: #{down_forward.3} parent=51 // pred_check
        %p2067 = pneg %p157
      $region58: #{down_forward.3} parent=51 // pred_check_branch
        %2069 = sbr.rel (%p2067) target = $region60
      $region59: #{down_forward.3} parent=51 // pred_region
        %p2070 = scmp.lt.s32.totalorder %s19, 1
        %s2071 = scalar_select %p2070, %s19, 1
        %s2072 = scalar_lea.vmem %s5, %s2071
      $region60: #{down_forward.3} parent=51 // pred_fallthru
        _
      // Predicated region
      $region61: #{down_forward.3} parent=51 // pred_check
        %p2073 = pneg %p183
      $region62: #{down_forward.3} parent=51 // pred_check_branch
        %2075 = sbr.rel (%p2073) target = $region64
      $region63: #{down_forward.3} parent=51 // pred_region
        %p2076 = scmp.lt.s32.totalorder %s19, 1
        %s2077 = scalar_select %p2076, %s19, 1
        %s2078 = scalar_lea.vmem %s6, %s2077
      $region64: #{down_forward.3} parent=51 // pred_fallthru
        _
    $region52: #{down_forward.3} parent=5 // pred_fallthru
      _
  $region6: #{down_forward.3} parent=0 // loop_footer
    %s17 = sadd.s32 1, %s13
  $region7: #{down_forward.3} parent=0 // loop_footer_branch
    %12 = sbr.rel target = $region3
  $region8: #{down_forward.3} parent=0 // loop_exit
    _

</llo_original>
